<compile_context>
chip_gen: v7x
topology: tpu7x:2x2x1
jax: 0.10.0
libtpu: 0.0.40
codegen_flags: <defaults>
</compile_context>

<pallas_src>
import functools

import jax
import jax.numpy as jnp
from jax.experimental import pallas as pl
from jax.experimental.pallas import tpu as pltpu


# ----------------------------------------------------------------------------
# Small, self-consistent hyper-parameters (mirrors HumanRVQVAE args).
# ----------------------------------------------------------------------------
CFG = dict(
    N=2,                 # batch
    T=16,                # motion sequence length
    input_dim=16,        # codebook_dim_hands + codebook_dim_body
    motion_dim=12,       # output_dim of the decoder
    nb_code=64,          # codebook_size
    code_dim=32,         # codebook_dim
    down_t=2,            # down_sampling_ratio // 2
    stride_t=2,          # down_sampling_ratio // 2
    width=32,            # args.dim
    depth=2,             # args.depth
    dil_rate=3,          # dilation_growth_rate
    num_q=2,             # num_quantizers
)

# Resnet1D uses reverse_dilation -> dilations [rate**(depth-1), ..., rate**0]
DILATIONS = [CFG["dil_rate"] ** d for d in reversed(range(CFG["depth"]))]

SLAB_W = 128             # packed parameter slab lane width (dense 128-lane DMA)
SIDE_W = 128             # consolidated side-output slab lane width


# ----------------------------------------------------------------------------
# Fused kernel: batch elements folded into matmul rows; one grid step per block.
# ----------------------------------------------------------------------------
def _fused_kernel(x_ref, w_ref, dec_ref, side_ref, pad_buf, *, layout, cfg, bb):
    T = cfg["T"]
    st = cfg["stride_t"]
    Q, nb, C = cfg["num_q"], cfg["nb_code"], cfg["code_dim"]

    def rd(name):
        off, r, c = layout[name]
        return w_ref[off:off + r, 0:c]            # static slice of the packed slab

    # ---- Conv1d with fused pre/post ReLU + residual; ONE matmul over bb*T_out rows ----
    def conv(x, t_in, name, *, K, stride=1, dilation=1, padding=0,
             pre_relu=False, post_relu=False, residual=None):
        w = rd(name + "/w")                       # (K*Cin, Cout), pre-flattened
        b = rd(name + "/b")                       # (1, Cout)
        Cin = w.shape[0] // K
        if pre_relu:
            x = jnp.maximum(x, 0.0)
        t_pad = t_in + 2 * padding
        t_out = (t_pad - dilation * (K - 1) - 1) // stride + 1

        if K == 1 and padding == 0 and stride == 1:
            slab = x                              # 1x1 conv: no padding / shifting
        else:
            rows = []
            for e in range(bb):                   # per-element taps (no batch mixing)
                xe = x[e * t_in:(e + 1) * t_in, :]
                if padding > 0:                   # zero-pad in registers (no scratch)
                    z = jnp.zeros((padding, Cin), jnp.float32)
                    xp = jnp.concatenate([z, xe, z], axis=0)
                else:
                    xp = xe
                if stride == 1:
                    taps = [xp[k * dilation:k * dilation + t_out, :] for k in range(K)]
                else:
                    # strided down-conv: only user of the VMEM scratch; stride baked
                    # into the pl.ds read (no selection matmul).
                    assert t_pad <= pad_buf.shape[0] and Cin <= pad_buf.shape[1]
                    pad_buf[0:t_pad, 0:Cin] = xp
                    taps = [pad_buf[pl.ds(k * dilation, t_out, stride=stride),
                                    pl.ds(0, Cin)] for k in range(K)]
                rows.append(taps[0] if K == 1 else jnp.concatenate(taps, axis=1))
            slab = rows[0] if bb == 1 else jnp.concatenate(rows, axis=0)

        out = jnp.dot(slab, w, preferred_element_type=jnp.float32) + b
        if residual is not None:
            out = out + residual
        if post_relu:
            out = jnp.maximum(out, 0.0)
        return out, t_out

    def resnet(prefix, h, t):
        # ResConv1DBlock: x + conv2(relu(conv1(relu(x))))   (norm=None -> Identity)
        for l, dil in enumerate(DILATIONS):
            hh, _ = conv(h, t, f"{prefix}/res{l}/c1", K=3, padding=dil,
                         dilation=dil, pre_relu=True)
            h, _ = conv(hh, t, f"{prefix}/res{l}/c2", K=1, pre_relu=True, residual=h)
        return h

    def upsample2(x, stage):
        # nn.Upsample(scale_factor=2, mode='nearest'): constant 0/1 selection matrix
        # packed in the slab; one matmul over the whole folded batch.
        sel = rd(f"upsel{stage}")                 # (2m, m)
        return jnp.dot(sel, x, preferred_element_type=jnp.float32)

    def pad_lanes(a, w=SIDE_W):
        if a.shape[1] == w:
            return a
        return jnp.concatenate(
            [a, jnp.zeros((a.shape[0], w - a.shape[1]), jnp.float32)], axis=1)

    # ----------------------------- encoder -----------------------------------
    x = x_ref[...].astype(jnp.float32)            # (bb*T, input_dim)
    h, t = conv(x, T, "enc/in", K=3, padding=1, post_relu=True)
    for d in range(cfg["down_t"]):
        h, t = conv(h, t, f"enc/down{d}", K=2 * st, stride=st, padding=st // 2)
        h = resnet(f"enc/down{d}", h, t)
    h, t = conv(h, t, "enc/out", K=3, padding=1)  # (bb*Te, code_dim)

    # -------------------------- residual VQ ----------------------------------
    M = h.shape[0]
    col = jax.lax.broadcasted_iota(jnp.int32, (M, nb), 1)
    cb_off = layout["cb"][0]
    cbT_off = layout["cbT"][0]
    c2_off = layout["c2"][0]
    res_v = h
    q_out = jnp.zeros_like(h)
    idx_cols, sq_cols, cnt_cols = [], [], []
    for qi in range(Q):                           # residual VQ levels
        cbT = w_ref[cbT_off + qi * C:cbT_off + (qi + 1) * C, 0:nb]    # (C, nb)
        c2 = w_ref[c2_off + qi:c2_off + qi + 1, 0:nb]                 # (1, nb) precomputed
        cb = w_ref[cb_off + qi * nb:cb_off + (qi + 1) * nb, 0:C]      # (nb, C)
        xc = jnp.dot(res_v, cbT, preferred_element_type=jnp.float32)  # (M, nb)
        dist = c2 - 2.0 * xc                       # x^2 dropped (argmin-invariant)
        min_d = jnp.min(dist, axis=-1, keepdims=True)
        idx = jnp.min(jnp.where(dist <= min_d, col, nb),
                      axis=-1, keepdims=True)      # lowest-index argmin
        onehot = (col == idx).astype(jnp.float32)
        quant = jnp.dot(onehot, cb, preferred_element_type=jnp.float32)
        diff = res_v - quant
        sq_cols.append(jnp.sum(diff * diff).reshape(1, 1))       # sum sq err, this block
        cnt_cols.append(jnp.sum(onehot, axis=0, keepdims=True))  # code counts, this block
        idx_cols.append(idx)
        res_v = res_v - quant
        q_out = q_out + quant

    # ----------------------------- decoder -----------------------------------
    g, t = conv(q_out, t, "dec/in", K=3, padding=1, post_relu=True)
    for d in range(cfg["down_t"]):
        g = resnet(f"dec/up{d}", g, t)
        g = upsample2(g, d)
        t = 2 * t
        g, t = conv(g, t, f"dec/up{d}", K=3, padding=1)
    g, t = conv(g, t, "dec/mid", K=3, padding=1, post_relu=True)
    g, t = conv(g, t, "dec/out", K=3, padding=1)  # (bb*T, motion_dim)
    dec_ref[...] = g.astype(dec_ref.dtype)

    # ---------------- consolidated lane-dense side output slab ---------------
    # row 0: code counts (Q*nb); row 1: per-level sq err (Q); rows 2..2+M: indices (Q).
    counts_row = pad_lanes(jnp.concatenate(cnt_cols, axis=1))
    sq_row = pad_lanes(jnp.concatenate(sq_cols, axis=1))
    idx_blk = pad_lanes(jnp.concatenate(idx_cols, axis=1).astype(jnp.float32))
    tail = side_ref.shape[1] - (2 + M)
    pieces = [counts_row, sq_row, idx_blk]
    if tail > 0:
        pieces.append(jnp.zeros((tail, SIDE_W), jnp.float32))
    side_ref[0] = jnp.concatenate(pieces, axis=0)  # single dense (rows, 128) store


# ----------------------------------------------------------------------------
# Parameter initialization (deterministic, synthetic).  Conv weights stored
# pre-flattened as (K*Cin, Cout) so each conv is a single in-kernel matmul.
# ----------------------------------------------------------------------------
def init_params(key, cfg):
    keys = iter(jax.random.split(key, 256))

    def conv_p(cin, cout, k):
        kw, kb = jax.random.split(next(keys))
        scale = 1.0 / jnp.sqrt(jnp.float32(cin * k))
        w = jax.random.normal(kw, (k, cin, cout), jnp.float32) * scale
        return {"w": w.reshape(k * cin, cout),
                "b": jax.random.normal(kb, (1, cout), jnp.float32) * 0.01}

    def resnet_p():
        return [{"conv1": conv_p(cfg["width"], cfg["width"], 3),
                 "conv2": conv_p(cfg["width"], cfg["width"], 1)}
                for _ in range(cfg["depth"])]

    enc = {"conv_in": conv_p(cfg["input_dim"], cfg["width"], 3),
           "down": [{"down_conv": conv_p(cfg["width"], cfg["width"], 2 * cfg["stride_t"]),
                     "res": resnet_p()} for _ in range(cfg["down_t"])],
           "conv_out": conv_p(cfg["width"], cfg["code_dim"], 3)}

    dec = {"conv_in": conv_p(cfg["code_dim"], cfg["width"], 3),
           "up": [{"res": resnet_p(),
                   "up_conv": conv_p(cfg["width"], cfg["width"], 3)}
                  for _ in range(cfg["down_t"])],
           "conv_mid": conv_p(cfg["width"], cfg["width"], 3),
           "conv_out": conv_p(cfg["width"], cfg["motion_dim"], 3)}

    codebooks = jax.random.normal(
        next(keys), (cfg["num_q"], cfg["nb_code"], cfg["code_dim"]), jnp.float32) * 0.1

    return {"encoder": enc, "decoder": dec, "codebooks": codebooks}


# ----------------------------------------------------------------------------
# Pack every parameter leaf (plus derived codebook^T / norms / upsample selection
# matrices) into ONE (ROWS, 128) f32 slab; layout maps name -> (row_off, rows, cols).
# ----------------------------------------------------------------------------
def pack_params(params, cfg, bb):
    layout = {}
    pieces = []
    off = [0]

    def add(name, arr):
        arr = jnp.asarray(arr, jnp.float32)
        r, c = arr.shape
        r8 = -(-r // 8) * 8                        # 8-aligned row offset per leaf
        buf = jnp.zeros((r8, SLAB_W), jnp.float32).at[:r, :c].set(arr)
        layout[name] = (off[0], r, c)
        pieces.append(buf)
        off[0] += r8

    def add_conv(name, cp):
        add(name + "/w", cp["w"])
        add(name + "/b", cp["b"])

    enc, dec = params["encoder"], params["decoder"]
    add_conv("enc/in", enc["conv_in"])
    for d, blk in enumerate(enc["down"]):
        add_conv(f"enc/down{d}", blk["down_conv"])
        for l, rb in enumerate(blk["res"]):
            add_conv(f"enc/down{d}/res{l}/c1", rb["conv1"])
            add_conv(f"enc/down{d}/res{l}/c2", rb["conv2"])
    add_conv("enc/out", enc["conv_out"])
    add_conv("dec/in", dec["conv_in"])
    for d, blk in enumerate(dec["up"]):
        for l, rb in enumerate(blk["res"]):
            add_conv(f"dec/up{d}/res{l}/c1", rb["conv1"])
            add_conv(f"dec/up{d}/res{l}/c2", rb["conv2"])
        add_conv(f"dec/up{d}", blk["up_conv"])
    add_conv("dec/mid", dec["conv_mid"])
    add_conv("dec/out", dec["conv_out"])

    cb = params["codebooks"]                       # (Q, nb, C)
    Qn, nb, C = cb.shape
    add("cb", cb.reshape(Qn * nb, C))                              # (Q*nb, C)
    add("cbT", jnp.transpose(cb, (0, 2, 1)).reshape(Qn * C, nb))   # (Q*C, nb)
    add("c2", jnp.sum(cb * cb, axis=-1))                           # (Q, nb) code norms

    # Nearest-neighbor x2 upsample selection matrices (one per decoder up stage).
    Te = cfg["T"] // (cfg["stride_t"] ** cfg["down_t"])
    m = bb * Te
    for d in range(cfg["down_t"]):
        row = jnp.arange(2 * m)[:, None]
        colj = jnp.arange(m)[None, :]
        add(f"upsel{d}", (colj == row // 2).astype(jnp.float32))   # (2m, m)
        m *= 2

    return jnp.concatenate(pieces, axis=0), layout


# ----------------------------------------------------------------------------
# Forward wrapper: one fused pallas_call + tiny cross-block scalar reductions.
# grid_blocks=1 (default): whole batch folded into matmul rows (best on v5e/v6e).
# grid_blocks=2 on v7x: batch sharded across both TensorCores ("parallel" axis).
# ----------------------------------------------------------------------------
def human_rvqvae_forward(params, motion_encodings, *, grid_blocks=1):
    cfg = CFG
    N, T, Cin = motion_encodings.shape
    G = int(grid_blocks)
    assert N % G == 0, "grid_blocks must divide the batch"
    bb = N // G
    Te = T // (cfg["stride_t"] ** cfg["down_t"])
    Q, nb, C = cfg["num_q"], cfg["nb_code"], cfg["code_dim"]
    assert Q * nb <= SIDE_W and Q <= SIDE_W

    slab, layout = pack_params(params, cfg, bb)                # one packed param slab
    x2d = motion_encodings.reshape(N * T, Cin).astype(jnp.float32)

    side_rows = -(-(2 + bb * Te) // 8) * 8                     # lane-dense side slab rows
    pad_rows = -(-(T + 2 * (cfg["stride_t"] // 2)) // 8) * 8   # strided-conv scratch rows

    kernel = functools.partial(_fused_kernel, layout=layout, cfg=cfg, bb=bb)

    decoded2d, side = pl.pallas_call(
        kernel,
        grid=(G,),
        in_specs=[
            pl.BlockSpec((bb * T, Cin), lambda g: (g, 0)),
            pl.BlockSpec(slab.shape, lambda g: (0, 0)),        # grid-invariant: one DMA
        ],
        out_specs=(
            pl.BlockSpec((bb * T, cfg["motion_dim"]), lambda g: (g, 0)),
            pl.BlockSpec((1, side_rows, SIDE_W), lambda g: (g, 0, 0)),
        ),
        out_shape=(
            jax.ShapeDtypeStruct((N * T, cfg["motion_dim"]), jnp.float32),
            jax.ShapeDtypeStruct((G, side_rows, SIDE_W), jnp.float32),
        ),
        scratch_shapes=[pltpu.VMEM((pad_rows, cfg["width"]), jnp.float32)],
        compiler_params=pltpu.CompilerParams(dimension_semantics=("parallel",)),
    )(x2d, slab)

    # Unpack side slab + tiny cross-block reductions (Q scalars / Q*nb counters only).
    decoded = decoded2d.reshape(N, T, cfg["motion_dim"])
    counts = side[:, 0, :Q * nb].reshape(G, Q, nb).sum(axis=0)            # (Q, nb)
    sq = side[:, 1, :Q].sum(axis=0)                                       # (Q,)
    idx = side[:, 2:2 + bb * Te, :Q].reshape(N, Te, Q).astype(jnp.int32)  # (N, Te, Q)

    M_total = N * Te
    commit_loss = jnp.sum(sq) / jnp.float32(M_total * C)                  # commit_loss.sum()
    probs = counts / jnp.float32(M_total)
    perplexity = jnp.exp(-jnp.sum(probs * jnp.log(probs + 1e-7), axis=-1))

    return {
        "decoded_motion": decoded,                 # == postprocess(decoder(...))
        "indices": idx,
        "commit_loss": commit_loss,
        "perplexity": perplexity,                  # per-quantizer perplexity
    }


if __name__ == "__main__":
    key = jax.random.PRNGKey(0)
    kp, kx = jax.random.split(key)
    params = init_params(kp, CFG)
    x = jax.random.normal(kx, (CFG["N"], CFG["T"], CFG["input_dim"]), jnp.float32)

    fwd = jax.jit(human_rvqvae_forward, static_argnames=("grid_blocks",))
    out = fwd(params, x, grid_blocks=1)            # set grid_blocks=2 on v7x (2 TCs)
    out = jax.block_until_ready(out)

    assert out["decoded_motion"].shape == (CFG["N"], CFG["T"], CFG["motion_dim"])
    assert out["indices"].shape == (CFG["N"], CFG["T"] // (CFG["stride_t"] ** CFG["down_t"]),
                                    CFG["num_q"])
    assert out["commit_loss"].shape == ()
    assert out["perplexity"].shape == (CFG["num_q"],)
    print("KERNEL_OK")
</pallas_src>

<mosaic_0001>
module attributes {stable_mosaic.version = 11 : i64} {
  func.func @_fused_kernel(%arg0: i32, %arg1: memref<32x16xf32, #tpu.memory_space<vmem>>, %arg2: memref<2352x128xf32, #tpu.memory_space<vmem>>, %arg3: memref<32x12xf32, #tpu.memory_space<vmem>>, %arg4: memref<1x16x128xf32, #tpu.memory_space<vmem>>, %arg5: memref<24x32xf32, #tpu.memory_space<vmem>>) attributes {dimension_semantics = [#tpu.dimension_semantics<parallel>], iteration_bounds = array<i64: 1>, scalar_prefetch = 0 : i64, scratch_operands = 1 : i64, tpu.core_type = #tpu.core_type<tc>, window_params = [{transform_indices = @transform_0, window_bounds = array<i64: 32, 16>}, {pipeline_mode = #tpu.pipeline_mode<synchronous>, transform_indices = @transform_1, window_bounds = array<i64: 2352, 128>}, {transform_indices = @transform_2, window_bounds = array<i64: 32, 12>}, {transform_indices = @transform_3, window_bounds = array<i64: 1, 16, 128>}]} {
    %c0 = arith.constant 0 : index
    %c0_0 = arith.constant 0 : index
    %0 = vector.load %arg1[%c0, %c0_0] : memref<32x16xf32, #tpu.memory_space<vmem>>, vector<32x16xf32>
    %c0_1 = arith.constant 0 : index
    %c0_2 = arith.constant 0 : index
    %1 = vector.load %arg2[%c0_1, %c0_2] : memref<2352x128xf32, #tpu.memory_space<vmem>>, vector<48x32xf32>
    %c48 = arith.constant 48 : index
    %c0_3 = arith.constant 0 : index
    %2 = vector.load %arg2[%c48, %c0_3] : memref<2352x128xf32, #tpu.memory_space<vmem>>, vector<1x32xf32>
    %3 = vector.extract_strided_slice %0 {offsets = [0, 0], sizes = [16, 16], strides = [1, 1]} : vector<32x16xf32> to vector<16x16xf32>
    %cst = arith.constant 0.000000e+00 : f32
    %4 = vector.broadcast %cst : f32 to vector<1x16xf32>
    %5 = tpu.concatenate %4, %3, %4 in 0 : vector<1x16xf32>, vector<16x16xf32>, vector<1x16xf32> -> vector<18x16xf32>
    %6 = vector.extract_strided_slice %5 {offsets = [0, 0], sizes = [16, 16], strides = [1, 1]} : vector<18x16xf32> to vector<16x16xf32>
    %7 = vector.extract_strided_slice %5 {offsets = [1, 0], sizes = [16, 16], strides = [1, 1]} : vector<18x16xf32> to vector<16x16xf32>
    %8 = vector.extract_strided_slice %5 {offsets = [2, 0], sizes = [16, 16], strides = [1, 1]} : vector<18x16xf32> to vector<16x16xf32>
    %9 = tpu.concatenate %6, %7, %8 in 1 : vector<16x16xf32>, vector<16x16xf32>, vector<16x16xf32> -> vector<16x48xf32>
    %10 = vector.extract_strided_slice %0 {offsets = [16, 0], sizes = [16, 16], strides = [1, 1]} : vector<32x16xf32> to vector<16x16xf32>
    %cst_4 = arith.constant 0.000000e+00 : f32
    %11 = vector.broadcast %cst_4 : f32 to vector<1x16xf32>
    %12 = tpu.concatenate %11, %10, %11 in 0 : vector<1x16xf32>, vector<16x16xf32>, vector<1x16xf32> -> vector<18x16xf32>
    %13 = vector.extract_strided_slice %12 {offsets = [0, 0], sizes = [16, 16], strides = [1, 1]} : vector<18x16xf32> to vector<16x16xf32>
    %14 = vector.extract_strided_slice %12 {offsets = [1, 0], sizes = [16, 16], strides = [1, 1]} : vector<18x16xf32> to vector<16x16xf32>
    %15 = vector.extract_strided_slice %12 {offsets = [2, 0], sizes = [16, 16], strides = [1, 1]} : vector<18x16xf32> to vector<16x16xf32>
    %16 = tpu.concatenate %13, %14, %15 in 1 : vector<16x16xf32>, vector<16x16xf32>, vector<16x16xf32> -> vector<16x48xf32>
    %17 = tpu.concatenate %9, %16 in 0 : vector<16x48xf32>, vector<16x48xf32> -> vector<32x48xf32>
    %cst_5 = arith.constant dense<0.000000e+00> : vector<32x32xf32>
    %18 = tpu.matmul %17, %1, %cst_5 {dimension_numbers = #tpu.dot_dimension_numbers<[1], [0], [0], [1], [0, 0, 1, 1], [], []>} : vector<32x48xf32>, vector<48x32xf32>, vector<32x32xf32> -> vector<32x32xf32>
    %19 = vector.broadcast %2 : vector<1x32xf32> to vector<32x32xf32>
    %20 = arith.addf %18, %19 : vector<32x32xf32>
    %cst_6 = arith.constant 0.000000e+00 : f32
    %21 = vector.broadcast %cst_6 : f32 to vector<32x32xf32>
    %22 = arith.maximumf %20, %21 : vector<32x32xf32>
    %c56 = arith.constant 56 : index
    %c0_7 = arith.constant 0 : index
    %23 = vector.load %arg2[%c56, %c0_7] : memref<2352x128xf32, #tpu.memory_space<vmem>>, vector<128x32xf32>
    %c184 = arith.constant 184 : index
    %c0_8 = arith.constant 0 : index
    %24 = vector.load %arg2[%c184, %c0_8] : memref<2352x128xf32, #tpu.memory_space<vmem>>, vector<1x32xf32>
    %25 = vector.extract_strided_slice %22 {offsets = [0, 0], sizes = [16, 32], strides = [1, 1]} : vector<32x32xf32> to vector<16x32xf32>
    %cst_9 = arith.constant 0.000000e+00 : f32
    %26 = vector.broadcast %cst_9 : f32 to vector<1x32xf32>
    %27 = tpu.concatenate %26, %25, %26 in 0 : vector<1x32xf32>, vector<16x32xf32>, vector<1x32xf32> -> vector<18x32xf32>
    %c0_10 = arith.constant 0 : index
    %c0_11 = arith.constant 0 : index
    %28 = vector.load %arg5[%c0_10, %c0_11] : memref<24x32xf32, #tpu.memory_space<vmem>>, vector<18x32xf32>
    tpu.vector_store %arg5[%c0_10, %c0_11], %27 {strides = array<i32>} : memref<24x32xf32, #tpu.memory_space<vmem>>, vector<18x32xf32>,
    %c0_12 = arith.constant 0 : index
    %c0_13 = arith.constant 0 : index
    %29 = tpu.strided_load %arg5[%c0_12, %c0_13] {strides = array<i32: 2, 1>} : memref<24x32xf32, #tpu.memory_space<vmem>>, vector<8x32xf32>
    %c1 = arith.constant 1 : index
    %c0_14 = arith.constant 0 : index
    %30 = tpu.strided_load %arg5[%c1, %c0_14] {strides = array<i32: 2, 1>} : memref<24x32xf32, #tpu.memory_space<vmem>>, vector<8x32xf32>
    %c2 = arith.constant 2 : index
    %c0_15 = arith.constant 0 : index
    %31 = tpu.strided_load %arg5[%c2, %c0_15] {strides = array<i32: 2, 1>} : memref<24x32xf32, #tpu.memory_space<vmem>>, vector<8x32xf32>
    %c3 = arith.constant 3 : index
    %c0_16 = arith.constant 0 : index
    %32 = tpu.strided_load %arg5[%c3, %c0_16] {strides = array<i32: 2, 1>} : memref<24x32xf32, #tpu.memory_space<vmem>>, vector<8x32xf32>
    %33 = tpu.concatenate %29, %30, %31, %32 in 1 : vector<8x32xf32>, vector<8x32xf32>, vector<8x32xf32>, vector<8x32xf32> -> vector<8x128xf32>
    %34 = vector.extract_strided_slice %22 {offsets = [16, 0], sizes = [16, 32], strides = [1, 1]} : vector<32x32xf32> to vector<16x32xf32>
    %cst_17 = arith.constant 0.000000e+00 : f32
    %35 = vector.broadcast %cst_17 : f32 to vector<1x32xf32>
    %36 = tpu.concatenate %35, %34, %35 in 0 : vector<1x32xf32>, vector<16x32xf32>, vector<1x32xf32> -> vector<18x32xf32>
    %c0_18 = arith.constant 0 : index
    %c0_19 = arith.constant 0 : index
    %37 = vector.load %arg5[%c0_18, %c0_19] : memref<24x32xf32, #tpu.memory_space<vmem>>, vector<18x32xf32>
    tpu.vector_store %arg5[%c0_18, %c0_19], %36 {strides = array<i32>} : memref<24x32xf32, #tpu.memory_space<vmem>>, vector<18x32xf32>,
    %c0_20 = arith.constant 0 : index
    %c0_21 = arith.constant 0 : index
    %38 = tpu.strided_load %arg5[%c0_20, %c0_21] {strides = array<i32: 2, 1>} : memref<24x32xf32, #tpu.memory_space<vmem>>, vector<8x32xf32>
    %c1_22 = arith.constant 1 : index
    %c0_23 = arith.constant 0 : index
    %39 = tpu.strided_load %arg5[%c1_22, %c0_23] {strides = array<i32: 2, 1>} : memref<24x32xf32, #tpu.memory_space<vmem>>, vector<8x32xf32>
    %c2_24 = arith.constant 2 : index
    %c0_25 = arith.constant 0 : index
    %40 = tpu.strided_load %arg5[%c2_24, %c0_25] {strides = array<i32: 2, 1>} : memref<24x32xf32, #tpu.memory_space<vmem>>, vector<8x32xf32>
    %c3_26 = arith.constant 3 : index
    %c0_27 = arith.constant 0 : index
    %41 = tpu.strided_load %arg5[%c3_26, %c0_27] {strides = array<i32: 2, 1>} : memref<24x32xf32, #tpu.memory_space<vmem>>, vector<8x32xf32>
    %42 = tpu.concatenate %38, %39, %40, %41 in 1 : vector<8x32xf32>, vector<8x32xf32>, vector<8x32xf32>, vector<8x32xf32> -> vector<8x128xf32>
    %43 = tpu.concatenate %33, %42 in 0 : vector<8x128xf32>, vector<8x128xf32> -> vector<16x128xf32>
    %cst_28 = arith.constant dense<0.000000e+00> : vector<16x32xf32>
    %44 = tpu.matmul %43, %23, %cst_28 {dimension_numbers = #tpu.dot_dimension_numbers<[1], [0], [0], [1], [0, 0, 1, 1], [], []>} : vector<16x128xf32>, vector<128x32xf32>, vector<16x32xf32> -> vector<16x32xf32>
    %45 = vector.broadcast %24 : vector<1x32xf32> to vector<16x32xf32>
    %46 = arith.addf %44, %45 : vector<16x32xf32>
    %c192 = arith.constant 192 : index
    %c0_29 = arith.constant 0 : index
    %47 = vector.load %arg2[%c192, %c0_29] : memref<2352x128xf32, #tpu.memory_space<vmem>>, vector<96x32xf32>
    %c288 = arith.constant 288 : index
    %c0_30 = arith.constant 0 : index
    %48 = vector.load %arg2[%c288, %c0_30] : memref<2352x128xf32, #tpu.memory_space<vmem>>, vector<1x32xf32>
    %cst_31 = arith.constant 0.000000e+00 : f32
    %49 = vector.broadcast %cst_31 : f32 to vector<16x32xf32>
    %50 = arith.maximumf %46, %49 : vector<16x32xf32>
    %51 = vector.extract_strided_slice %50 {offsets = [0, 0], sizes = [8, 32], strides = [1, 1]} : vector<16x32xf32> to vector<8x32xf32>
    %cst_32 = arith.constant 0.000000e+00 : f32
    %52 = vector.broadcast %cst_32 : f32 to vector<3x32xf32>
    %53 = tpu.concatenate %52, %51, %52 in 0 : vector<3x32xf32>, vector<8x32xf32>, vector<3x32xf32> -> vector<14x32xf32>
    %54 = vector.extract_strided_slice %53 {offsets = [0, 0], sizes = [8, 32], strides = [1, 1]} : vector<14x32xf32> to vector<8x32xf32>
    %55 = vector.extract_strided_slice %53 {offsets = [3, 0], sizes = [8, 32], strides = [1, 1]} : vector<14x32xf32> to vector<8x32xf32>
    %56 = vector.extract_strided_slice %53 {offsets = [6, 0], sizes = [8, 32], strides = [1, 1]} : vector<14x32xf32> to vector<8x32xf32>
    %57 = tpu.concatenate %54, %55, %56 in 1 : vector<8x32xf32>, vector<8x32xf32>, vector<8x32xf32> -> vector<8x96xf32>
    %58 = vector.extract_strided_slice %50 {offsets = [8, 0], sizes = [8, 32], strides = [1, 1]} : vector<16x32xf32> to vector<8x32xf32>
    %cst_33 = arith.constant 0.000000e+00 : f32
    %59 = vector.broadcast %cst_33 : f32 to vector<3x32xf32>
    %60 = tpu.concatenate %59, %58, %59 in 0 : vector<3x32xf32>, vector<8x32xf32>, vector<3x32xf32> -> vector<14x32xf32>
    %61 = vector.extract_strided_slice %60 {offsets = [0, 0], sizes = [8, 32], strides = [1, 1]} : vector<14x32xf32> to vector<8x32xf32>
    %62 = vector.extract_strided_slice %60 {offsets = [3, 0], sizes = [8, 32], strides = [1, 1]} : vector<14x32xf32> to vector<8x32xf32>
    %63 = vector.extract_strided_slice %60 {offsets = [6, 0], sizes = [8, 32], strides = [1, 1]} : vector<14x32xf32> to vector<8x32xf32>
    %64 = tpu.concatenate %61, %62, %63 in 1 : vector<8x32xf32>, vector<8x32xf32>, vector<8x32xf32> -> vector<8x96xf32>
    %65 = tpu.concatenate %57, %64 in 0 : vector<8x96xf32>, vector<8x96xf32> -> vector<16x96xf32>
    %cst_34 = arith.constant dense<0.000000e+00> : vector<16x32xf32>
    %66 = tpu.matmul %65, %47, %cst_34 {dimension_numbers = #tpu.dot_dimension_numbers<[1], [0], [0], [1], [0, 0, 1, 1], [], []>} : vector<16x96xf32>, vector<96x32xf32>, vector<16x32xf32> -> vector<16x32xf32>
    %67 = vector.broadcast %48 : vector<1x32xf32> to vector<16x32xf32>
    %68 = arith.addf %66, %67 : vector<16x32xf32>
    %c296 = arith.constant 296 : index
    %c0_35 = arith.constant 0 : index
    %69 = vector.load %arg2[%c296, %c0_35] : memref<2352x128xf32, #tpu.memory_space<vmem>>, vector<32x32xf32>
    %c328 = arith.constant 328 : index
    %c0_36 = arith.constant 0 : index
    %70 = vector.load %arg2[%c328, %c0_36] : memref<2352x128xf32, #tpu.memory_space<vmem>>, vector<1x32xf32>
    %cst_37 = arith.constant 0.000000e+00 : f32
    %71 = vector.broadcast %cst_37 : f32 to vector<16x32xf32>
    %72 = arith.maximumf %68, %71 : vector<16x32xf32>
    %cst_38 = arith.constant dense<0.000000e+00> : vector<16x32xf32>
    %73 = tpu.matmul %72, %69, %cst_38 {dimension_numbers = #tpu.dot_dimension_numbers<[1], [0], [0], [1], [0, 0, 1, 1], [], []>} : vector<16x32xf32>, vector<32x32xf32>, vector<16x32xf32> -> vector<16x32xf32>
    %74 = vector.broadcast %70 : vector<1x32xf32> to vector<16x32xf32>
    %75 = arith.addf %73, %74 : vector<16x32xf32>
    %76 = arith.addf %75, %46 : vector<16x32xf32>
    %c336 = arith.constant 336 : index
    %c0_39 = arith.constant 0 : index
    %77 = vector.load %arg2[%c336, %c0_39] : memref<2352x128xf32, #tpu.memory_space<vmem>>, vector<96x32xf32>
    %c432 = arith.constant 432 : index
    %c0_40 = arith.constant 0 : index
    %78 = vector.load %arg2[%c432, %c0_40] : memref<2352x128xf32, #tpu.memory_space<vmem>>, vector<1x32xf32>
    %cst_41 = arith.constant 0.000000e+00 : f32
    %79 = vector.broadcast %cst_41 : f32 to vector<16x32xf32>
    %80 = arith.maximumf %76, %79 : vector<16x32xf32>
    %81 = vector.extract_strided_slice %80 {offsets = [0, 0], sizes = [8, 32], strides = [1, 1]} : vector<16x32xf32> to vector<8x32xf32>
    %cst_42 = arith.constant 0.000000e+00 : f32
    %82 = vector.broadcast %cst_42 : f32 to vector<1x32xf32>
    %83 = tpu.concatenate %82, %81, %82 in 0 : vector<1x32xf32>, vector<8x32xf32>, vector<1x32xf32> -> vector<10x32xf32>
    %84 = vector.extract_strided_slice %83 {offsets = [0, 0], sizes = [8, 32], strides = [1, 1]} : vector<10x32xf32> to vector<8x32xf32>
    %85 = vector.extract_strided_slice %83 {offsets = [1, 0], sizes = [8, 32], strides = [1, 1]} : vector<10x32xf32> to vector<8x32xf32>
    %86 = vector.extract_strided_slice %83 {offsets = [2, 0], sizes = [8, 32], strides = [1, 1]} : vector<10x32xf32> to vector<8x32xf32>
    %87 = tpu.concatenate %84, %85, %86 in 1 : vector<8x32xf32>, vector<8x32xf32>, vector<8x32xf32> -> vector<8x96xf32>
    %88 = vector.extract_strided_slice %80 {offsets = [8, 0], sizes = [8, 32], strides = [1, 1]} : vector<16x32xf32> to vector<8x32xf32>
    %cst_43 = arith.constant 0.000000e+00 : f32
    %89 = vector.broadcast %cst_43 : f32 to vector<1x32xf32>
    %90 = tpu.concatenate %89, %88, %89 in 0 : vector<1x32xf32>, vector<8x32xf32>, vector<1x32xf32> -> vector<10x32xf32>
    %91 = vector.extract_strided_slice %90 {offsets = [0, 0], sizes = [8, 32], strides = [1, 1]} : vector<10x32xf32> to vector<8x32xf32>
    %92 = vector.extract_strided_slice %90 {offsets = [1, 0], sizes = [8, 32], strides = [1, 1]} : vector<10x32xf32> to vector<8x32xf32>
    %93 = vector.extract_strided_slice %90 {offsets = [2, 0], sizes = [8, 32], strides = [1, 1]} : vector<10x32xf32> to vector<8x32xf32>
    %94 = tpu.concatenate %91, %92, %93 in 1 : vector<8x32xf32>, vector<8x32xf32>, vector<8x32xf32> -> vector<8x96xf32>
    %95 = tpu.concatenate %87, %94 in 0 : vector<8x96xf32>, vector<8x96xf32> -> vector<16x96xf32>
    %cst_44 = arith.constant dense<0.000000e+00> : vector<16x32xf32>
    %96 = tpu.matmul %95, %77, %cst_44 {dimension_numbers = #tpu.dot_dimension_numbers<[1], [0], [0], [1], [0, 0, 1, 1], [], []>} : vector<16x96xf32>, vector<96x32xf32>, vector<16x32xf32> -> vector<16x32xf32>
    %97 = vector.broadcast %78 : vector<1x32xf32> to vector<16x32xf32>
    %98 = arith.addf %96, %97 : vector<16x32xf32>
    %c440 = arith.constant 440 : index
    %c0_45 = arith.constant 0 : index
    %99 = vector.load %arg2[%c440, %c0_45] : memref<2352x128xf32, #tpu.memory_space<vmem>>, vector<32x32xf32>
    %c472 = arith.constant 472 : index
    %c0_46 = arith.constant 0 : index
    %100 = vector.load %arg2[%c472, %c0_46] : memref<2352x128xf32, #tpu.memory_space<vmem>>, vector<1x32xf32>
    %cst_47 = arith.constant 0.000000e+00 : f32
    %101 = vector.broadcast %cst_47 : f32 to vector<16x32xf32>
    %102 = arith.maximumf %98, %101 : vector<16x32xf32>
    %cst_48 = arith.constant dense<0.000000e+00> : vector<16x32xf32>
    %103 = tpu.matmul %102, %99, %cst_48 {dimension_numbers = #tpu.dot_dimension_numbers<[1], [0], [0], [1], [0, 0, 1, 1], [], []>} : vector<16x32xf32>, vector<32x32xf32>, vector<16x32xf32> -> vector<16x32xf32>
    %104 = vector.broadcast %100 : vector<1x32xf32> to vector<16x32xf32>
    %105 = arith.addf %103, %104 : vector<16x32xf32>
    %106 = arith.addf %105, %76 : vector<16x32xf32>
    %c480 = arith.constant 480 : index
    %c0_49 = arith.constant 0 : index
    %107 = vector.load %arg2[%c480, %c0_49] : memref<2352x128xf32, #tpu.memory_space<vmem>>, vector<128x32xf32>
    %c608 = arith.constant 608 : index
    %c0_50 = arith.constant 0 : index
    %108 = vector.load %arg2[%c608, %c0_50] : memref<2352x128xf32, #tpu.memory_space<vmem>>, vector<1x32xf32>
    %109 = vector.extract_strided_slice %106 {offsets = [0, 0], sizes = [8, 32], strides = [1, 1]} : vector<16x32xf32> to vector<8x32xf32>
    %cst_51 = arith.constant 0.000000e+00 : f32
    %110 = vector.broadcast %cst_51 : f32 to vector<1x32xf32>
    %111 = tpu.concatenate %110, %109, %110 in 0 : vector<1x32xf32>, vector<8x32xf32>, vector<1x32xf32> -> vector<10x32xf32>
    %c0_52 = arith.constant 0 : index
    %c0_53 = arith.constant 0 : index
    %112 = vector.load %arg5[%c0_52, %c0_53] : memref<24x32xf32, #tpu.memory_space<vmem>>, vector<10x32xf32>
    tpu.vector_store %arg5[%c0_52, %c0_53], %111 {strides = array<i32>} : memref<24x32xf32, #tpu.memory_space<vmem>>, vector<10x32xf32>,
    %c0_54 = arith.constant 0 : index
    %c0_55 = arith.constant 0 : index
    %113 = tpu.strided_load %arg5[%c0_54, %c0_55] {strides = array<i32: 2, 1>} : memref<24x32xf32, #tpu.memory_space<vmem>>, vector<4x32xf32>
    %c1_56 = arith.constant 1 : index
    %c0_57 = arith.constant 0 : index
    %114 = tpu.strided_load %arg5[%c1_56, %c0_57] {strides = array<i32: 2, 1>} : memref<24x32xf32, #tpu.memory_space<vmem>>, vector<4x32xf32>
    %c2_58 = arith.constant 2 : index
    %c0_59 = arith.constant 0 : index
    %115 = tpu.strided_load %arg5[%c2_58, %c0_59] {strides = array<i32: 2, 1>} : memref<24x32xf32, #tpu.memory_space<vmem>>, vector<4x32xf32>
    %c3_60 = arith.constant 3 : index
    %c0_61 = arith.constant 0 : index
    %116 = tpu.strided_load %arg5[%c3_60, %c0_61] {strides = array<i32: 2, 1>} : memref<24x32xf32, #tpu.memory_space<vmem>>, vector<4x32xf32>
    %117 = tpu.concatenate %113, %114, %115, %116 in 1 : vector<4x32xf32>, vector<4x32xf32>, vector<4x32xf32>, vector<4x32xf32> -> vector<4x128xf32>
    %118 = vector.extract_strided_slice %106 {offsets = [8, 0], sizes = [8, 32], strides = [1, 1]} : vector<16x32xf32> to vector<8x32xf32>
    %cst_62 = arith.constant 0.000000e+00 : f32
    %119 = vector.broadcast %cst_62 : f32 to vector<1x32xf32>
    %120 = tpu.concatenate %119, %118, %119 in 0 : vector<1x32xf32>, vector<8x32xf32>, vector<1x32xf32> -> vector<10x32xf32>
    %c0_63 = arith.constant 0 : index
    %c0_64 = arith.constant 0 : index
    %121 = vector.load %arg5[%c0_63, %c0_64] : memref<24x32xf32, #tpu.memory_space<vmem>>, vector<10x32xf32>
    tpu.vector_store %arg5[%c0_63, %c0_64], %120 {strides = array<i32>} : memref<24x32xf32, #tpu.memory_space<vmem>>, vector<10x32xf32>,
    %c0_65 = arith.constant 0 : index
    %c0_66 = arith.constant 0 : index
    %122 = tpu.strided_load %arg5[%c0_65, %c0_66] {strides = array<i32: 2, 1>} : memref<24x32xf32, #tpu.memory_space<vmem>>, vector<4x32xf32>
    %c1_67 = arith.constant 1 : index
    %c0_68 = arith.constant 0 : index
    %123 = tpu.strided_load %arg5[%c1_67, %c0_68] {strides = array<i32: 2, 1>} : memref<24x32xf32, #tpu.memory_space<vmem>>, vector<4x32xf32>
    %c2_69 = arith.constant 2 : index
    %c0_70 = arith.constant 0 : index
    %124 = tpu.strided_load %arg5[%c2_69, %c0_70] {strides = array<i32: 2, 1>} : memref<24x32xf32, #tpu.memory_space<vmem>>, vector<4x32xf32>
    %c3_71 = arith.constant 3 : index
    %c0_72 = arith.constant 0 : index
    %125 = tpu.strided_load %arg5[%c3_71, %c0_72] {strides = array<i32: 2, 1>} : memref<24x32xf32, #tpu.memory_space<vmem>>, vector<4x32xf32>
    %126 = tpu.concatenate %122, %123, %124, %125 in 1 : vector<4x32xf32>, vector<4x32xf32>, vector<4x32xf32>, vector<4x32xf32> -> vector<4x128xf32>
    %127 = tpu.concatenate %117, %126 in 0 : vector<4x128xf32>, vector<4x128xf32> -> vector<8x128xf32>
    %cst_73 = arith.constant dense<0.000000e+00> : vector<8x32xf32>
    %128 = tpu.matmul %127, %107, %cst_73 {dimension_numbers = #tpu.dot_dimension_numbers<[1], [0], [0], [1], [0, 0, 1, 1], [], []>} : vector<8x128xf32>, vector<128x32xf32>, vector<8x32xf32> -> vector<8x32xf32>
    %129 = vector.broadcast %108 : vector<1x32xf32> to vector<8x32xf32>
    %130 = arith.addf %128, %129 : vector<8x32xf32>
    %c616 = arith.constant 616 : index
    %c0_74 = arith.constant 0 : index
    %131 = vector.load %arg2[%c616, %c0_74] : memref<2352x128xf32, #tpu.memory_space<vmem>>, vector<96x32xf32>
    %c712 = arith.constant 712 : index
    %c0_75 = arith.constant 0 : index
    %132 = vector.load %arg2[%c712, %c0_75] : memref<2352x128xf32, #tpu.memory_space<vmem>>, vector<1x32xf32>
    %cst_76 = arith.constant 0.000000e+00 : f32
    %133 = vector.broadcast %cst_76 : f32 to vector<8x32xf32>
    %134 = arith.maximumf %130, %133 : vector<8x32xf32>
    %135 = vector.extract_strided_slice %134 {offsets = [0, 0], sizes = [4, 32], strides = [1, 1]} : vector<8x32xf32> to vector<4x32xf32>
    %cst_77 = arith.constant 0.000000e+00 : f32
    %136 = vector.broadcast %cst_77 : f32 to vector<3x32xf32>
    %137 = tpu.concatenate %136, %135, %136 in 0 : vector<3x32xf32>, vector<4x32xf32>, vector<3x32xf32> -> vector<10x32xf32>
    %138 = vector.extract_strided_slice %137 {offsets = [0, 0], sizes = [4, 32], strides = [1, 1]} : vector<10x32xf32> to vector<4x32xf32>
    %139 = vector.extract_strided_slice %137 {offsets = [3, 0], sizes = [4, 32], strides = [1, 1]} : vector<10x32xf32> to vector<4x32xf32>
    %140 = vector.extract_strided_slice %137 {offsets = [6, 0], sizes = [4, 32], strides = [1, 1]} : vector<10x32xf32> to vector<4x32xf32>
    %141 = tpu.concatenate %138, %139, %140 in 1 : vector<4x32xf32>, vector<4x32xf32>, vector<4x32xf32> -> vector<4x96xf32>
    %142 = vector.extract_strided_slice %134 {offsets = [4, 0], sizes = [4, 32], strides = [1, 1]} : vector<8x32xf32> to vector<4x32xf32>
    %cst_78 = arith.constant 0.000000e+00 : f32
    %143 = vector.broadcast %cst_78 : f32 to vector<3x32xf32>
    %144 = tpu.concatenate %143, %142, %143 in 0 : vector<3x32xf32>, vector<4x32xf32>, vector<3x32xf32> -> vector<10x32xf32>
    %145 = vector.extract_strided_slice %144 {offsets = [0, 0], sizes = [4, 32], strides = [1, 1]} : vector<10x32xf32> to vector<4x32xf32>
    %146 = vector.extract_strided_slice %144 {offsets = [3, 0], sizes = [4, 32], strides = [1, 1]} : vector<10x32xf32> to vector<4x32xf32>
    %147 = vector.extract_strided_slice %144 {offsets = [6, 0], sizes = [4, 32], strides = [1, 1]} : vector<10x32xf32> to vector<4x32xf32>
    %148 = tpu.concatenate %145, %146, %147 in 1 : vector<4x32xf32>, vector<4x32xf32>, vector<4x32xf32> -> vector<4x96xf32>
    %149 = tpu.concatenate %141, %148 in 0 : vector<4x96xf32>, vector<4x96xf32> -> vector<8x96xf32>
    %cst_79 = arith.constant dense<0.000000e+00> : vector<8x32xf32>
    %150 = tpu.matmul %149, %131, %cst_79 {dimension_numbers = #tpu.dot_dimension_numbers<[1], [0], [0], [1], [0, 0, 1, 1], [], []>} : vector<8x96xf32>, vector<96x32xf32>, vector<8x32xf32> -> vector<8x32xf32>
    %151 = vector.broadcast %132 : vector<1x32xf32> to vector<8x32xf32>
    %152 = arith.addf %150, %151 : vector<8x32xf32>
    %c720 = arith.constant 720 : index
    %c0_80 = arith.constant 0 : index
    %153 = vector.load %arg2[%c720, %c0_80] : memref<2352x128xf32, #tpu.memory_space<vmem>>, vector<32x32xf32>
    %c752 = arith.constant 752 : index
    %c0_81 = arith.constant 0 : index
    %154 = vector.load %arg2[%c752, %c0_81] : memref<2352x128xf32, #tpu.memory_space<vmem>>, vector<1x32xf32>
    %cst_82 = arith.constant 0.000000e+00 : f32
    %155 = vector.broadcast %cst_82 : f32 to vector<8x32xf32>
    %156 = arith.maximumf %152, %155 : vector<8x32xf32>
    %cst_83 = arith.constant dense<0.000000e+00> : vector<8x32xf32>
    %157 = tpu.matmul %156, %153, %cst_83 {dimension_numbers = #tpu.dot_dimension_numbers<[1], [0], [0], [1], [0, 0, 1, 1], [], []>} : vector<8x32xf32>, vector<32x32xf32>, vector<8x32xf32> -> vector<8x32xf32>
    %158 = vector.broadcast %154 : vector<1x32xf32> to vector<8x32xf32>
    %159 = arith.addf %157, %158 : vector<8x32xf32>
    %160 = arith.addf %159, %130 : vector<8x32xf32>
    %c760 = arith.constant 760 : index
    %c0_84 = arith.constant 0 : index
    %161 = vector.load %arg2[%c760, %c0_84] : memref<2352x128xf32, #tpu.memory_space<vmem>>, vector<96x32xf32>
    %c856 = arith.constant 856 : index
    %c0_85 = arith.constant 0 : index
    %162 = vector.load %arg2[%c856, %c0_85] : memref<2352x128xf32, #tpu.memory_space<vmem>>, vector<1x32xf32>
    %cst_86 = arith.constant 0.000000e+00 : f32
    %163 = vector.broadcast %cst_86 : f32 to vector<8x32xf32>
    %164 = arith.maximumf %160, %163 : vector<8x32xf32>
    %165 = vector.extract_strided_slice %164 {offsets = [0, 0], sizes = [4, 32], strides = [1, 1]} : vector<8x32xf32> to vector<4x32xf32>
    %cst_87 = arith.constant 0.000000e+00 : f32
    %166 = vector.broadcast %cst_87 : f32 to vector<1x32xf32>
    %167 = tpu.concatenate %166, %165, %166 in 0 : vector<1x32xf32>, vector<4x32xf32>, vector<1x32xf32> -> vector<6x32xf32>
    %168 = vector.extract_strided_slice %167 {offsets = [0, 0], sizes = [4, 32], strides = [1, 1]} : vector<6x32xf32> to vector<4x32xf32>
    %169 = vector.extract_strided_slice %167 {offsets = [1, 0], sizes = [4, 32], strides = [1, 1]} : vector<6x32xf32> to vector<4x32xf32>
    %170 = vector.extract_strided_slice %167 {offsets = [2, 0], sizes = [4, 32], strides = [1, 1]} : vector<6x32xf32> to vector<4x32xf32>
    %171 = tpu.concatenate %168, %169, %170 in 1 : vector<4x32xf32>, vector<4x32xf32>, vector<4x32xf32> -> vector<4x96xf32>
    %172 = vector.extract_strided_slice %164 {offsets = [4, 0], sizes = [4, 32], strides = [1, 1]} : vector<8x32xf32> to vector<4x32xf32>
    %cst_88 = arith.constant 0.000000e+00 : f32
    %173 = vector.broadcast %cst_88 : f32 to vector<1x32xf32>
    %174 = tpu.concatenate %173, %172, %173 in 0 : vector<1x32xf32>, vector<4x32xf32>, vector<1x32xf32> -> vector<6x32xf32>
    %175 = vector.extract_strided_slice %174 {offsets = [0, 0], sizes = [4, 32], strides = [1, 1]} : vector<6x32xf32> to vector<4x32xf32>
    %176 = vector.extract_strided_slice %174 {offsets = [1, 0], sizes = [4, 32], strides = [1, 1]} : vector<6x32xf32> to vector<4x32xf32>
    %177 = vector.extract_strided_slice %174 {offsets = [2, 0], sizes = [4, 32], strides = [1, 1]} : vector<6x32xf32> to vector<4x32xf32>
    %178 = tpu.concatenate %175, %176, %177 in 1 : vector<4x32xf32>, vector<4x32xf32>, vector<4x32xf32> -> vector<4x96xf32>
    %179 = tpu.concatenate %171, %178 in 0 : vector<4x96xf32>, vector<4x96xf32> -> vector<8x96xf32>
    %cst_89 = arith.constant dense<0.000000e+00> : vector<8x32xf32>
    %180 = tpu.matmul %179, %161, %cst_89 {dimension_numbers = #tpu.dot_dimension_numbers<[1], [0], [0], [1], [0, 0, 1, 1], [], []>} : vector<8x96xf32>, vector<96x32xf32>, vector<8x32xf32> -> vector<8x32xf32>
    %181 = vector.broadcast %162 : vector<1x32xf32> to vector<8x32xf32>
    %182 = arith.addf %180, %181 : vector<8x32xf32>
    %c864 = arith.constant 864 : index
    %c0_90 = arith.constant 0 : index
    %183 = vector.load %arg2[%c864, %c0_90] : memref<2352x128xf32, #tpu.memory_space<vmem>>, vector<32x32xf32>
    %c896 = arith.constant 896 : index
    %c0_91 = arith.constant 0 : index
    %184 = vector.load %arg2[%c896, %c0_91] : memref<2352x128xf32, #tpu.memory_space<vmem>>, vector<1x32xf32>
    %cst_92 = arith.constant 0.000000e+00 : f32
    %185 = vector.broadcast %cst_92 : f32 to vector<8x32xf32>
    %186 = arith.maximumf %182, %185 : vector<8x32xf32>
    %cst_93 = arith.constant dense<0.000000e+00> : vector<8x32xf32>
    %187 = tpu.matmul %186, %183, %cst_93 {dimension_numbers = #tpu.dot_dimension_numbers<[1], [0], [0], [1], [0, 0, 1, 1], [], []>} : vector<8x32xf32>, vector<32x32xf32>, vector<8x32xf32> -> vector<8x32xf32>
    %188 = vector.broadcast %184 : vector<1x32xf32> to vector<8x32xf32>
    %189 = arith.addf %187, %188 : vector<8x32xf32>
    %190 = arith.addf %189, %160 : vector<8x32xf32>
    %c904 = arith.constant 904 : index
    %c0_94 = arith.constant 0 : index
    %191 = vector.load %arg2[%c904, %c0_94] : memref<2352x128xf32, #tpu.memory_space<vmem>>, vector<96x32xf32>
    %c1000 = arith.constant 1000 : index
    %c0_95 = arith.constant 0 : index
    %192 = vector.load %arg2[%c1000, %c0_95] : memref<2352x128xf32, #tpu.memory_space<vmem>>, vector<1x32xf32>
    %193 = vector.extract_strided_slice %190 {offsets = [0, 0], sizes = [4, 32], strides = [1, 1]} : vector<8x32xf32> to vector<4x32xf32>
    %cst_96 = arith.constant 0.000000e+00 : f32
    %194 = vector.broadcast %cst_96 : f32 to vector<1x32xf32>
    %195 = tpu.concatenate %194, %193, %194 in 0 : vector<1x32xf32>, vector<4x32xf32>, vector<1x32xf32> -> vector<6x32xf32>
    %196 = vector.extract_strided_slice %195 {offsets = [0, 0], sizes = [4, 32], strides = [1, 1]} : vector<6x32xf32> to vector<4x32xf32>
    %197 = vector.extract_strided_slice %195 {offsets = [1, 0], sizes = [4, 32], strides = [1, 1]} : vector<6x32xf32> to vector<4x32xf32>
    %198 = vector.extract_strided_slice %195 {offsets = [2, 0], sizes = [4, 32], strides = [1, 1]} : vector<6x32xf32> to vector<4x32xf32>
    %199 = tpu.concatenate %196, %197, %198 in 1 : vector<4x32xf32>, vector<4x32xf32>, vector<4x32xf32> -> vector<4x96xf32>
    %200 = vector.extract_strided_slice %190 {offsets = [4, 0], sizes = [4, 32], strides = [1, 1]} : vector<8x32xf32> to vector<4x32xf32>
    %cst_97 = arith.constant 0.000000e+00 : f32
    %201 = vector.broadcast %cst_97 : f32 to vector<1x32xf32>
    %202 = tpu.concatenate %201, %200, %201 in 0 : vector<1x32xf32>, vector<4x32xf32>, vector<1x32xf32> -> vector<6x32xf32>
    %203 = vector.extract_strided_slice %202 {offsets = [0, 0], sizes = [4, 32], strides = [1, 1]} : vector<6x32xf32> to vector<4x32xf32>
    %204 = vector.extract_strided_slice %202 {offsets = [1, 0], sizes = [4, 32], strides = [1, 1]} : vector<6x32xf32> to vector<4x32xf32>
    %205 = vector.extract_strided_slice %202 {offsets = [2, 0], sizes = [4, 32], strides = [1, 1]} : vector<6x32xf32> to vector<4x32xf32>
    %206 = tpu.concatenate %203, %204, %205 in 1 : vector<4x32xf32>, vector<4x32xf32>, vector<4x32xf32> -> vector<4x96xf32>
    %207 = tpu.concatenate %199, %206 in 0 : vector<4x96xf32>, vector<4x96xf32> -> vector<8x96xf32>
    %cst_98 = arith.constant dense<0.000000e+00> : vector<8x32xf32>
    %208 = tpu.matmul %207, %191, %cst_98 {dimension_numbers = #tpu.dot_dimension_numbers<[1], [0], [0], [1], [0, 0, 1, 1], [], []>} : vector<8x96xf32>, vector<96x32xf32>, vector<8x32xf32> -> vector<8x32xf32>
    %209 = vector.broadcast %192 : vector<1x32xf32> to vector<8x32xf32>
    %210 = arith.addf %208, %209 : vector<8x32xf32>
    %211 = tpu.iota {dimensions = array<i32: 1>} : vector<8x64xi32>
    %cst_99 = arith.constant 0.000000e+00 : f32
    %212 = vector.broadcast %cst_99 : f32 to vector<8x32xf32>
    %c2232 = arith.constant 2232 : index
    %c0_100 = arith.constant 0 : index
    %213 = vector.load %arg2[%c2232, %c0_100] : memref<2352x128xf32, #tpu.memory_space<vmem>>, vector<32x64xf32>
    %c2296 = arith.constant 2296 : index
    %c0_101 = arith.constant 0 : index
    %214 = vector.load %arg2[%c2296, %c0_101] : memref<2352x128xf32, #tpu.memory_space<vmem>>, vector<1x64xf32>
    %c2104 = arith.constant 2104 : index
    %c0_102 = arith.constant 0 : index
    %215 = vector.load %arg2[%c2104, %c0_102] : memref<2352x128xf32, #tpu.memory_space<vmem>>, vector<64x32xf32>
    %cst_103 = arith.constant dense<0.000000e+00> : vector<8x64xf32>
    %216 = tpu.matmul %210, %213, %cst_103 {dimension_numbers = #tpu.dot_dimension_numbers<[1], [0], [0], [1], [0, 0, 1, 1], [], []>} : vector<8x32xf32>, vector<32x64xf32>, vector<8x64xf32> -> vector<8x64xf32>
    %cst_104 = arith.constant 2.000000e+00 : f32
    %217 = vector.broadcast %cst_104 : f32 to vector<8x64xf32>
    %218 = arith.mulf %217, %216 : vector<8x64xf32>
    %219 = vector.broadcast %214 : vector<1x64xf32> to vector<8x64xf32>
    %220 = arith.subf %219, %218 : vector<8x64xf32>
    %cst_105 = arith.constant dense<0x7F800000> : vector<8xf32>
    %221 = vector.multi_reduction <minimumf>, %220, %cst_105 [1] : vector<8x64xf32> to vector<8xf32>
    %222 = vector.shape_cast %221 : vector<8xf32> to vector<8x1xf32>
    %223 = vector.broadcast %222 : vector<8x1xf32> to vector<8x64xf32>
    %224 = arith.cmpf ole, %220, %223 : vector<8x64xf32>
    %c64_i32 = arith.constant 64 : i32
    %225 = vector.broadcast %c64_i32 : i32 to vector<8x64xi32>
    %226 = arith.select %224, %211, %225 : vector<8x64xi1>, vector<8x64xi32>
    %cst_106 = arith.constant dense<2147483647> : vector<8xi32>
    %227 = vector.multi_reduction <minsi>, %226, %cst_106 [1] : vector<8x64xi32> to vector<8xi32>
    %228 = vector.shape_cast %227 : vector<8xi32> to vector<8x1xi32>
    %229 = vector.broadcast %228 : vector<8x1xi32> to vector<8x64xi32>
    %230 = arith.cmpi eq, %211, %229 : vector<8x64xi32>
    %231 = arith.extui %230 : vector<8x64xi1> to vector<8x64xi32>
    %232 = arith.sitofp %231 : vector<8x64xi32> to vector<8x64xf32>
    %cst_107 = arith.constant dense<0.000000e+00> : vector<8x32xf32>
    %233 = tpu.matmul %232, %215, %cst_107 {dimension_numbers = #tpu.dot_dimension_numbers<[1], [0], [0], [1], [0, 0, 1, 1], [], []>} : vector<8x64xf32>, vector<64x32xf32>, vector<8x32xf32> -> vector<8x32xf32>
    %234 = arith.subf %210, %233 : vector<8x32xf32>
    %235 = arith.mulf %234, %234 : vector<8x32xf32>
    %236 = vector.shape_cast %235 : vector<8x32xf32> to vector<1x8x32xf32>
    %cst_108 = arith.constant dense<0.000000e+00> : vector<1xf32>
    %237 = vector.multi_reduction <add>, %236, %cst_108 [1, 2] : vector<1x8x32xf32> to vector<1xf32>
    %238 = vector.shape_cast %237 : vector<1xf32> to vector<1x1x1xf32>
    %239 = vector.extract %238[0, 0, 0] : f32 from vector<1x1x1xf32>
    %240 = vector.broadcast %239 : f32 to vector<1x1xf32>
    %cst_109 = arith.constant dense<0.000000e+00> : vector<64xf32>
    %241 = vector.multi_reduction <add>, %232, %cst_109 [0] : vector<8x64xf32> to vector<64xf32>
    %242 = vector.shape_cast %241 : vector<64xf32> to vector<1x64xf32>
    %243 = arith.subf %210, %233 : vector<8x32xf32>
    %244 = arith.addf %212, %233 : vector<8x32xf32>
    %c2264 = arith.constant 2264 : index
    %c0_110 = arith.constant 0 : index
    %245 = vector.load %arg2[%c2264, %c0_110] : memref<2352x128xf32, #tpu.memory_space<vmem>>, vector<32x64xf32>
    %c2297 = arith.constant 2297 : index
    %c0_111 = arith.constant 0 : index
    %246 = vector.load %arg2[%c2297, %c0_111] : memref<2352x128xf32, #tpu.memory_space<vmem>>, vector<1x64xf32>
    %c2168 = arith.constant 2168 : index
    %c0_112 = arith.constant 0 : index
    %247 = vector.load %arg2[%c2168, %c0_112] : memref<2352x128xf32, #tpu.memory_space<vmem>>, vector<64x32xf32>
    %cst_113 = arith.constant dense<0.000000e+00> : vector<8x64xf32>
    %248 = tpu.matmul %243, %245, %cst_113 {dimension_numbers = #tpu.dot_dimension_numbers<[1], [0], [0], [1], [0, 0, 1, 1], [], []>} : vector<8x32xf32>, vector<32x64xf32>, vector<8x64xf32> -> vector<8x64xf32>
    %cst_114 = arith.constant 2.000000e+00 : f32
    %249 = vector.broadcast %cst_114 : f32 to vector<8x64xf32>
    %250 = arith.mulf %249, %248 : vector<8x64xf32>
    %251 = vector.broadcast %246 : vector<1x64xf32> to vector<8x64xf32>
    %252 = arith.subf %251, %250 : vector<8x64xf32>
    %cst_115 = arith.constant dense<0x7F800000> : vector<8xf32>
    %253 = vector.multi_reduction <minimumf>, %252, %cst_115 [1] : vector<8x64xf32> to vector<8xf32>
    %254 = vector.shape_cast %253 : vector<8xf32> to vector<8x1xf32>
    %255 = vector.broadcast %254 : vector<8x1xf32> to vector<8x64xf32>
    %256 = arith.cmpf ole, %252, %255 : vector<8x64xf32>
    %c64_i32_116 = arith.constant 64 : i32
    %257 = vector.broadcast %c64_i32_116 : i32 to vector<8x64xi32>
    %258 = arith.select %256, %211, %257 : vector<8x64xi1>, vector<8x64xi32>
    %cst_117 = arith.constant dense<2147483647> : vector<8xi32>
    %259 = vector.multi_reduction <minsi>, %258, %cst_117 [1] : vector<8x64xi32> to vector<8xi32>
    %260 = vector.shape_cast %259 : vector<8xi32> to vector<8x1xi32>
    %261 = vector.broadcast %260 : vector<8x1xi32> to vector<8x64xi32>
    %262 = arith.cmpi eq, %211, %261 : vector<8x64xi32>
    %263 = arith.extui %262 : vector<8x64xi1> to vector<8x64xi32>
    %264 = arith.sitofp %263 : vector<8x64xi32> to vector<8x64xf32>
    %cst_118 = arith.constant dense<0.000000e+00> : vector<8x32xf32>
    %265 = tpu.matmul %264, %247, %cst_118 {dimension_numbers = #tpu.dot_dimension_numbers<[1], [0], [0], [1], [0, 0, 1, 1], [], []>} : vector<8x64xf32>, vector<64x32xf32>, vector<8x32xf32> -> vector<8x32xf32>
    %266 = arith.subf %243, %265 : vector<8x32xf32>
    %267 = arith.mulf %266, %266 : vector<8x32xf32>
    %268 = vector.shape_cast %267 : vector<8x32xf32> to vector<1x8x32xf32>
    %cst_119 = arith.constant dense<0.000000e+00> : vector<1xf32>
    %269 = vector.multi_reduction <add>, %268, %cst_119 [1, 2] : vector<1x8x32xf32> to vector<1xf32>
    %270 = vector.shape_cast %269 : vector<1xf32> to vector<1x1x1xf32>
    %271 = vector.extract %270[0, 0, 0] : f32 from vector<1x1x1xf32>
    %272 = vector.broadcast %271 : f32 to vector<1x1xf32>
    %cst_120 = arith.constant dense<0.000000e+00> : vector<64xf32>
    %273 = vector.multi_reduction <add>, %264, %cst_120 [0] : vector<8x64xf32> to vector<64xf32>
    %274 = vector.shape_cast %273 : vector<64xf32> to vector<1x64xf32>
    %275 = arith.addf %244, %265 : vector<8x32xf32>
    %c1008 = arith.constant 1008 : index
    %c0_121 = arith.constant 0 : index
    %276 = vector.load %arg2[%c1008, %c0_121] : memref<2352x128xf32, #tpu.memory_space<vmem>>, vector<96x32xf32>
    %c1104 = arith.constant 1104 : index
    %c0_122 = arith.constant 0 : index
    %277 = vector.load %arg2[%c1104, %c0_122] : memref<2352x128xf32, #tpu.memory_space<vmem>>, vector<1x32xf32>
    %278 = vector.extract_strided_slice %275 {offsets = [0, 0], sizes = [4, 32], strides = [1, 1]} : vector<8x32xf32> to vector<4x32xf32>
    %cst_123 = arith.constant 0.000000e+00 : f32
    %279 = vector.broadcast %cst_123 : f32 to vector<1x32xf32>
    %280 = tpu.concatenate %279, %278, %279 in 0 : vector<1x32xf32>, vector<4x32xf32>, vector<1x32xf32> -> vector<6x32xf32>
    %281 = vector.extract_strided_slice %280 {offsets = [0, 0], sizes = [4, 32], strides = [1, 1]} : vector<6x32xf32> to vector<4x32xf32>
    %282 = vector.extract_strided_slice %280 {offsets = [1, 0], sizes = [4, 32], strides = [1, 1]} : vector<6x32xf32> to vector<4x32xf32>
    %283 = vector.extract_strided_slice %280 {offsets = [2, 0], sizes = [4, 32], strides = [1, 1]} : vector<6x32xf32> to vector<4x32xf32>
    %284 = tpu.concatenate %281, %282, %283 in 1 : vector<4x32xf32>, vector<4x32xf32>, vector<4x32xf32> -> vector<4x96xf32>
    %285 = vector.extract_strided_slice %275 {offsets = [4, 0], sizes = [4, 32], strides = [1, 1]} : vector<8x32xf32> to vector<4x32xf32>
    %cst_124 = arith.constant 0.000000e+00 : f32
    %286 = vector.broadcast %cst_124 : f32 to vector<1x32xf32>
    %287 = tpu.concatenate %286, %285, %286 in 0 : vector<1x32xf32>, vector<4x32xf32>, vector<1x32xf32> -> vector<6x32xf32>
    %288 = vector.extract_strided_slice %287 {offsets = [0, 0], sizes = [4, 32], strides = [1, 1]} : vector<6x32xf32> to vector<4x32xf32>
    %289 = vector.extract_strided_slice %287 {offsets = [1, 0], sizes = [4, 32], strides = [1, 1]} : vector<6x32xf32> to vector<4x32xf32>
    %290 = vector.extract_strided_slice %287 {offsets = [2, 0], sizes = [4, 32], strides = [1, 1]} : vector<6x32xf32> to vector<4x32xf32>
    %291 = tpu.concatenate %288, %289, %290 in 1 : vector<4x32xf32>, vector<4x32xf32>, vector<4x32xf32> -> vector<4x96xf32>
    %292 = tpu.concatenate %284, %291 in 0 : vector<4x96xf32>, vector<4x96xf32> -> vector<8x96xf32>
    %cst_125 = arith.constant dense<0.000000e+00> : vector<8x32xf32>
    %293 = tpu.matmul %292, %276, %cst_125 {dimension_numbers = #tpu.dot_dimension_numbers<[1], [0], [0], [1], [0, 0, 1, 1], [], []>} : vector<8x96xf32>, vector<96x32xf32>, vector<8x32xf32> -> vector<8x32xf32>
    %294 = vector.broadcast %277 : vector<1x32xf32> to vector<8x32xf32>
    %295 = arith.addf %293, %294 : vector<8x32xf32>
    %cst_126 = arith.constant 0.000000e+00 : f32
    %296 = vector.broadcast %cst_126 : f32 to vector<8x32xf32>
    %297 = arith.maximumf %295, %296 : vector<8x32xf32>
    %c1112 = arith.constant 1112 : index
    %c0_127 = arith.constant 0 : index
    %298 = vector.load %arg2[%c1112, %c0_127] : memref<2352x128xf32, #tpu.memory_space<vmem>>, vector<96x32xf32>
    %c1208 = arith.constant 1208 : index
    %c0_128 = arith.constant 0 : index
    %299 = vector.load %arg2[%c1208, %c0_128] : memref<2352x128xf32, #tpu.memory_space<vmem>>, vector<1x32xf32>
    %cst_129 = arith.constant 0.000000e+00 : f32
    %300 = vector.broadcast %cst_129 : f32 to vector<8x32xf32>
    %301 = arith.maximumf %297, %300 : vector<8x32xf32>
    %302 = vector.extract_strided_slice %301 {offsets = [0, 0], sizes = [4, 32], strides = [1, 1]} : vector<8x32xf32> to vector<4x32xf32>
    %cst_130 = arith.constant 0.000000e+00 : f32
    %303 = vector.broadcast %cst_130 : f32 to vector<3x32xf32>
    %304 = tpu.concatenate %303, %302, %303 in 0 : vector<3x32xf32>, vector<4x32xf32>, vector<3x32xf32> -> vector<10x32xf32>
    %305 = vector.extract_strided_slice %304 {offsets = [0, 0], sizes = [4, 32], strides = [1, 1]} : vector<10x32xf32> to vector<4x32xf32>
    %306 = vector.extract_strided_slice %304 {offsets = [3, 0], sizes = [4, 32], strides = [1, 1]} : vector<10x32xf32> to vector<4x32xf32>
    %307 = vector.extract_strided_slice %304 {offsets = [6, 0], sizes = [4, 32], strides = [1, 1]} : vector<10x32xf32> to vector<4x32xf32>
    %308 = tpu.concatenate %305, %306, %307 in 1 : vector<4x32xf32>, vector<4x32xf32>, vector<4x32xf32> -> vector<4x96xf32>
    %309 = vector.extract_strided_slice %301 {offsets = [4, 0], sizes = [4, 32], strides = [1, 1]} : vector<8x32xf32> to vector<4x32xf32>
    %cst_131 = arith.constant 0.000000e+00 : f32
    %310 = vector.broadcast %cst_131 : f32 to vector<3x32xf32>
    %311 = tpu.concatenate %310, %309, %310 in 0 : vector<3x32xf32>, vector<4x32xf32>, vector<3x32xf32> -> vector<10x32xf32>
    %312 = vector.extract_strided_slice %311 {offsets = [0, 0], sizes = [4, 32], strides = [1, 1]} : vector<10x32xf32> to vector<4x32xf32>
    %313 = vector.extract_strided_slice %311 {offsets = [3, 0], sizes = [4, 32], strides = [1, 1]} : vector<10x32xf32> to vector<4x32xf32>
    %314 = vector.extract_strided_slice %311 {offsets = [6, 0], sizes = [4, 32], strides = [1, 1]} : vector<10x32xf32> to vector<4x32xf32>
    %315 = tpu.concatenate %312, %313, %314 in 1 : vector<4x32xf32>, vector<4x32xf32>, vector<4x32xf32> -> vector<4x96xf32>
    %316 = tpu.concatenate %308, %315 in 0 : vector<4x96xf32>, vector<4x96xf32> -> vector<8x96xf32>
    %cst_132 = arith.constant dense<0.000000e+00> : vector<8x32xf32>
    %317 = tpu.matmul %316, %298, %cst_132 {dimension_numbers = #tpu.dot_dimension_numbers<[1], [0], [0], [1], [0, 0, 1, 1], [], []>} : vector<8x96xf32>, vector<96x32xf32>, vector<8x32xf32> -> vector<8x32xf32>
    %318 = vector.broadcast %299 : vector<1x32xf32> to vector<8x32xf32>
    %319 = arith.addf %317, %318 : vector<8x32xf32>
    %c1216 = arith.constant 1216 : index
    %c0_133 = arith.constant 0 : index
    %320 = vector.load %arg2[%c1216, %c0_133] : memref<2352x128xf32, #tpu.memory_space<vmem>>, vector<32x32xf32>
    %c1248 = arith.constant 1248 : index
    %c0_134 = arith.constant 0 : index
    %321 = vector.load %arg2[%c1248, %c0_134] : memref<2352x128xf32, #tpu.memory_space<vmem>>, vector<1x32xf32>
    %cst_135 = arith.constant 0.000000e+00 : f32
    %322 = vector.broadcast %cst_135 : f32 to vector<8x32xf32>
    %323 = arith.maximumf %319, %322 : vector<8x32xf32>
    %cst_136 = arith.constant dense<0.000000e+00> : vector<8x32xf32>
    %324 = tpu.matmul %323, %320, %cst_136 {dimension_numbers = #tpu.dot_dimension_numbers<[1], [0], [0], [1], [0, 0, 1, 1], [], []>} : vector<8x32xf32>, vector<32x32xf32>, vector<8x32xf32> -> vector<8x32xf32>
    %325 = vector.broadcast %321 : vector<1x32xf32> to vector<8x32xf32>
    %326 = arith.addf %324, %325 : vector<8x32xf32>
    %327 = arith.addf %326, %297 : vector<8x32xf32>
    %c1256 = arith.constant 1256 : index
    %c0_137 = arith.constant 0 : index
    %328 = vector.load %arg2[%c1256, %c0_137] : memref<2352x128xf32, #tpu.memory_space<vmem>>, vector<96x32xf32>
    %c1352 = arith.constant 1352 : index
    %c0_138 = arith.constant 0 : index
    %329 = vector.load %arg2[%c1352, %c0_138] : memref<2352x128xf32, #tpu.memory_space<vmem>>, vector<1x32xf32>
    %cst_139 = arith.constant 0.000000e+00 : f32
    %330 = vector.broadcast %cst_139 : f32 to vector<8x32xf32>
    %331 = arith.maximumf %327, %330 : vector<8x32xf32>
    %332 = vector.extract_strided_slice %331 {offsets = [0, 0], sizes = [4, 32], strides = [1, 1]} : vector<8x32xf32> to vector<4x32xf32>
    %cst_140 = arith.constant 0.000000e+00 : f32
    %333 = vector.broadcast %cst_140 : f32 to vector<1x32xf32>
    %334 = tpu.concatenate %333, %332, %333 in 0 : vector<1x32xf32>, vector<4x32xf32>, vector<1x32xf32> -> vector<6x32xf32>
    %335 = vector.extract_strided_slice %334 {offsets = [0, 0], sizes = [4, 32], strides = [1, 1]} : vector<6x32xf32> to vector<4x32xf32>
    %336 = vector.extract_strided_slice %334 {offsets = [1, 0], sizes = [4, 32], strides = [1, 1]} : vector<6x32xf32> to vector<4x32xf32>
    %337 = vector.extract_strided_slice %334 {offsets = [2, 0], sizes = [4, 32], strides = [1, 1]} : vector<6x32xf32> to vector<4x32xf32>
    %338 = tpu.concatenate %335, %336, %337 in 1 : vector<4x32xf32>, vector<4x32xf32>, vector<4x32xf32> -> vector<4x96xf32>
    %339 = vector.extract_strided_slice %331 {offsets = [4, 0], sizes = [4, 32], strides = [1, 1]} : vector<8x32xf32> to vector<4x32xf32>
    %cst_141 = arith.constant 0.000000e+00 : f32
    %340 = vector.broadcast %cst_141 : f32 to vector<1x32xf32>
    %341 = tpu.concatenate %340, %339, %340 in 0 : vector<1x32xf32>, vector<4x32xf32>, vector<1x32xf32> -> vector<6x32xf32>
    %342 = vector.extract_strided_slice %341 {offsets = [0, 0], sizes = [4, 32], strides = [1, 1]} : vector<6x32xf32> to vector<4x32xf32>
    %343 = vector.extract_strided_slice %341 {offsets = [1, 0], sizes = [4, 32], strides = [1, 1]} : vector<6x32xf32> to vector<4x32xf32>
    %344 = vector.extract_strided_slice %341 {offsets = [2, 0], sizes = [4, 32], strides = [1, 1]} : vector<6x32xf32> to vector<4x32xf32>
    %345 = tpu.concatenate %342, %343, %344 in 1 : vector<4x32xf32>, vector<4x32xf32>, vector<4x32xf32> -> vector<4x96xf32>
    %346 = tpu.concatenate %338, %345 in 0 : vector<4x96xf32>, vector<4x96xf32> -> vector<8x96xf32>
    %cst_142 = arith.constant dense<0.000000e+00> : vector<8x32xf32>
    %347 = tpu.matmul %346, %328, %cst_142 {dimension_numbers = #tpu.dot_dimension_numbers<[1], [0], [0], [1], [0, 0, 1, 1], [], []>} : vector<8x96xf32>, vector<96x32xf32>, vector<8x32xf32> -> vector<8x32xf32>
    %348 = vector.broadcast %329 : vector<1x32xf32> to vector<8x32xf32>
    %349 = arith.addf %347, %348 : vector<8x32xf32>
    %c1360 = arith.constant 1360 : index
    %c0_143 = arith.constant 0 : index
    %350 = vector.load %arg2[%c1360, %c0_143] : memref<2352x128xf32, #tpu.memory_space<vmem>>, vector<32x32xf32>
    %c1392 = arith.constant 1392 : index
    %c0_144 = arith.constant 0 : index
    %351 = vector.load %arg2[%c1392, %c0_144] : memref<2352x128xf32, #tpu.memory_space<vmem>>, vector<1x32xf32>
    %cst_145 = arith.constant 0.000000e+00 : f32
    %352 = vector.broadcast %cst_145 : f32 to vector<8x32xf32>
    %353 = arith.maximumf %349, %352 : vector<8x32xf32>
    %cst_146 = arith.constant dense<0.000000e+00> : vector<8x32xf32>
    %354 = tpu.matmul %353, %350, %cst_146 {dimension_numbers = #tpu.dot_dimension_numbers<[1], [0], [0], [1], [0, 0, 1, 1], [], []>} : vector<8x32xf32>, vector<32x32xf32>, vector<8x32xf32> -> vector<8x32xf32>
    %355 = vector.broadcast %351 : vector<1x32xf32> to vector<8x32xf32>
    %356 = arith.addf %354, %355 : vector<8x32xf32>
    %357 = arith.addf %356, %327 : vector<8x32xf32>
    %c2304 = arith.constant 2304 : index
    %c0_147 = arith.constant 0 : index
    %358 = vector.load %arg2[%c2304, %c0_147] : memref<2352x128xf32, #tpu.memory_space<vmem>>, vector<16x8xf32>
    %cst_148 = arith.constant dense<0.000000e+00> : vector<16x32xf32>
    %359 = tpu.matmul %358, %357, %cst_148 {dimension_numbers = #tpu.dot_dimension_numbers<[1], [0], [0], [1], [0, 0, 1, 1], [], []>} : vector<16x8xf32>, vector<8x32xf32>, vector<16x32xf32> -> vector<16x32xf32>
    %c1400 = arith.constant 1400 : index
    %c0_149 = arith.constant 0 : index
    %360 = vector.load %arg2[%c1400, %c0_149] : memref<2352x128xf32, #tpu.memory_space<vmem>>, vector<96x32xf32>
    %c1496 = arith.constant 1496 : index
    %c0_150 = arith.constant 0 : index
    %361 = vector.load %arg2[%c1496, %c0_150] : memref<2352x128xf32, #tpu.memory_space<vmem>>, vector<1x32xf32>
    %362 = vector.extract_strided_slice %359 {offsets = [0, 0], sizes = [8, 32], strides = [1, 1]} : vector<16x32xf32> to vector<8x32xf32>
    %cst_151 = arith.constant 0.000000e+00 : f32
    %363 = vector.broadcast %cst_151 : f32 to vector<1x32xf32>
    %364 = tpu.concatenate %363, %362, %363 in 0 : vector<1x32xf32>, vector<8x32xf32>, vector<1x32xf32> -> vector<10x32xf32>
    %365 = vector.extract_strided_slice %364 {offsets = [0, 0], sizes = [8, 32], strides = [1, 1]} : vector<10x32xf32> to vector<8x32xf32>
    %366 = vector.extract_strided_slice %364 {offsets = [1, 0], sizes = [8, 32], strides = [1, 1]} : vector<10x32xf32> to vector<8x32xf32>
    %367 = vector.extract_strided_slice %364 {offsets = [2, 0], sizes = [8, 32], strides = [1, 1]} : vector<10x32xf32> to vector<8x32xf32>
    %368 = tpu.concatenate %365, %366, %367 in 1 : vector<8x32xf32>, vector<8x32xf32>, vector<8x32xf32> -> vector<8x96xf32>
    %369 = vector.extract_strided_slice %359 {offsets = [8, 0], sizes = [8, 32], strides = [1, 1]} : vector<16x32xf32> to vector<8x32xf32>
    %cst_152 = arith.constant 0.000000e+00 : f32
    %370 = vector.broadcast %cst_152 : f32 to vector<1x32xf32>
    %371 = tpu.concatenate %370, %369, %370 in 0 : vector<1x32xf32>, vector<8x32xf32>, vector<1x32xf32> -> vector<10x32xf32>
    %372 = vector.extract_strided_slice %371 {offsets = [0, 0], sizes = [8, 32], strides = [1, 1]} : vector<10x32xf32> to vector<8x32xf32>
    %373 = vector.extract_strided_slice %371 {offsets = [1, 0], sizes = [8, 32], strides = [1, 1]} : vector<10x32xf32> to vector<8x32xf32>
    %374 = vector.extract_strided_slice %371 {offsets = [2, 0], sizes = [8, 32], strides = [1, 1]} : vector<10x32xf32> to vector<8x32xf32>
    %375 = tpu.concatenate %372, %373, %374 in 1 : vector<8x32xf32>, vector<8x32xf32>, vector<8x32xf32> -> vector<8x96xf32>
    %376 = tpu.concatenate %368, %375 in 0 : vector<8x96xf32>, vector<8x96xf32> -> vector<16x96xf32>
    %cst_153 = arith.constant dense<0.000000e+00> : vector<16x32xf32>
    %377 = tpu.matmul %376, %360, %cst_153 {dimension_numbers = #tpu.dot_dimension_numbers<[1], [0], [0], [1], [0, 0, 1, 1], [], []>} : vector<16x96xf32>, vector<96x32xf32>, vector<16x32xf32> -> vector<16x32xf32>
    %378 = vector.broadcast %361 : vector<1x32xf32> to vector<16x32xf32>
    %379 = arith.addf %377, %378 : vector<16x32xf32>
    %c1504 = arith.constant 1504 : index
    %c0_154 = arith.constant 0 : index
    %380 = vector.load %arg2[%c1504, %c0_154] : memref<2352x128xf32, #tpu.memory_space<vmem>>, vector<96x32xf32>
    %c1600 = arith.constant 1600 : index
    %c0_155 = arith.constant 0 : index
    %381 = vector.load %arg2[%c1600, %c0_155] : memref<2352x128xf32, #tpu.memory_space<vmem>>, vector<1x32xf32>
    %cst_156 = arith.constant 0.000000e+00 : f32
    %382 = vector.broadcast %cst_156 : f32 to vector<16x32xf32>
    %383 = arith.maximumf %379, %382 : vector<16x32xf32>
    %384 = vector.extract_strided_slice %383 {offsets = [0, 0], sizes = [8, 32], strides = [1, 1]} : vector<16x32xf32> to vector<8x32xf32>
    %cst_157 = arith.constant 0.000000e+00 : f32
    %385 = vector.broadcast %cst_157 : f32 to vector<3x32xf32>
    %386 = tpu.concatenate %385, %384, %385 in 0 : vector<3x32xf32>, vector<8x32xf32>, vector<3x32xf32> -> vector<14x32xf32>
    %387 = vector.extract_strided_slice %386 {offsets = [0, 0], sizes = [8, 32], strides = [1, 1]} : vector<14x32xf32> to vector<8x32xf32>
    %388 = vector.extract_strided_slice %386 {offsets = [3, 0], sizes = [8, 32], strides = [1, 1]} : vector<14x32xf32> to vector<8x32xf32>
    %389 = vector.extract_strided_slice %386 {offsets = [6, 0], sizes = [8, 32], strides = [1, 1]} : vector<14x32xf32> to vector<8x32xf32>
    %390 = tpu.concatenate %387, %388, %389 in 1 : vector<8x32xf32>, vector<8x32xf32>, vector<8x32xf32> -> vector<8x96xf32>
    %391 = vector.extract_strided_slice %383 {offsets = [8, 0], sizes = [8, 32], strides = [1, 1]} : vector<16x32xf32> to vector<8x32xf32>
    %cst_158 = arith.constant 0.000000e+00 : f32
    %392 = vector.broadcast %cst_158 : f32 to vector<3x32xf32>
    %393 = tpu.concatenate %392, %391, %392 in 0 : vector<3x32xf32>, vector<8x32xf32>, vector<3x32xf32> -> vector<14x32xf32>
    %394 = vector.extract_strided_slice %393 {offsets = [0, 0], sizes = [8, 32], strides = [1, 1]} : vector<14x32xf32> to vector<8x32xf32>
    %395 = vector.extract_strided_slice %393 {offsets = [3, 0], sizes = [8, 32], strides = [1, 1]} : vector<14x32xf32> to vector<8x32xf32>
    %396 = vector.extract_strided_slice %393 {offsets = [6, 0], sizes = [8, 32], strides = [1, 1]} : vector<14x32xf32> to vector<8x32xf32>
    %397 = tpu.concatenate %394, %395, %396 in 1 : vector<8x32xf32>, vector<8x32xf32>, vector<8x32xf32> -> vector<8x96xf32>
    %398 = tpu.concatenate %390, %397 in 0 : vector<8x96xf32>, vector<8x96xf32> -> vector<16x96xf32>
    %cst_159 = arith.constant dense<0.000000e+00> : vector<16x32xf32>
    %399 = tpu.matmul %398, %380, %cst_159 {dimension_numbers = #tpu.dot_dimension_numbers<[1], [0], [0], [1], [0, 0, 1, 1], [], []>} : vector<16x96xf32>, vector<96x32xf32>, vector<16x32xf32> -> vector<16x32xf32>
    %400 = vector.broadcast %381 : vector<1x32xf32> to vector<16x32xf32>
    %401 = arith.addf %399, %400 : vector<16x32xf32>
    %c1608 = arith.constant 1608 : index
    %c0_160 = arith.constant 0 : index
    %402 = vector.load %arg2[%c1608, %c0_160] : memref<2352x128xf32, #tpu.memory_space<vmem>>, vector<32x32xf32>
    %c1640 = arith.constant 1640 : index
    %c0_161 = arith.constant 0 : index
    %403 = vector.load %arg2[%c1640, %c0_161] : memref<2352x128xf32, #tpu.memory_space<vmem>>, vector<1x32xf32>
    %cst_162 = arith.constant 0.000000e+00 : f32
    %404 = vector.broadcast %cst_162 : f32 to vector<16x32xf32>
    %405 = arith.maximumf %401, %404 : vector<16x32xf32>
    %cst_163 = arith.constant dense<0.000000e+00> : vector<16x32xf32>
    %406 = tpu.matmul %405, %402, %cst_163 {dimension_numbers = #tpu.dot_dimension_numbers<[1], [0], [0], [1], [0, 0, 1, 1], [], []>} : vector<16x32xf32>, vector<32x32xf32>, vector<16x32xf32> -> vector<16x32xf32>
    %407 = vector.broadcast %403 : vector<1x32xf32> to vector<16x32xf32>
    %408 = arith.addf %406, %407 : vector<16x32xf32>
    %409 = arith.addf %408, %379 : vector<16x32xf32>
    %c1648 = arith.constant 1648 : index
    %c0_164 = arith.constant 0 : index
    %410 = vector.load %arg2[%c1648, %c0_164] : memref<2352x128xf32, #tpu.memory_space<vmem>>, vector<96x32xf32>
    %c1744 = arith.constant 1744 : index
    %c0_165 = arith.constant 0 : index
    %411 = vector.load %arg2[%c1744, %c0_165] : memref<2352x128xf32, #tpu.memory_space<vmem>>, vector<1x32xf32>
    %cst_166 = arith.constant 0.000000e+00 : f32
    %412 = vector.broadcast %cst_166 : f32 to vector<16x32xf32>
    %413 = arith.maximumf %409, %412 : vector<16x32xf32>
    %414 = vector.extract_strided_slice %413 {offsets = [0, 0], sizes = [8, 32], strides = [1, 1]} : vector<16x32xf32> to vector<8x32xf32>
    %cst_167 = arith.constant 0.000000e+00 : f32
    %415 = vector.broadcast %cst_167 : f32 to vector<1x32xf32>
    %416 = tpu.concatenate %415, %414, %415 in 0 : vector<1x32xf32>, vector<8x32xf32>, vector<1x32xf32> -> vector<10x32xf32>
    %417 = vector.extract_strided_slice %416 {offsets = [0, 0], sizes = [8, 32], strides = [1, 1]} : vector<10x32xf32> to vector<8x32xf32>
    %418 = vector.extract_strided_slice %416 {offsets = [1, 0], sizes = [8, 32], strides = [1, 1]} : vector<10x32xf32> to vector<8x32xf32>
    %419 = vector.extract_strided_slice %416 {offsets = [2, 0], sizes = [8, 32], strides = [1, 1]} : vector<10x32xf32> to vector<8x32xf32>
    %420 = tpu.concatenate %417, %418, %419 in 1 : vector<8x32xf32>, vector<8x32xf32>, vector<8x32xf32> -> vector<8x96xf32>
    %421 = vector.extract_strided_slice %413 {offsets = [8, 0], sizes = [8, 32], strides = [1, 1]} : vector<16x32xf32> to vector<8x32xf32>
    %cst_168 = arith.constant 0.000000e+00 : f32
    %422 = vector.broadcast %cst_168 : f32 to vector<1x32xf32>
    %423 = tpu.concatenate %422, %421, %422 in 0 : vector<1x32xf32>, vector<8x32xf32>, vector<1x32xf32> -> vector<10x32xf32>
    %424 = vector.extract_strided_slice %423 {offsets = [0, 0], sizes = [8, 32], strides = [1, 1]} : vector<10x32xf32> to vector<8x32xf32>
    %425 = vector.extract_strided_slice %423 {offsets = [1, 0], sizes = [8, 32], strides = [1, 1]} : vector<10x32xf32> to vector<8x32xf32>
    %426 = vector.extract_strided_slice %423 {offsets = [2, 0], sizes = [8, 32], strides = [1, 1]} : vector<10x32xf32> to vector<8x32xf32>
    %427 = tpu.concatenate %424, %425, %426 in 1 : vector<8x32xf32>, vector<8x32xf32>, vector<8x32xf32> -> vector<8x96xf32>
    %428 = tpu.concatenate %420, %427 in 0 : vector<8x96xf32>, vector<8x96xf32> -> vector<16x96xf32>
    %cst_169 = arith.constant dense<0.000000e+00> : vector<16x32xf32>
    %429 = tpu.matmul %428, %410, %cst_169 {dimension_numbers = #tpu.dot_dimension_numbers<[1], [0], [0], [1], [0, 0, 1, 1], [], []>} : vector<16x96xf32>, vector<96x32xf32>, vector<16x32xf32> -> vector<16x32xf32>
    %430 = vector.broadcast %411 : vector<1x32xf32> to vector<16x32xf32>
    %431 = arith.addf %429, %430 : vector<16x32xf32>
    %c1752 = arith.constant 1752 : index
    %c0_170 = arith.constant 0 : index
    %432 = vector.load %arg2[%c1752, %c0_170] : memref<2352x128xf32, #tpu.memory_space<vmem>>, vector<32x32xf32>
    %c1784 = arith.constant 1784 : index
    %c0_171 = arith.constant 0 : index
    %433 = vector.load %arg2[%c1784, %c0_171] : memref<2352x128xf32, #tpu.memory_space<vmem>>, vector<1x32xf32>
    %cst_172 = arith.constant 0.000000e+00 : f32
    %434 = vector.broadcast %cst_172 : f32 to vector<16x32xf32>
    %435 = arith.maximumf %431, %434 : vector<16x32xf32>
    %cst_173 = arith.constant dense<0.000000e+00> : vector<16x32xf32>
    %436 = tpu.matmul %435, %432, %cst_173 {dimension_numbers = #tpu.dot_dimension_numbers<[1], [0], [0], [1], [0, 0, 1, 1], [], []>} : vector<16x32xf32>, vector<32x32xf32>, vector<16x32xf32> -> vector<16x32xf32>
    %437 = vector.broadcast %433 : vector<1x32xf32> to vector<16x32xf32>
    %438 = arith.addf %436, %437 : vector<16x32xf32>
    %439 = arith.addf %438, %409 : vector<16x32xf32>
    %c2320 = arith.constant 2320 : index
    %c0_174 = arith.constant 0 : index
    %440 = vector.load %arg2[%c2320, %c0_174] : memref<2352x128xf32, #tpu.memory_space<vmem>>, vector<32x16xf32>
    %cst_175 = arith.constant dense<0.000000e+00> : vector<32x32xf32>
    %441 = tpu.matmul %440, %439, %cst_175 {dimension_numbers = #tpu.dot_dimension_numbers<[1], [0], [0], [1], [0, 0, 1, 1], [], []>} : vector<32x16xf32>, vector<16x32xf32>, vector<32x32xf32> -> vector<32x32xf32>
    %c1792 = arith.constant 1792 : index
    %c0_176 = arith.constant 0 : index
    %442 = vector.load %arg2[%c1792, %c0_176] : memref<2352x128xf32, #tpu.memory_space<vmem>>, vector<96x32xf32>
    %c1888 = arith.constant 1888 : index
    %c0_177 = arith.constant 0 : index
    %443 = vector.load %arg2[%c1888, %c0_177] : memref<2352x128xf32, #tpu.memory_space<vmem>>, vector<1x32xf32>
    %444 = vector.extract_strided_slice %441 {offsets = [0, 0], sizes = [16, 32], strides = [1, 1]} : vector<32x32xf32> to vector<16x32xf32>
    %cst_178 = arith.constant 0.000000e+00 : f32
    %445 = vector.broadcast %cst_178 : f32 to vector<1x32xf32>
    %446 = tpu.concatenate %445, %444, %445 in 0 : vector<1x32xf32>, vector<16x32xf32>, vector<1x32xf32> -> vector<18x32xf32>
    %447 = vector.extract_strided_slice %446 {offsets = [0, 0], sizes = [16, 32], strides = [1, 1]} : vector<18x32xf32> to vector<16x32xf32>
    %448 = vector.extract_strided_slice %446 {offsets = [1, 0], sizes = [16, 32], strides = [1, 1]} : vector<18x32xf32> to vector<16x32xf32>
    %449 = vector.extract_strided_slice %446 {offsets = [2, 0], sizes = [16, 32], strides = [1, 1]} : vector<18x32xf32> to vector<16x32xf32>
    %450 = tpu.concatenate %447, %448, %449 in 1 : vector<16x32xf32>, vector<16x32xf32>, vector<16x32xf32> -> vector<16x96xf32>
    %451 = vector.extract_strided_slice %441 {offsets = [16, 0], sizes = [16, 32], strides = [1, 1]} : vector<32x32xf32> to vector<16x32xf32>
    %cst_179 = arith.constant 0.000000e+00 : f32
    %452 = vector.broadcast %cst_179 : f32 to vector<1x32xf32>
    %453 = tpu.concatenate %452, %451, %452 in 0 : vector<1x32xf32>, vector<16x32xf32>, vector<1x32xf32> -> vector<18x32xf32>
    %454 = vector.extract_strided_slice %453 {offsets = [0, 0], sizes = [16, 32], strides = [1, 1]} : vector<18x32xf32> to vector<16x32xf32>
    %455 = vector.extract_strided_slice %453 {offsets = [1, 0], sizes = [16, 32], strides = [1, 1]} : vector<18x32xf32> to vector<16x32xf32>
    %456 = vector.extract_strided_slice %453 {offsets = [2, 0], sizes = [16, 32], strides = [1, 1]} : vector<18x32xf32> to vector<16x32xf32>
    %457 = tpu.concatenate %454, %455, %456 in 1 : vector<16x32xf32>, vector<16x32xf32>, vector<16x32xf32> -> vector<16x96xf32>
    %458 = tpu.concatenate %450, %457 in 0 : vector<16x96xf32>, vector<16x96xf32> -> vector<32x96xf32>
    %cst_180 = arith.constant dense<0.000000e+00> : vector<32x32xf32>
    %459 = tpu.matmul %458, %442, %cst_180 {dimension_numbers = #tpu.dot_dimension_numbers<[1], [0], [0], [1], [0, 0, 1, 1], [], []>} : vector<32x96xf32>, vector<96x32xf32>, vector<32x32xf32> -> vector<32x32xf32>
    %460 = vector.broadcast %443 : vector<1x32xf32> to vector<32x32xf32>
    %461 = arith.addf %459, %460 : vector<32x32xf32>
    %c1896 = arith.constant 1896 : index
    %c0_181 = arith.constant 0 : index
    %462 = vector.load %arg2[%c1896, %c0_181] : memref<2352x128xf32, #tpu.memory_space<vmem>>, vector<96x32xf32>
    %c1992 = arith.constant 1992 : index
    %c0_182 = arith.constant 0 : index
    %463 = vector.load %arg2[%c1992, %c0_182] : memref<2352x128xf32, #tpu.memory_space<vmem>>, vector<1x32xf32>
    %464 = vector.extract_strided_slice %461 {offsets = [0, 0], sizes = [16, 32], strides = [1, 1]} : vector<32x32xf32> to vector<16x32xf32>
    %cst_183 = arith.constant 0.000000e+00 : f32
    %465 = vector.broadcast %cst_183 : f32 to vector<1x32xf32>
    %466 = tpu.concatenate %465, %464, %465 in 0 : vector<1x32xf32>, vector<16x32xf32>, vector<1x32xf32> -> vector<18x32xf32>
    %467 = vector.extract_strided_slice %466 {offsets = [0, 0], sizes = [16, 32], strides = [1, 1]} : vector<18x32xf32> to vector<16x32xf32>
    %468 = vector.extract_strided_slice %466 {offsets = [1, 0], sizes = [16, 32], strides = [1, 1]} : vector<18x32xf32> to vector<16x32xf32>
    %469 = vector.extract_strided_slice %466 {offsets = [2, 0], sizes = [16, 32], strides = [1, 1]} : vector<18x32xf32> to vector<16x32xf32>
    %470 = tpu.concatenate %467, %468, %469 in 1 : vector<16x32xf32>, vector<16x32xf32>, vector<16x32xf32> -> vector<16x96xf32>
    %471 = vector.extract_strided_slice %461 {offsets = [16, 0], sizes = [16, 32], strides = [1, 1]} : vector<32x32xf32> to vector<16x32xf32>
    %cst_184 = arith.constant 0.000000e+00 : f32
    %472 = vector.broadcast %cst_184 : f32 to vector<1x32xf32>
    %473 = tpu.concatenate %472, %471, %472 in 0 : vector<1x32xf32>, vector<16x32xf32>, vector<1x32xf32> -> vector<18x32xf32>
    %474 = vector.extract_strided_slice %473 {offsets = [0, 0], sizes = [16, 32], strides = [1, 1]} : vector<18x32xf32> to vector<16x32xf32>
    %475 = vector.extract_strided_slice %473 {offsets = [1, 0], sizes = [16, 32], strides = [1, 1]} : vector<18x32xf32> to vector<16x32xf32>
    %476 = vector.extract_strided_slice %473 {offsets = [2, 0], sizes = [16, 32], strides = [1, 1]} : vector<18x32xf32> to vector<16x32xf32>
    %477 = tpu.concatenate %474, %475, %476 in 1 : vector<16x32xf32>, vector<16x32xf32>, vector<16x32xf32> -> vector<16x96xf32>
    %478 = tpu.concatenate %470, %477 in 0 : vector<16x96xf32>, vector<16x96xf32> -> vector<32x96xf32>
    %cst_185 = arith.constant dense<0.000000e+00> : vector<32x32xf32>
    %479 = tpu.matmul %478, %462, %cst_185 {dimension_numbers = #tpu.dot_dimension_numbers<[1], [0], [0], [1], [0, 0, 1, 1], [], []>} : vector<32x96xf32>, vector<96x32xf32>, vector<32x32xf32> -> vector<32x32xf32>
    %480 = vector.broadcast %463 : vector<1x32xf32> to vector<32x32xf32>
    %481 = arith.addf %479, %480 : vector<32x32xf32>
    %cst_186 = arith.constant 0.000000e+00 : f32
    %482 = vector.broadcast %cst_186 : f32 to vector<32x32xf32>
    %483 = arith.maximumf %481, %482 : vector<32x32xf32>
    %c2000 = arith.constant 2000 : index
    %c0_187 = arith.constant 0 : index
    %484 = vector.load %arg2[%c2000, %c0_187] : memref<2352x128xf32, #tpu.memory_space<vmem>>, vector<96x12xf32>
    %c2096 = arith.constant 2096 : index
    %c0_188 = arith.constant 0 : index
    %485 = vector.load %arg2[%c2096, %c0_188] : memref<2352x128xf32, #tpu.memory_space<vmem>>, vector<1x12xf32>
    %486 = vector.extract_strided_slice %483 {offsets = [0, 0], sizes = [16, 32], strides = [1, 1]} : vector<32x32xf32> to vector<16x32xf32>
    %cst_189 = arith.constant 0.000000e+00 : f32
    %487 = vector.broadcast %cst_189 : f32 to vector<1x32xf32>
    %488 = tpu.concatenate %487, %486, %487 in 0 : vector<1x32xf32>, vector<16x32xf32>, vector<1x32xf32> -> vector<18x32xf32>
    %489 = vector.extract_strided_slice %488 {offsets = [0, 0], sizes = [16, 32], strides = [1, 1]} : vector<18x32xf32> to vector<16x32xf32>
    %490 = vector.extract_strided_slice %488 {offsets = [1, 0], sizes = [16, 32], strides = [1, 1]} : vector<18x32xf32> to vector<16x32xf32>
    %491 = vector.extract_strided_slice %488 {offsets = [2, 0], sizes = [16, 32], strides = [1, 1]} : vector<18x32xf32> to vector<16x32xf32>
    %492 = tpu.concatenate %489, %490, %491 in 1 : vector<16x32xf32>, vector<16x32xf32>, vector<16x32xf32> -> vector<16x96xf32>
    %493 = vector.extract_strided_slice %483 {offsets = [16, 0], sizes = [16, 32], strides = [1, 1]} : vector<32x32xf32> to vector<16x32xf32>
    %cst_190 = arith.constant 0.000000e+00 : f32
    %494 = vector.broadcast %cst_190 : f32 to vector<1x32xf32>
    %495 = tpu.concatenate %494, %493, %494 in 0 : vector<1x32xf32>, vector<16x32xf32>, vector<1x32xf32> -> vector<18x32xf32>
    %496 = vector.extract_strided_slice %495 {offsets = [0, 0], sizes = [16, 32], strides = [1, 1]} : vector<18x32xf32> to vector<16x32xf32>
    %497 = vector.extract_strided_slice %495 {offsets = [1, 0], sizes = [16, 32], strides = [1, 1]} : vector<18x32xf32> to vector<16x32xf32>
    %498 = vector.extract_strided_slice %495 {offsets = [2, 0], sizes = [16, 32], strides = [1, 1]} : vector<18x32xf32> to vector<16x32xf32>
    %499 = tpu.concatenate %496, %497, %498 in 1 : vector<16x32xf32>, vector<16x32xf32>, vector<16x32xf32> -> vector<16x96xf32>
    %500 = tpu.concatenate %492, %499 in 0 : vector<16x96xf32>, vector<16x96xf32> -> vector<32x96xf32>
    %cst_191 = arith.constant dense<0.000000e+00> : vector<32x12xf32>
    %501 = tpu.matmul %500, %484, %cst_191 {dimension_numbers = #tpu.dot_dimension_numbers<[1], [0], [0], [1], [0, 0, 1, 1], [], []>} : vector<32x96xf32>, vector<96x12xf32>, vector<32x12xf32> -> vector<32x12xf32>
    %502 = vector.broadcast %485 : vector<1x12xf32> to vector<32x12xf32>
    %503 = arith.addf %501, %502 : vector<32x12xf32>
    %c0_192 = arith.constant 0 : index
    %c0_193 = arith.constant 0 : index
    %504 = vector.load %arg3[%c0_192, %c0_193] : memref<32x12xf32, #tpu.memory_space<vmem>>, vector<32x12xf32>
    tpu.vector_store %arg3[%c0_192, %c0_193], %503 {strides = array<i32>} : memref<32x12xf32, #tpu.memory_space<vmem>>, vector<32x12xf32>,
    %505 = tpu.concatenate %242, %274 in 1 : vector<1x64xf32>, vector<1x64xf32> -> vector<1x128xf32>
    %506 = tpu.concatenate %240, %272 in 1 : vector<1x1xf32>, vector<1x1xf32> -> vector<1x2xf32>
    %cst_194 = arith.constant 0.000000e+00 : f32
    %507 = vector.broadcast %cst_194 : f32 to vector<1x126xf32>
    %508 = tpu.concatenate %506, %507 in 1 : vector<1x2xf32>, vector<1x126xf32> -> vector<1x128xf32>
    %509 = tpu.concatenate %228, %260 in 1 : vector<8x1xi32>, vector<8x1xi32> -> vector<8x2xi32>
    %510 = arith.sitofp %509 : vector<8x2xi32> to vector<8x2xf32>
    %cst_195 = arith.constant 0.000000e+00 : f32
    %511 = vector.broadcast %cst_195 : f32 to vector<8x126xf32>
    %512 = tpu.concatenate %510, %511 in 1 : vector<8x2xf32>, vector<8x126xf32> -> vector<8x128xf32>
    %cst_196 = arith.constant 0.000000e+00 : f32
    %513 = vector.broadcast %cst_196 : f32 to vector<6x128xf32>
    %514 = tpu.concatenate %505, %508, %512, %513 in 0 : vector<1x128xf32>, vector<1x128xf32>, vector<8x128xf32>, vector<6x128xf32> -> vector<16x128xf32>
    %c0_197 = arith.constant 0 : index
    %c0_198 = arith.constant 0 : index
    %c0_199 = arith.constant 0 : index
    %515 = vector.load %arg4[%c0_197, %c0_198, %c0_199] : memref<1x16x128xf32, #tpu.memory_space<vmem>>, vector<1x16x128xf32>
    %516 = vector.shape_cast %515 : vector<1x16x128xf32> to vector<16x128xf32>
    %517 = vector.shape_cast %514 : vector<16x128xf32> to vector<1x16x128xf32>
    tpu.vector_store %arg4[%c0_197, %c0_198, %c0_199], %517 {strides = array<i32>} : memref<1x16x128xf32, #tpu.memory_space<vmem>>, vector<1x16x128xf32>,
    return
  }
  func.func @transform_0(%arg0: i32) -> (i32, i32) {
    %c0_i32 = arith.constant 0 : i32
    %c0_i32_0 = arith.constant 0 : i32
    return %arg0, %c0_i32 : i32, i32
  }
  func.func @transform_1(%arg0: i32) -> (i32, i32) {
    %c0_i32 = arith.constant 0 : i32
    %c0_i32_0 = arith.constant 0 : i32
    %c0_i32_1 = arith.constant 0 : i32
    return %c0_i32, %c0_i32_0 : i32, i32
  }
  func.func @transform_2(%arg0: i32) -> (i32, i32) {
    %c0_i32 = arith.constant 0 : i32
    %c0_i32_0 = arith.constant 0 : i32
    return %arg0, %c0_i32 : i32, i32
  }
  func.func @transform_3(%arg0: i32) -> (i32, i32, i32) {
    %c0_i32 = arith.constant 0 : i32
    %c0_i32_0 = arith.constant 0 : i32
    %c0_i32_1 = arith.constant 0 : i32
    return %arg0, %c0_i32, %c0_i32_0 : i32, i32, i32
  }
}

</mosaic_0001>

<llo_original>
// kernel: human_rvqvae_forward.1
$region0: #{human_rvqvae_forward.1}
  #allocation0 [shape = 'u32[]', space=smem, size = 0x4, offset = 0x4, fixed_abs, tag = 'smem constant byte address 0x4 - core index']
  #allocation1 [shape = 'u32[144,128]{1,0:T(1,128)}', space=vmem, size = 0x12000, scoped, tag = 'internal scratch']
  #allocation2 [shape = 'f32[24,32]{1,0:T(8,128)}', space=vmem, size = 0x3000, scoped, tag = 'scratch operand']
  %s0 = inlined_call_operand.vmem [shape: f32[32,16], index: 0, kind: input, shape index: {}]
  %s1 = inlined_call_operand.vmem [shape: f32[2352,128], index: 1, kind: input, shape index: {}]
  %s2 = inlined_call_operand.vmem [shape: f32[32,12], index: 2, kind: output, shape index: {0}]
  %s3 = inlined_call_operand.vmem [shape: f32[1,16,128], index: 3, kind: output, shape index: {1}]
  %4 = xla_tuple %s2, %s3
  %s5 = sld [smem:[#allocation0]]
  $region26: #{human_rvqvae_forward.1} parent=0
    _
  %s7 = ssub.s32 1, %s5
  %s8 = scalar_select 0, %s7, %s5
  // Predicated region
  $region2: #{human_rvqvae_forward.1} parent=0 // pred_check
    _
  $region3: #{human_rvqvae_forward.1} parent=0 // pred_check_branch
    %10 = sbr.rel (0) target = $region5
  $region4: #{human_rvqvae_forward.1} parent=0 // pred_region
    _
  $region5: #{human_rvqvae_forward.1} parent=0 // pred_fallthru
    _
  // Predicated region
  $region6: #{human_rvqvae_forward.1} parent=0 // pred_check
    _
  $region7: #{human_rvqvae_forward.1} parent=0 // pred_check_branch
    %12 = sbr.rel (0) target = $region9
  $region8: #{human_rvqvae_forward.1} parent=0 // pred_region
    _
  $region9: #{human_rvqvae_forward.1} parent=0 // pred_fallthru
    _
  %v13 = vld [vmem:[%s0] sm:$0xff]
  %v14 = vld [vmem:[%s0 + $0x8] sm:$0xff]
  %v15 = vld [vmem:[%s0 + $0x10] sm:$0xff]
  %v16 = vld [vmem:[%s0 + $0x18] sm:$0xff]
  %v17 = vld [vmem:[%s1] sm:$0xff]
  %v18 = vld [vmem:[%s1 + $0x8] sm:$0xff]
  %v19 = vld [vmem:[%s1 + $0x10] sm:$0xff]
  %v20 = vld [vmem:[%s1 + $0x18] sm:$0xff]
  %v21 = vld [vmem:[%s1 + $0x20] sm:$0xff]
  %v22 = vld [vmem:[%s1 + $0x28] sm:$0xff]
  %v23 = vld [vmem:[%s1 + $0x30] sm:$0x1]
  %vm26 = vcmask 1040384
  %v27 = vrot.slane %v13, 7
  %v28 = vrot.slane %v14, 7
  %v29 = vsel %vm26, %v27, %v28
  %v33 = vsel %vm26, 0.0, %v27
  %v34 = vsel %vm26, %v28, 0.0
  %vm37 = vcmask 1046528
  %v38 = vrot.slane %v33, 1
  %v39 = vrot.slane %v29, 1
  %v40 = vsel %vm37, %v38, %v39
  %v41 = vrot.slane %v34, 1
  %v42 = vsel %vm37, %v39, %v41
  %43 = vrot.lane.b32.xlu0 %v40, 16
  %v44 = vpop.permute.xlu0 %43
  %45 = vrot.lane.b32.xlu0 %v42, 16
  %v46 = vpop.permute.xlu0 %45
  %vm49 = vcmask 1045504
  %v50 = vrot.slane %v33, 2
  %v51 = vrot.slane %v29, 2
  %v52 = vsel %vm49, %v50, %v51
  %v53 = vrot.slane %v34, 2
  %v54 = vsel %vm49, %v51, %v53
  %55 = vrot.lane.b32.xlu0 %v52, 32
  %v56 = vpop.permute.xlu0 %55
  %57 = vrot.lane.b32.xlu0 %v54, 32
  %v58 = vpop.permute.xlu0 %57
  %vm61 = vcmask 130048
  %v62 = vsel %vm61, %v33, %v44
  %v63 = vsel %vm61, %v29, %v46
  %vm64 = vcmask 261120
  %v65 = vsel %vm64, %v62, %v56
  %v66 = vsel %vm64, %v63, %v58
  %v69 = vrot.slane %v15, 7
  %v70 = vrot.slane %v16, 7
  %v71 = vsel %vm26, %v69, %v70
  %v75 = vsel %vm26, 0.0, %v69
  %v76 = vsel %vm26, %v70, 0.0
  %v79 = vrot.slane %v75, 1
  %v80 = vrot.slane %v71, 1
  %v81 = vsel %vm37, %v79, %v80
  %v82 = vrot.slane %v76, 1
  %v83 = vsel %vm37, %v80, %v82
  %84 = vrot.lane.b32.xlu0 %v81, 16
  %v85 = vpop.permute.xlu0 %84
  %86 = vrot.lane.b32.xlu0 %v83, 16
  %v87 = vpop.permute.xlu0 %86
  %v90 = vrot.slane %v75, 2
  %v91 = vrot.slane %v71, 2
  %v92 = vsel %vm49, %v90, %v91
  %v93 = vrot.slane %v76, 2
  %v94 = vsel %vm49, %v91, %v93
  %95 = vrot.lane.b32.xlu0 %v92, 32
  %v96 = vpop.permute.xlu0 %95
  %97 = vrot.lane.b32.xlu0 %v94, 32
  %v98 = vpop.permute.xlu0 %97
  %v101 = vsel %vm61, %v75, %v85
  %v102 = vsel %vm61, %v71, %v87
  %v103 = vsel %vm64, %v101, %v96
  %v104 = vsel %vm64, %v102, %v98
  %v105 = vlaneseq
  %v106 = vshrl.u32 %v105, 7
  %v107 = vsub.s32 0, %v106
  %v108 = vrot.slane %v23, %v107
  %vm109 = vcmask 392192
  %v111 = vsel %vm109, %v65, 0
  %v114 = vsel %vm109, %v66, 0
  %v117 = vsel %vm109, %v103, 0
  %v120 = vsel %vm109, %v104, 0
  %122 = vmatprep.subr.mxu0 0.0
  %123 = vmatpush1.msra.mxu0 %v17
  %124 = vmatprep.subr.mxu0 0.0
  %125 = vmatpush1.msra.mxu0 %v18
  %126 = vmatprep.subr.mxu0 0.0
  %127 = vmatpush1.msra.mxu0 %v19
  %128 = vmatprep.subr.mxu0 0.0
  %129 = vmatpush1.msra.mxu0 %v20
  %130 = vmatprep.subr.mxu0 0.0
  %131 = vmatpush1.msra.mxu0 %v21
  %132 = vmatprep.subr.mxu0 0.0
  %133 = vmatpush1.msra.mxu0 %v22
  %134 = vmatprep.subr.mxu0 0.0
  %135 = vmatpush1.msra.mxu0 0.0
  %136 = vmatprep.subr.mxu0 0.0
  %137 = vmatpush1.msra.mxu0 0.0
  %138 = vmatprep.subr.mxu0 0.0
  %139 = vmatpush1.msra.mxu0 0.0
  %140 = vmatprep.subr.mxu0 0.0
  %141 = vmatpush1.msra.mxu0 0.0
  %142 = vmatprep.subr.mxu0 0.0
  %143 = vmatpush1.msra.mxu0 0.0
  %144 = vmatprep.subr.mxu0 0.0
  %145 = vmatpush1.msra.mxu0 0.0
  %146 = vmatprep.subr.mxu0 0.0
  %147 = vmatpush1.msra.mxu0 0.0
  %148 = vmatprep.subr.mxu0 0.0
  %149 = vmatpush1.msra.mxu0 0.0
  %150 = vmatprep.subr.mxu0 0.0
  %151 = vmatpush1.msra.mxu0 0.0
  %152 = vmatprep.subr.mxu0 0.0
  %153 = vmatpush1.msra.mxu0 0.0
  %154 = vmatprep.subr.mxu0 0.0
  %155 = vmatpush1.msra.mxu0 0.0
  %156 = vmatprep.subr.mxu0 0.0
  %157 = vmatpush1.msra.mxu0 0.0
  %158 = vmatprep.subr.mxu0 0.0
  %159 = vmatpush1.msra.mxu0 0.0
  %160 = vmatprep.subr.mxu0 0.0
  %161 = vmatpush1.msra.mxu0 0.0
  %162 = vmatprep.subr.mxu0 0.0
  %163 = vmatpush1.msra.mxu0 0.0
  %164 = vmatprep.subr.mxu0 0.0
  %165 = vmatpush1.msra.mxu0 0.0
  %166 = vmatprep.subr.mxu0 0.0
  %167 = vmatpush1.msra.mxu0 0.0
  %168 = vmatprep.subr.mxu0 0.0
  %169 = vmatpush1.msra.mxu0 0.0
  %170 = vmatprep.subr.mxu0 0.0
  %171 = vmatpush1.msra.mxu0 0.0
  %172 = vmatprep.subr.mxu0 0.0
  %173 = vmatpush1.msra.mxu0 0.0
  %174 = vmatprep.subr.mxu0 0.0
  %175 = vmatpush1.msra.mxu0 0.0
  %176 = vmatprep.subr.mxu0 0.0
  %177 = vmatpush1.msra.mxu0 0.0
  %178 = vmatprep.subr.mxu0 0.0
  %179 = vmatpush1.msra.mxu0 0.0
  %180 = vmatprep.subr.mxu0 0.0
  %181 = vmatpush1.msra.mxu0 0.0
  %182 = vmatprep.subr.mxu0 0.0
  %183 = vmatpush1.msra.mxu0 0.0
  %184 = vmatprep.subr.mxu0 0.0
  %185 = vmatpush1.msra.mxu0 0.0
  %186 = vmatprep.mubr.f32.mxu0 0.0
  %187 = vmatmul.mubr.f32.gmra.mrb[0].mxu0 %v111
  %v188 = vpop.f32.mrb[0].mxu0
  %v189 = vadd.f32 %v108, %v188
  %v190 = vpop.f32.mrb[0].mxu0
  %191 = vmatprep.mubr.f32.mxu0 0.0
  %192 = vmatmul.mubr.f32.gmra.mrb[0].mxu0 %v114
  %v193 = vpop.f32.mrb[0].mxu0
  %v194 = vadd.f32 %v108, %v193
  %v195 = vpop.f32.mrb[0].mxu0
  %196 = vmatprep.mubr.f32.mxu0 0.0
  %197 = vmatmul.mubr.f32.gmra.mrb[0].mxu0 %v117
  %v198 = vpop.f32.mrb[0].mxu0
  %v199 = vadd.f32 %v108, %v198
  %v200 = vpop.f32.mrb[0].mxu0
  %201 = vmatprep.mubr.f32.mxu0 0.0
  %202 = vmatmul.mubr.f32.gmra.mrb[0].mxu0 %v120
  %v203 = vpop.f32.mrb[0].mxu0
  %v204 = vadd.f32 %v108, %v203
  %v205 = vpop.f32.mrb[0].mxu0
  %206 = vdwg.mxu0
  %v207 = vmax.f32 %v189, 0.0
  %v208 = vmax.f32 %v194, 0.0
  %v209 = vmax.f32 %v199, 0.0
  %v210 = vmax.f32 %v204, 0.0
  %v211 = vld [vmem:[%s1 + $0x38] sm:$0xff]
  %v212 = vld [vmem:[%s1 + $0x40] sm:$0xff]
  %v213 = vld [vmem:[%s1 + $0x48] sm:$0xff]
  %v214 = vld [vmem:[%s1 + $0x50] sm:$0xff]
  %v215 = vld [vmem:[%s1 + $0x58] sm:$0xff]
  %v216 = vld [vmem:[%s1 + $0x60] sm:$0xff]
  %v217 = vld [vmem:[%s1 + $0x68] sm:$0xff]
  %v218 = vld [vmem:[%s1 + $0x70] sm:$0xff]
  %v219 = vld [vmem:[%s1 + $0x78] sm:$0xff]
  %v220 = vld [vmem:[%s1 + $0x80] sm:$0xff]
  %v221 = vld [vmem:[%s1 + $0x88] sm:$0xff]
  %v222 = vld [vmem:[%s1 + $0x90] sm:$0xff]
  %v223 = vld [vmem:[%s1 + $0x98] sm:$0xff]
  %v224 = vld [vmem:[%s1 + $0xa0] sm:$0xff]
  %v225 = vld [vmem:[%s1 + $0xa8] sm:$0xff]
  %v226 = vld [vmem:[%s1 + $0xb0] sm:$0xff]
  %v227 = vld [vmem:[%s1 + $0xb8] sm:$0x1]
  %v230 = vrot.slane %v207, 7
  %v231 = vrot.slane %v208, 7
  %v232 = vsel %vm26, %v230, %v231
  %v236 = vsel %vm26, 0.0, %v230
  %v237 = vsel %vm26, %v231, 0.0
  %238 = vst.msk [vmem:[#allocation2] sm:$0xff] %vm64, %v236
  %239 = vst.msk [vmem:[#allocation2 + $0x8] sm:$0xff] %vm64, %v232
  %vm240 = vcmask 254976
  %241 = vst.msk [vmem:[#allocation2 + $0x10] sm:$0x3] %vm240, %v237
  %v242 = vld [vmem:[#allocation2] ss:$2 sm:$0xff]
  %s243 = scalar_lea.vmem [#allocation2], 1
  %v244 = vld [vmem:[%s243] ss:$2 sm:$0xff]
  %s245 = scalar_lea.vmem [#allocation2], 2
  %v246 = vld [vmem:[%s245] ss:$2 sm:$0xff]
  %s247 = scalar_lea.vmem [#allocation2], 3
  %v248 = vld [vmem:[%s247] ss:$2 sm:$0xff]
  %250 = vrot.lane.b32.xlu0 %v244, 32
  %v251 = vpop.permute.xlu0 %250
  %254 = vrot.lane.b32.xlu0 %v246, 64
  %v255 = vpop.permute.xlu0 %254
  %258 = vrot.lane.b32.xlu0 %v248, 96
  %v259 = vpop.permute.xlu0 %258
  %v261 = vsel %vm64, %v242, %v251
  %vm262 = vcmask 523264
  %v263 = vsel %vm262, %v261, %v255
  %vm264 = vcmask 785408
  %v265 = vsel %vm264, %v263, %v259
  %v268 = vrot.slane %v209, 7
  %v269 = vrot.slane %v210, 7
  %v270 = vsel %vm26, %v268, %v269
  %v274 = vsel %vm26, 0.0, %v268
  %v275 = vsel %vm26, %v269, 0.0
  %276 = vst.msk [vmem:[#allocation2] sm:$0xff] %vm64, %v274
  %277 = vst.msk [vmem:[#allocation2 + $0x8] sm:$0xff] %vm64, %v270
  %278 = vst.msk [vmem:[#allocation2 + $0x10] sm:$0x3] %vm240, %v275
  %v279 = vld [vmem:[#allocation2] ss:$2 sm:$0xff]
  %v280 = vld [vmem:[%s243] ss:$2 sm:$0xff]
  %v281 = vld [vmem:[%s245] ss:$2 sm:$0xff]
  %v282 = vld [vmem:[%s247] ss:$2 sm:$0xff]
  %284 = vrot.lane.b32.xlu0 %v280, 32
  %v285 = vpop.permute.xlu0 %284
  %288 = vrot.lane.b32.xlu0 %v281, 64
  %v289 = vpop.permute.xlu0 %288
  %292 = vrot.lane.b32.xlu0 %v282, 96
  %v293 = vpop.permute.xlu0 %292
  %v295 = vsel %vm64, %v279, %v285
  %v296 = vsel %vm262, %v295, %v289
  %v297 = vsel %vm264, %v296, %v293
  %v298 = vlaneseq
  %v299 = vshrl.u32 %v298, 7
  %v300 = vsub.s32 0, %v299
  %v301 = vrot.slane %v227, %v300
  %302 = vmatprep.subr.mxu0 0.0
  %303 = vmatpush1.msra.mxu0 %v211
  %304 = vmatprep.subr.mxu0 0.0
  %305 = vmatpush1.msra.mxu0 %v212
  %306 = vmatprep.subr.mxu0 0.0
  %307 = vmatpush1.msra.mxu0 %v213
  %308 = vmatprep.subr.mxu0 0.0
  %309 = vmatpush1.msra.mxu0 %v214
  %310 = vmatprep.subr.mxu0 0.0
  %311 = vmatpush1.msra.mxu0 %v215
  %312 = vmatprep.subr.mxu0 0.0
  %313 = vmatpush1.msra.mxu0 %v216
  %314 = vmatprep.subr.mxu0 0.0
  %315 = vmatpush1.msra.mxu0 %v217
  %316 = vmatprep.subr.mxu0 0.0
  %317 = vmatpush1.msra.mxu0 %v218
  %318 = vmatprep.subr.mxu0 0.0
  %319 = vmatpush1.msra.mxu0 %v219
  %320 = vmatprep.subr.mxu0 0.0
  %321 = vmatpush1.msra.mxu0 %v220
  %322 = vmatprep.subr.mxu0 0.0
  %323 = vmatpush1.msra.mxu0 %v221
  %324 = vmatprep.subr.mxu0 0.0
  %325 = vmatpush1.msra.mxu0 %v222
  %326 = vmatprep.subr.mxu0 0.0
  %327 = vmatpush1.msra.mxu0 %v223
  %328 = vmatprep.subr.mxu0 0.0
  %329 = vmatpush1.msra.mxu0 %v224
  %330 = vmatprep.subr.mxu0 0.0
  %331 = vmatpush1.msra.mxu0 %v225
  %332 = vmatprep.subr.mxu0 0.0
  %333 = vmatpush1.msra.mxu0 %v226
  %334 = vmatprep.subr.mxu0 0.0
  %335 = vmatpush1.msra.mxu0 0.0
  %336 = vmatprep.subr.mxu0 0.0
  %337 = vmatpush1.msra.mxu0 0.0
  %338 = vmatprep.subr.mxu0 0.0
  %339 = vmatpush1.msra.mxu0 0.0
  %340 = vmatprep.subr.mxu0 0.0
  %341 = vmatpush1.msra.mxu0 0.0
  %342 = vmatprep.subr.mxu0 0.0
  %343 = vmatpush1.msra.mxu0 0.0
  %344 = vmatprep.subr.mxu0 0.0
  %345 = vmatpush1.msra.mxu0 0.0
  %346 = vmatprep.subr.mxu0 0.0
  %347 = vmatpush1.msra.mxu0 0.0
  %348 = vmatprep.subr.mxu0 0.0
  %349 = vmatpush1.msra.mxu0 0.0
  %350 = vmatprep.subr.mxu0 0.0
  %351 = vmatpush1.msra.mxu0 0.0
  %352 = vmatprep.subr.mxu0 0.0
  %353 = vmatpush1.msra.mxu0 0.0
  %354 = vmatprep.subr.mxu0 0.0
  %355 = vmatpush1.msra.mxu0 0.0
  %356 = vmatprep.subr.mxu0 0.0
  %357 = vmatpush1.msra.mxu0 0.0
  %358 = vmatprep.subr.mxu0 0.0
  %359 = vmatpush1.msra.mxu0 0.0
  %360 = vmatprep.subr.mxu0 0.0
  %361 = vmatpush1.msra.mxu0 0.0
  %362 = vmatprep.subr.mxu0 0.0
  %363 = vmatpush1.msra.mxu0 0.0
  %364 = vmatprep.subr.mxu0 0.0
  %365 = vmatpush1.msra.mxu0 0.0
  %366 = vmatprep.mubr.f32.mxu0 0.0
  %367 = vmatmul.mubr.f32.gmra.mrb[0].mxu0 %v265
  %v368 = vpop.f32.mrb[0].mxu0
  %v369 = vadd.f32 %v301, %v368
  %v370 = vpop.f32.mrb[0].mxu0
  %371 = vmatprep.mubr.f32.mxu0 0.0
  %372 = vmatmul.mubr.f32.gmra.mrb[0].mxu0 %v297
  %v373 = vpop.f32.mrb[0].mxu0
  %v374 = vadd.f32 %v301, %v373
  %v375 = vpop.f32.mrb[0].mxu0
  %376 = vdwg.mxu0
  %v377 = vld [vmem:[%s1 + $0xc0] sm:$0xff]
  %v378 = vld [vmem:[%s1 + $0xc8] sm:$0xff]
  %v379 = vld [vmem:[%s1 + $0xd0] sm:$0xff]
  %v380 = vld [vmem:[%s1 + $0xd8] sm:$0xff]
  %v381 = vld [vmem:[%s1 + $0xe0] sm:$0xff]
  %v382 = vld [vmem:[%s1 + $0xe8] sm:$0xff]
  %v383 = vld [vmem:[%s1 + $0xf0] sm:$0xff]
  %v384 = vld [vmem:[%s1 + $0xf8] sm:$0xff]
  %v385 = vld [vmem:[%s1 + $0x100] sm:$0xff]
  %v386 = vld [vmem:[%s1 + $0x108] sm:$0xff]
  %v387 = vld [vmem:[%s1 + $0x110] sm:$0xff]
  %v388 = vld [vmem:[%s1 + $0x118] sm:$0xff]
  %v389 = vld [vmem:[%s1 + $0x120] sm:$0x1]
  %v390 = vmax.f32 %v369, 0.0
  %v391 = vmax.f32 %v374, 0.0
  %v393 = vrot.slane %v390, 5
  %vm395 = vcmask 1042432
  %v396 = vsel %vm395, 0.0, %v393
  %v397 = vsel %vm395, %v393, 0.0
  %vm400 = vcmask 1044480
  %v401 = vrot.slane %v396, 3
  %v402 = vrot.slane %v397, 3
  %v403 = vsel %vm400, %v401, %v402
  %404 = vrot.lane.b32.xlu0 %v403, 32
  %v405 = vpop.permute.xlu0 %404
  %vm407 = vcmask 1041408
  %v408 = vrot.slane %v396, 6
  %v409 = vrot.slane %v397, 6
  %v410 = vsel %vm407, %v408, %v409
  %411 = vrot.lane.b32.xlu0 %v410, 64
  %v412 = vpop.permute.xlu0 %411
  %v414 = vsel %vm64, %v396, %v405
  %v415 = vsel %vm262, %v414, %v412
  %v417 = vrot.slane %v391, 5
  %v419 = vsel %vm395, 0.0, %v417
  %v420 = vsel %vm395, %v417, 0.0
  %v423 = vrot.slane %v419, 3
  %v424 = vrot.slane %v420, 3
  %v425 = vsel %vm400, %v423, %v424
  %426 = vrot.lane.b32.xlu0 %v425, 32
  %v427 = vpop.permute.xlu0 %426
  %v429 = vrot.slane %v419, 6
  %v430 = vrot.slane %v420, 6
  %v431 = vsel %vm407, %v429, %v430
  %432 = vrot.lane.b32.xlu0 %v431, 64
  %v433 = vpop.permute.xlu0 %432
  %v435 = vsel %vm64, %v419, %v427
  %v436 = vsel %vm262, %v435, %v433
  %v437 = vlaneseq
  %v438 = vshrl.u32 %v437, 7
  %v439 = vsub.s32 0, %v438
  %v440 = vrot.slane %v389, %v439
  %v442 = vsel %vm264, %v415, 0
  %v445 = vsel %vm264, %v436, 0
  %447 = vmatprep.subr.mxu0 0.0
  %448 = vmatpush1.msra.mxu0 %v377
  %449 = vmatprep.subr.mxu0 0.0
  %450 = vmatpush1.msra.mxu0 %v378
  %451 = vmatprep.subr.mxu0 0.0
  %452 = vmatpush1.msra.mxu0 %v379
  %453 = vmatprep.subr.mxu0 0.0
  %454 = vmatpush1.msra.mxu0 %v380
  %455 = vmatprep.subr.mxu0 0.0
  %456 = vmatpush1.msra.mxu0 %v381
  %457 = vmatprep.subr.mxu0 0.0
  %458 = vmatpush1.msra.mxu0 %v382
  %459 = vmatprep.subr.mxu0 0.0
  %460 = vmatpush1.msra.mxu0 %v383
  %461 = vmatprep.subr.mxu0 0.0
  %462 = vmatpush1.msra.mxu0 %v384
  %463 = vmatprep.subr.mxu0 0.0
  %464 = vmatpush1.msra.mxu0 %v385
  %465 = vmatprep.subr.mxu0 0.0
  %466 = vmatpush1.msra.mxu0 %v386
  %467 = vmatprep.subr.mxu0 0.0
  %468 = vmatpush1.msra.mxu0 %v387
  %469 = vmatprep.subr.mxu0 0.0
  %470 = vmatpush1.msra.mxu0 %v388
  %471 = vmatprep.subr.mxu0 0.0
  %472 = vmatpush1.msra.mxu0 0.0
  %473 = vmatprep.subr.mxu0 0.0
  %474 = vmatpush1.msra.mxu0 0.0
  %475 = vmatprep.subr.mxu0 0.0
  %476 = vmatpush1.msra.mxu0 0.0
  %477 = vmatprep.subr.mxu0 0.0
  %478 = vmatpush1.msra.mxu0 0.0
  %479 = vmatprep.subr.mxu0 0.0
  %480 = vmatpush1.msra.mxu0 0.0
  %481 = vmatprep.subr.mxu0 0.0
  %482 = vmatpush1.msra.mxu0 0.0
  %483 = vmatprep.subr.mxu0 0.0
  %484 = vmatpush1.msra.mxu0 0.0
  %485 = vmatprep.subr.mxu0 0.0
  %486 = vmatpush1.msra.mxu0 0.0
  %487 = vmatprep.subr.mxu0 0.0
  %488 = vmatpush1.msra.mxu0 0.0
  %489 = vmatprep.subr.mxu0 0.0
  %490 = vmatpush1.msra.mxu0 0.0
  %491 = vmatprep.subr.mxu0 0.0
  %492 = vmatpush1.msra.mxu0 0.0
  %493 = vmatprep.subr.mxu0 0.0
  %494 = vmatpush1.msra.mxu0 0.0
  %495 = vmatprep.subr.mxu0 0.0
  %496 = vmatpush1.msra.mxu0 0.0
  %497 = vmatprep.subr.mxu0 0.0
  %498 = vmatpush1.msra.mxu0 0.0
  %499 = vmatprep.subr.mxu0 0.0
  %500 = vmatpush1.msra.mxu0 0.0
  %501 = vmatprep.subr.mxu0 0.0
  %502 = vmatpush1.msra.mxu0 0.0
  %503 = vmatprep.subr.mxu0 0.0
  %504 = vmatpush1.msra.mxu0 0.0
  %505 = vmatprep.subr.mxu0 0.0
  %506 = vmatpush1.msra.mxu0 0.0
  %507 = vmatprep.subr.mxu0 0.0
  %508 = vmatpush1.msra.mxu0 0.0
  %509 = vmatprep.subr.mxu0 0.0
  %510 = vmatpush1.msra.mxu0 0.0
  %511 = vmatprep.mubr.f32.mxu0 0.0
  %512 = vmatmul.mubr.f32.gmra.mrb[0].mxu0 %v442
  %v513 = vpop.f32.mrb[0].mxu0
  %v514 = vadd.f32 %v440, %v513
  %v515 = vpop.f32.mrb[0].mxu0
  %516 = vmatprep.mubr.f32.mxu0 0.0
  %517 = vmatmul.mubr.f32.gmra.mrb[0].mxu0 %v445
  %v518 = vpop.f32.mrb[0].mxu0
  %v519 = vadd.f32 %v440, %v518
  %v520 = vpop.f32.mrb[0].mxu0
  %521 = vdwg.mxu0
  %v522 = vld [vmem:[%s1 + $0x128] sm:$0xff]
  %v523 = vld [vmem:[%s1 + $0x130] sm:$0xff]
  %v524 = vld [vmem:[%s1 + $0x138] sm:$0xff]
  %v525 = vld [vmem:[%s1 + $0x140] sm:$0xff]
  %v526 = vld [vmem:[%s1 + $0x148] sm:$0x1]
  %v527 = vmax.f32 %v514, 0.0
  %v528 = vmax.f32 %v519, 0.0
  %v529 = vlaneseq
  %v530 = vshrl.u32 %v529, 7
  %v531 = vsub.s32 0, %v530
  %v532 = vrot.slane %v526, %v531
  %v534 = vsel %vm64, %v527, 0
  %v537 = vsel %vm64, %v528, 0
  %539 = vmatprep.subr.mxu0 0.0
  %540 = vmatpush1.msra.mxu0 %v522
  %541 = vmatprep.subr.mxu0 0.0
  %542 = vmatpush1.msra.mxu0 %v523
  %543 = vmatprep.subr.mxu0 0.0
  %544 = vmatpush1.msra.mxu0 %v524
  %545 = vmatprep.subr.mxu0 0.0
  %546 = vmatpush1.msra.mxu0 %v525
  %547 = vmatprep.subr.mxu0 0.0
  %548 = vmatpush1.msra.mxu0 0.0
  %549 = vmatprep.subr.mxu0 0.0
  %550 = vmatpush1.msra.mxu0 0.0
  %551 = vmatprep.subr.mxu0 0.0
  %552 = vmatpush1.msra.mxu0 0.0
  %553 = vmatprep.subr.mxu0 0.0
  %554 = vmatpush1.msra.mxu0 0.0
  %555 = vmatprep.subr.mxu0 0.0
  %556 = vmatpush1.msra.mxu0 0.0
  %557 = vmatprep.subr.mxu0 0.0
  %558 = vmatpush1.msra.mxu0 0.0
  %559 = vmatprep.subr.mxu0 0.0
  %560 = vmatpush1.msra.mxu0 0.0
  %561 = vmatprep.subr.mxu0 0.0
  %562 = vmatpush1.msra.mxu0 0.0
  %563 = vmatprep.subr.mxu0 0.0
  %564 = vmatpush1.msra.mxu0 0.0
  %565 = vmatprep.subr.mxu0 0.0
  %566 = vmatpush1.msra.mxu0 0.0
  %567 = vmatprep.subr.mxu0 0.0
  %568 = vmatpush1.msra.mxu0 0.0
  %569 = vmatprep.subr.mxu0 0.0
  %570 = vmatpush1.msra.mxu0 0.0
  %571 = vmatprep.subr.mxu0 0.0
  %572 = vmatpush1.msra.mxu0 0.0
  %573 = vmatprep.subr.mxu0 0.0
  %574 = vmatpush1.msra.mxu0 0.0
  %575 = vmatprep.subr.mxu0 0.0
  %576 = vmatpush1.msra.mxu0 0.0
  %577 = vmatprep.subr.mxu0 0.0
  %578 = vmatpush1.msra.mxu0 0.0
  %579 = vmatprep.subr.mxu0 0.0
  %580 = vmatpush1.msra.mxu0 0.0
  %581 = vmatprep.subr.mxu0 0.0
  %582 = vmatpush1.msra.mxu0 0.0
  %583 = vmatprep.subr.mxu0 0.0
  %584 = vmatpush1.msra.mxu0 0.0
  %585 = vmatprep.subr.mxu0 0.0
  %586 = vmatpush1.msra.mxu0 0.0
  %587 = vmatprep.subr.mxu0 0.0
  %588 = vmatpush1.msra.mxu0 0.0
  %589 = vmatprep.subr.mxu0 0.0
  %590 = vmatpush1.msra.mxu0 0.0
  %591 = vmatprep.subr.mxu0 0.0
  %592 = vmatpush1.msra.mxu0 0.0
  %593 = vmatprep.subr.mxu0 0.0
  %594 = vmatpush1.msra.mxu0 0.0
  %595 = vmatprep.subr.mxu0 0.0
  %596 = vmatpush1.msra.mxu0 0.0
  %597 = vmatprep.subr.mxu0 0.0
  %598 = vmatpush1.msra.mxu0 0.0
  %599 = vmatprep.subr.mxu0 0.0
  %600 = vmatpush1.msra.mxu0 0.0
  %601 = vmatprep.subr.mxu0 0.0
  %602 = vmatpush1.msra.mxu0 0.0
  %603 = vmatprep.mubr.f32.mxu0 0.0
  %604 = vmatmul.mubr.f32.gmra.mrb[0].mxu0 %v534
  %v605 = vpop.f32.mrb[0].mxu0
  %v606 = vadd.f32 %v532, %v605
  %v607 = vpop.f32.mrb[0].mxu0
  %608 = vmatprep.mubr.f32.mxu0 0.0
  %609 = vmatmul.mubr.f32.gmra.mrb[0].mxu0 %v537
  %v610 = vpop.f32.mrb[0].mxu0
  %v611 = vadd.f32 %v532, %v610
  %v612 = vpop.f32.mrb[0].mxu0
  %613 = vdwg.mxu0
  %v614 = vadd.f32 %v606, %v369
  %v615 = vadd.f32 %v611, %v374
  %v616 = vld [vmem:[%s1 + $0x150] sm:$0xff]
  %v617 = vld [vmem:[%s1 + $0x158] sm:$0xff]
  %v618 = vld [vmem:[%s1 + $0x160] sm:$0xff]
  %v619 = vld [vmem:[%s1 + $0x168] sm:$0xff]
  %v620 = vld [vmem:[%s1 + $0x170] sm:$0xff]
  %v621 = vld [vmem:[%s1 + $0x178] sm:$0xff]
  %v622 = vld [vmem:[%s1 + $0x180] sm:$0xff]
  %v623 = vld [vmem:[%s1 + $0x188] sm:$0xff]
  %v624 = vld [vmem:[%s1 + $0x190] sm:$0xff]
  %v625 = vld [vmem:[%s1 + $0x198] sm:$0xff]
  %v626 = vld [vmem:[%s1 + $0x1a0] sm:$0xff]
  %v627 = vld [vmem:[%s1 + $0x1a8] sm:$0xff]
  %v628 = vld [vmem:[%s1 + $0x1b0] sm:$0x1]
  %v629 = vmax.f32 %v614, 0.0
  %v630 = vmax.f32 %v615, 0.0
  %v632 = vrot.slane %v629, 7
  %v634 = vsel %vm26, 0.0, %v632
  %v635 = vsel %vm26, %v632, 0.0
  %v638 = vrot.slane %v634, 1
  %v639 = vrot.slane %v635, 1
  %v640 = vsel %vm37, %v638, %v639
  %641 = vrot.lane.b32.xlu0 %v640, 32
  %v642 = vpop.permute.xlu0 %641
  %v644 = vrot.slane %v634, 2
  %v645 = vrot.slane %v635, 2
  %v646 = vsel %vm49, %v644, %v645
  %647 = vrot.lane.b32.xlu0 %v646, 64
  %v648 = vpop.permute.xlu0 %647
  %v650 = vsel %vm64, %v634, %v642
  %v651 = vsel %vm262, %v650, %v648
  %v653 = vrot.slane %v630, 7
  %v655 = vsel %vm26, 0.0, %v653
  %v656 = vsel %vm26, %v653, 0.0
  %v659 = vrot.slane %v655, 1
  %v660 = vrot.slane %v656, 1
  %v661 = vsel %vm37, %v659, %v660
  %662 = vrot.lane.b32.xlu0 %v661, 32
  %v663 = vpop.permute.xlu0 %662
  %v665 = vrot.slane %v655, 2
  %v666 = vrot.slane %v656, 2
  %v667 = vsel %vm49, %v665, %v666
  %668 = vrot.lane.b32.xlu0 %v667, 64
  %v669 = vpop.permute.xlu0 %668
  %v671 = vsel %vm64, %v655, %v663
  %v672 = vsel %vm262, %v671, %v669
  %v673 = vlaneseq
  %v674 = vshrl.u32 %v673, 7
  %v675 = vsub.s32 0, %v674
  %v676 = vrot.slane %v628, %v675
  %v678 = vsel %vm264, %v651, 0
  %v681 = vsel %vm264, %v672, 0
  %683 = vmatprep.subr.mxu0 0.0
  %684 = vmatpush1.msra.mxu0 %v616
  %685 = vmatprep.subr.mxu0 0.0
  %686 = vmatpush1.msra.mxu0 %v617
  %687 = vmatprep.subr.mxu0 0.0
  %688 = vmatpush1.msra.mxu0 %v618
  %689 = vmatprep.subr.mxu0 0.0
  %690 = vmatpush1.msra.mxu0 %v619
  %691 = vmatprep.subr.mxu0 0.0
  %692 = vmatpush1.msra.mxu0 %v620
  %693 = vmatprep.subr.mxu0 0.0
  %694 = vmatpush1.msra.mxu0 %v621
  %695 = vmatprep.subr.mxu0 0.0
  %696 = vmatpush1.msra.mxu0 %v622
  %697 = vmatprep.subr.mxu0 0.0
  %698 = vmatpush1.msra.mxu0 %v623
  %699 = vmatprep.subr.mxu0 0.0
  %700 = vmatpush1.msra.mxu0 %v624
  %701 = vmatprep.subr.mxu0 0.0
  %702 = vmatpush1.msra.mxu0 %v625
  %703 = vmatprep.subr.mxu0 0.0
  %704 = vmatpush1.msra.mxu0 %v626
  %705 = vmatprep.subr.mxu0 0.0
  %706 = vmatpush1.msra.mxu0 %v627
  %707 = vmatprep.subr.mxu0 0.0
  %708 = vmatpush1.msra.mxu0 0.0
  %709 = vmatprep.subr.mxu0 0.0
  %710 = vmatpush1.msra.mxu0 0.0
  %711 = vmatprep.subr.mxu0 0.0
  %712 = vmatpush1.msra.mxu0 0.0
  %713 = vmatprep.subr.mxu0 0.0
  %714 = vmatpush1.msra.mxu0 0.0
  %715 = vmatprep.subr.mxu0 0.0
  %716 = vmatpush1.msra.mxu0 0.0
  %717 = vmatprep.subr.mxu0 0.0
  %718 = vmatpush1.msra.mxu0 0.0
  %719 = vmatprep.subr.mxu0 0.0
  %720 = vmatpush1.msra.mxu0 0.0
  %721 = vmatprep.subr.mxu0 0.0
  %722 = vmatpush1.msra.mxu0 0.0
  %723 = vmatprep.subr.mxu0 0.0
  %724 = vmatpush1.msra.mxu0 0.0
  %725 = vmatprep.subr.mxu0 0.0
  %726 = vmatpush1.msra.mxu0 0.0
  %727 = vmatprep.subr.mxu0 0.0
  %728 = vmatpush1.msra.mxu0 0.0
  %729 = vmatprep.subr.mxu0 0.0
  %730 = vmatpush1.msra.mxu0 0.0
  %731 = vmatprep.subr.mxu0 0.0
  %732 = vmatpush1.msra.mxu0 0.0
  %733 = vmatprep.subr.mxu0 0.0
  %734 = vmatpush1.msra.mxu0 0.0
  %735 = vmatprep.subr.mxu0 0.0
  %736 = vmatpush1.msra.mxu0 0.0
  %737 = vmatprep.subr.mxu0 0.0
  %738 = vmatpush1.msra.mxu0 0.0
  %739 = vmatprep.subr.mxu0 0.0
  %740 = vmatpush1.msra.mxu0 0.0
  %741 = vmatprep.subr.mxu0 0.0
  %742 = vmatpush1.msra.mxu0 0.0
  %743 = vmatprep.subr.mxu0 0.0
  %744 = vmatpush1.msra.mxu0 0.0
  %745 = vmatprep.subr.mxu0 0.0
  %746 = vmatpush1.msra.mxu0 0.0
  %747 = vmatprep.mubr.f32.mxu0 0.0
  %748 = vmatmul.mubr.f32.gmra.mrb[0].mxu0 %v678
  %v749 = vpop.f32.mrb[0].mxu0
  %v750 = vadd.f32 %v676, %v749
  %v751 = vpop.f32.mrb[0].mxu0
  %752 = vmatprep.mubr.f32.mxu0 0.0
  %753 = vmatmul.mubr.f32.gmra.mrb[0].mxu0 %v681
  %v754 = vpop.f32.mrb[0].mxu0
  %v755 = vadd.f32 %v676, %v754
  %v756 = vpop.f32.mrb[0].mxu0
  %757 = vdwg.mxu0
  %v758 = vld [vmem:[%s1 + $0x1b8] sm:$0xff]
  %v759 = vld [vmem:[%s1 + $0x1c0] sm:$0xff]
  %v760 = vld [vmem:[%s1 + $0x1c8] sm:$0xff]
  %v761 = vld [vmem:[%s1 + $0x1d0] sm:$0xff]
  %v762 = vld [vmem:[%s1 + $0x1d8] sm:$0x1]
  %v763 = vmax.f32 %v750, 0.0
  %v764 = vmax.f32 %v755, 0.0
  %v765 = vlaneseq
  %v766 = vshrl.u32 %v765, 7
  %v767 = vsub.s32 0, %v766
  %v768 = vrot.slane %v762, %v767
  %v770 = vsel %vm64, %v763, 0
  %v773 = vsel %vm64, %v764, 0
  %775 = vmatprep.subr.mxu0 0.0
  %776 = vmatpush1.msra.mxu0 %v758
  %777 = vmatprep.subr.mxu0 0.0
  %778 = vmatpush1.msra.mxu0 %v759
  %779 = vmatprep.subr.mxu0 0.0
  %780 = vmatpush1.msra.mxu0 %v760
  %781 = vmatprep.subr.mxu0 0.0
  %782 = vmatpush1.msra.mxu0 %v761
  %783 = vmatprep.subr.mxu0 0.0
  %784 = vmatpush1.msra.mxu0 0.0
  %785 = vmatprep.subr.mxu0 0.0
  %786 = vmatpush1.msra.mxu0 0.0
  %787 = vmatprep.subr.mxu0 0.0
  %788 = vmatpush1.msra.mxu0 0.0
  %789 = vmatprep.subr.mxu0 0.0
  %790 = vmatpush1.msra.mxu0 0.0
  %791 = vmatprep.subr.mxu0 0.0
  %792 = vmatpush1.msra.mxu0 0.0
  %793 = vmatprep.subr.mxu0 0.0
  %794 = vmatpush1.msra.mxu0 0.0
  %795 = vmatprep.subr.mxu0 0.0
  %796 = vmatpush1.msra.mxu0 0.0
  %797 = vmatprep.subr.mxu0 0.0
  %798 = vmatpush1.msra.mxu0 0.0
  %799 = vmatprep.subr.mxu0 0.0
  %800 = vmatpush1.msra.mxu0 0.0
  %801 = vmatprep.subr.mxu0 0.0
  %802 = vmatpush1.msra.mxu0 0.0
  %803 = vmatprep.subr.mxu0 0.0
  %804 = vmatpush1.msra.mxu0 0.0
  %805 = vmatprep.subr.mxu0 0.0
  %806 = vmatpush1.msra.mxu0 0.0
  %807 = vmatprep.subr.mxu0 0.0
  %808 = vmatpush1.msra.mxu0 0.0
  %809 = vmatprep.subr.mxu0 0.0
  %810 = vmatpush1.msra.mxu0 0.0
  %811 = vmatprep.subr.mxu0 0.0
  %812 = vmatpush1.msra.mxu0 0.0
  %813 = vmatprep.subr.mxu0 0.0
  %814 = vmatpush1.msra.mxu0 0.0
  %815 = vmatprep.subr.mxu0 0.0
  %816 = vmatpush1.msra.mxu0 0.0
  %817 = vmatprep.subr.mxu0 0.0
  %818 = vmatpush1.msra.mxu0 0.0
  %819 = vmatprep.subr.mxu0 0.0
  %820 = vmatpush1.msra.mxu0 0.0
  %821 = vmatprep.subr.mxu0 0.0
  %822 = vmatpush1.msra.mxu0 0.0
  %823 = vmatprep.subr.mxu0 0.0
  %824 = vmatpush1.msra.mxu0 0.0
  %825 = vmatprep.subr.mxu0 0.0
  %826 = vmatpush1.msra.mxu0 0.0
  %827 = vmatprep.subr.mxu0 0.0
  %828 = vmatpush1.msra.mxu0 0.0
  %829 = vmatprep.subr.mxu0 0.0
  %830 = vmatpush1.msra.mxu0 0.0
  %831 = vmatprep.subr.mxu0 0.0
  %832 = vmatpush1.msra.mxu0 0.0
  %833 = vmatprep.subr.mxu0 0.0
  %834 = vmatpush1.msra.mxu0 0.0
  %835 = vmatprep.subr.mxu0 0.0
  %836 = vmatpush1.msra.mxu0 0.0
  %837 = vmatprep.subr.mxu0 0.0
  %838 = vmatpush1.msra.mxu0 0.0
  %839 = vmatprep.mubr.f32.mxu0 0.0
  %840 = vmatmul.mubr.f32.gmra.mrb[0].mxu0 %v770
  %v841 = vpop.f32.mrb[0].mxu0
  %v842 = vadd.f32 %v768, %v841
  %v843 = vpop.f32.mrb[0].mxu0
  %844 = vmatprep.mubr.f32.mxu0 0.0
  %845 = vmatmul.mubr.f32.gmra.mrb[0].mxu0 %v773
  %v846 = vpop.f32.mrb[0].mxu0
  %v847 = vadd.f32 %v768, %v846
  %v848 = vpop.f32.mrb[0].mxu0
  %849 = vdwg.mxu0
  %v850 = vadd.f32 %v842, %v614
  %v851 = vadd.f32 %v847, %v615
  %v852 = vld [vmem:[%s1 + $0x1e0] sm:$0xff]
  %v853 = vld [vmem:[%s1 + $0x1e8] sm:$0xff]
  %v854 = vld [vmem:[%s1 + $0x1f0] sm:$0xff]
  %v855 = vld [vmem:[%s1 + $0x1f8] sm:$0xff]
  %v856 = vld [vmem:[%s1 + $0x200] sm:$0xff]
  %v857 = vld [vmem:[%s1 + $0x208] sm:$0xff]
  %v858 = vld [vmem:[%s1 + $0x210] sm:$0xff]
  %v859 = vld [vmem:[%s1 + $0x218] sm:$0xff]
  %v860 = vld [vmem:[%s1 + $0x220] sm:$0xff]
  %v861 = vld [vmem:[%s1 + $0x228] sm:$0xff]
  %v862 = vld [vmem:[%s1 + $0x230] sm:$0xff]
  %v863 = vld [vmem:[%s1 + $0x238] sm:$0xff]
  %v864 = vld [vmem:[%s1 + $0x240] sm:$0xff]
  %v865 = vld [vmem:[%s1 + $0x248] sm:$0xff]
  %v866 = vld [vmem:[%s1 + $0x250] sm:$0xff]
  %v867 = vld [vmem:[%s1 + $0x258] sm:$0xff]
  %v868 = vld [vmem:[%s1 + $0x260] sm:$0x1]
  %v870 = vrot.slane %v850, 7
  %v872 = vsel %vm26, 0.0, %v870
  %v873 = vsel %vm26, %v870, 0.0
  %874 = vst.msk [vmem:[#allocation2] sm:$0xff] %vm64, %v872
  %875 = vst.msk [vmem:[#allocation2 + $0x8] sm:$0x3] %vm240, %v873
  %v876 = vld [vmem:[#allocation2] ss:$2 sm:$0xf]
  %v877 = vld [vmem:[%s243] ss:$2 sm:$0xf]
  %v878 = vld [vmem:[%s245] ss:$2 sm:$0xf]
  %v879 = vld [vmem:[%s247] ss:$2 sm:$0xf]
  %881 = vrot.lane.b32.xlu0 %v877, 32
  %v882 = vpop.permute.xlu0 %881
  %885 = vrot.lane.b32.xlu0 %v878, 64
  %v886 = vpop.permute.xlu0 %885
  %889 = vrot.lane.b32.xlu0 %v879, 96
  %v890 = vpop.permute.xlu0 %889
  %v892 = vsel %vm64, %v876, %v882
  %v893 = vsel %vm262, %v892, %v886
  %v894 = vsel %vm264, %v893, %v890
  %v896 = vrot.slane %v851, 7
  %v898 = vsel %vm26, 0.0, %v896
  %v899 = vsel %vm26, %v896, 0.0
  %900 = vst.msk [vmem:[#allocation2] sm:$0xff] %vm64, %v898
  %901 = vst.msk [vmem:[#allocation2 + $0x8] sm:$0x3] %vm240, %v899
  %v902 = vld [vmem:[#allocation2] ss:$2 sm:$0xf]
  %v903 = vld [vmem:[%s243] ss:$2 sm:$0xf]
  %v904 = vld [vmem:[%s245] ss:$2 sm:$0xf]
  %v905 = vld [vmem:[%s247] ss:$2 sm:$0xf]
  %907 = vrot.lane.b32.xlu0 %v903, 32
  %v908 = vpop.permute.xlu0 %907
  %911 = vrot.lane.b32.xlu0 %v904, 64
  %v912 = vpop.permute.xlu0 %911
  %915 = vrot.lane.b32.xlu0 %v905, 96
  %v916 = vpop.permute.xlu0 %915
  %v918 = vsel %vm64, %v902, %v908
  %v919 = vsel %vm262, %v918, %v912
  %v920 = vsel %vm264, %v919, %v916
  %v922 = vrot.slane %v920, 4
  %vm924 = vcmask 1043456
  %v925 = vsel %vm924, %v894, %v922
  %v926 = vlaneseq
  %v927 = vshrl.u32 %v926, 7
  %v928 = vsub.s32 0, %v927
  %v929 = vrot.slane %v868, %v928
  %930 = vmatprep.subr.mxu0 0.0
  %931 = vmatpush1.msra.mxu0 %v852
  %932 = vmatprep.subr.mxu0 0.0
  %933 = vmatpush1.msra.mxu0 %v853
  %934 = vmatprep.subr.mxu0 0.0
  %935 = vmatpush1.msra.mxu0 %v854
  %936 = vmatprep.subr.mxu0 0.0
  %937 = vmatpush1.msra.mxu0 %v855
  %938 = vmatprep.subr.mxu0 0.0
  %939 = vmatpush1.msra.mxu0 %v856
  %940 = vmatprep.subr.mxu0 0.0
  %941 = vmatpush1.msra.mxu0 %v857
  %942 = vmatprep.subr.mxu0 0.0
  %943 = vmatpush1.msra.mxu0 %v858
  %944 = vmatprep.subr.mxu0 0.0
  %945 = vmatpush1.msra.mxu0 %v859
  %946 = vmatprep.subr.mxu0 0.0
  %947 = vmatpush1.msra.mxu0 %v860
  %948 = vmatprep.subr.mxu0 0.0
  %949 = vmatpush1.msra.mxu0 %v861
  %950 = vmatprep.subr.mxu0 0.0
  %951 = vmatpush1.msra.mxu0 %v862
  %952 = vmatprep.subr.mxu0 0.0
  %953 = vmatpush1.msra.mxu0 %v863
  %954 = vmatprep.subr.mxu0 0.0
  %955 = vmatpush1.msra.mxu0 %v864
  %956 = vmatprep.subr.mxu0 0.0
  %957 = vmatpush1.msra.mxu0 %v865
  %958 = vmatprep.subr.mxu0 0.0
  %959 = vmatpush1.msra.mxu0 %v866
  %960 = vmatprep.subr.mxu0 0.0
  %961 = vmatpush1.msra.mxu0 %v867
  %962 = vmatprep.subr.mxu0 0.0
  %963 = vmatpush1.msra.mxu0 0.0
  %964 = vmatprep.subr.mxu0 0.0
  %965 = vmatpush1.msra.mxu0 0.0
  %966 = vmatprep.subr.mxu0 0.0
  %967 = vmatpush1.msra.mxu0 0.0
  %968 = vmatprep.subr.mxu0 0.0
  %969 = vmatpush1.msra.mxu0 0.0
  %970 = vmatprep.subr.mxu0 0.0
  %971 = vmatpush1.msra.mxu0 0.0
  %972 = vmatprep.subr.mxu0 0.0
  %973 = vmatpush1.msra.mxu0 0.0
  %974 = vmatprep.subr.mxu0 0.0
  %975 = vmatpush1.msra.mxu0 0.0
  %976 = vmatprep.subr.mxu0 0.0
  %977 = vmatpush1.msra.mxu0 0.0
  %978 = vmatprep.subr.mxu0 0.0
  %979 = vmatpush1.msra.mxu0 0.0
  %980 = vmatprep.subr.mxu0 0.0
  %981 = vmatpush1.msra.mxu0 0.0
  %982 = vmatprep.subr.mxu0 0.0
  %983 = vmatpush1.msra.mxu0 0.0
  %984 = vmatprep.subr.mxu0 0.0
  %985 = vmatpush1.msra.mxu0 0.0
  %986 = vmatprep.subr.mxu0 0.0
  %987 = vmatpush1.msra.mxu0 0.0
  %988 = vmatprep.subr.mxu0 0.0
  %989 = vmatpush1.msra.mxu0 0.0
  %990 = vmatprep.subr.mxu0 0.0
  %991 = vmatpush1.msra.mxu0 0.0
  %992 = vmatprep.subr.mxu0 0.0
  %993 = vmatpush1.msra.mxu0 0.0
  %994 = vmatprep.mubr.f32.mxu0 0.0
  %995 = vmatmul.mubr.f32.gmra.mrb[0].mxu0 %v925
  %v996 = vpop.f32.mrb[0].mxu0
  %v997 = vadd.f32 %v929, %v996
  %v998 = vpop.f32.mrb[0].mxu0
  %999 = vdwg.mxu0
  %v1000 = vld [vmem:[%s1 + $0x268] sm:$0xff]
  %v1001 = vld [vmem:[%s1 + $0x270] sm:$0xff]
  %v1002 = vld [vmem:[%s1 + $0x278] sm:$0xff]
  %v1003 = vld [vmem:[%s1 + $0x280] sm:$0xff]
  %v1004 = vld [vmem:[%s1 + $0x288] sm:$0xff]
  %v1005 = vld [vmem:[%s1 + $0x290] sm:$0xff]
  %v1006 = vld [vmem:[%s1 + $0x298] sm:$0xff]
  %v1007 = vld [vmem:[%s1 + $0x2a0] sm:$0xff]
  %v1008 = vld [vmem:[%s1 + $0x2a8] sm:$0xff]
  %v1009 = vld [vmem:[%s1 + $0x2b0] sm:$0xff]
  %v1010 = vld [vmem:[%s1 + $0x2b8] sm:$0xff]
  %v1011 = vld [vmem:[%s1 + $0x2c0] sm:$0xff]
  %v1012 = vld [vmem:[%s1 + $0x2c8] sm:$0x1]
  %v1013 = vmax.f32 %v997, 0.0
  %v1015 = vrot.slane %v1013, 5
  %v1017 = vsel %vm395, 0.0, %v1015
  %v1018 = vsel %vm37, %v1017, 0.0
  %v1020 = vrot.slane %v1018, 3
  %1021 = vrot.lane.b32.xlu0 %v1020, 32
  %v1022 = vpop.permute.xlu0 %1021
  %v1025 = vrot.slane %v1018, 6
  %v1026 = vrot.slane 0.0, 6
  %v1027 = vsel %vm407, %v1025, %v1026
  %1028 = vrot.lane.b32.xlu0 %v1027, 64
  %v1029 = vpop.permute.xlu0 %1028
  %v1031 = vsel %vm64, %v1018, %v1022
  %v1032 = vsel %vm262, %v1031, %v1029
  %v1033 = vrot.slane %v1013, 1
  %v1035 = vsel %vm395, 0.0, %v1033
  %v1036 = vsel %vm37, %v1035, 0.0
  %v1038 = vrot.slane %v1036, 3
  %1039 = vrot.lane.b32.xlu0 %v1038, 32
  %v1040 = vpop.permute.xlu0 %1039
  %v1042 = vrot.slane %v1036, 6
  %v1043 = vsel %vm407, %v1042, %v1026
  %1044 = vrot.lane.b32.xlu0 %v1043, 64
  %v1045 = vpop.permute.xlu0 %1044
  %v1047 = vsel %vm64, %v1036, %v1040
  %v1048 = vsel %vm262, %v1047, %v1045
  %v1050 = vrot.slane %v1048, 4
  %v1052 = vsel %vm924, %v1032, %v1050
  %v1053 = vlaneseq
  %v1054 = vshrl.u32 %v1053, 7
  %v1055 = vsub.s32 0, %v1054
  %v1056 = vrot.slane %v1012, %v1055
  %v1058 = vsel %vm264, %v1052, 0
  %1060 = vmatprep.subr.mxu0 0.0
  %1061 = vmatpush1.msra.mxu0 %v1000
  %1062 = vmatprep.subr.mxu0 0.0
  %1063 = vmatpush1.msra.mxu0 %v1001
  %1064 = vmatprep.subr.mxu0 0.0
  %1065 = vmatpush1.msra.mxu0 %v1002
  %1066 = vmatprep.subr.mxu0 0.0
  %1067 = vmatpush1.msra.mxu0 %v1003
  %1068 = vmatprep.subr.mxu0 0.0
  %1069 = vmatpush1.msra.mxu0 %v1004
  %1070 = vmatprep.subr.mxu0 0.0
  %1071 = vmatpush1.msra.mxu0 %v1005
  %1072 = vmatprep.subr.mxu0 0.0
  %1073 = vmatpush1.msra.mxu0 %v1006
  %1074 = vmatprep.subr.mxu0 0.0
  %1075 = vmatpush1.msra.mxu0 %v1007
  %1076 = vmatprep.subr.mxu0 0.0
  %1077 = vmatpush1.msra.mxu0 %v1008
  %1078 = vmatprep.subr.mxu0 0.0
  %1079 = vmatpush1.msra.mxu0 %v1009
  %1080 = vmatprep.subr.mxu0 0.0
  %1081 = vmatpush1.msra.mxu0 %v1010
  %1082 = vmatprep.subr.mxu0 0.0
  %1083 = vmatpush1.msra.mxu0 %v1011
  %1084 = vmatprep.subr.mxu0 0.0
  %1085 = vmatpush1.msra.mxu0 0.0
  %1086 = vmatprep.subr.mxu0 0.0
  %1087 = vmatpush1.msra.mxu0 0.0
  %1088 = vmatprep.subr.mxu0 0.0
  %1089 = vmatpush1.msra.mxu0 0.0
  %1090 = vmatprep.subr.mxu0 0.0
  %1091 = vmatpush1.msra.mxu0 0.0
  %1092 = vmatprep.subr.mxu0 0.0
  %1093 = vmatpush1.msra.mxu0 0.0
  %1094 = vmatprep.subr.mxu0 0.0
  %1095 = vmatpush1.msra.mxu0 0.0
  %1096 = vmatprep.subr.mxu0 0.0
  %1097 = vmatpush1.msra.mxu0 0.0
  %1098 = vmatprep.subr.mxu0 0.0
  %1099 = vmatpush1.msra.mxu0 0.0
  %1100 = vmatprep.subr.mxu0 0.0
  %1101 = vmatpush1.msra.mxu0 0.0
  %1102 = vmatprep.subr.mxu0 0.0
  %1103 = vmatpush1.msra.mxu0 0.0
  %1104 = vmatprep.subr.mxu0 0.0
  %1105 = vmatpush1.msra.mxu0 0.0
  %1106 = vmatprep.subr.mxu0 0.0
  %1107 = vmatpush1.msra.mxu0 0.0
  %1108 = vmatprep.subr.mxu0 0.0
  %1109 = vmatpush1.msra.mxu0 0.0
  %1110 = vmatprep.subr.mxu0 0.0
  %1111 = vmatpush1.msra.mxu0 0.0
  %1112 = vmatprep.subr.mxu0 0.0
  %1113 = vmatpush1.msra.mxu0 0.0
  %1114 = vmatprep.subr.mxu0 0.0
  %1115 = vmatpush1.msra.mxu0 0.0
  %1116 = vmatprep.subr.mxu0 0.0
  %1117 = vmatpush1.msra.mxu0 0.0
  %1118 = vmatprep.subr.mxu0 0.0
  %1119 = vmatpush1.msra.mxu0 0.0
  %1120 = vmatprep.subr.mxu0 0.0
  %1121 = vmatpush1.msra.mxu0 0.0
  %1122 = vmatprep.subr.mxu0 0.0
  %1123 = vmatpush1.msra.mxu0 0.0
  %1124 = vmatprep.mubr.f32.mxu0 0.0
  %1125 = vmatmul.mubr.f32.gmra.mrb[0].mxu0 %v1058
  %v1126 = vpop.f32.mrb[0].mxu0
  %v1127 = vadd.f32 %v1056, %v1126
  %v1128 = vpop.f32.mrb[0].mxu0
  %1129 = vdwg.mxu0
  %v1130 = vld [vmem:[%s1 + $0x2d0] sm:$0xff]
  %v1131 = vld [vmem:[%s1 + $0x2d8] sm:$0xff]
  %v1132 = vld [vmem:[%s1 + $0x2e0] sm:$0xff]
  %v1133 = vld [vmem:[%s1 + $0x2e8] sm:$0xff]
  %v1134 = vld [vmem:[%s1 + $0x2f0] sm:$0x1]
  %v1135 = vmax.f32 %v1127, 0.0
  %v1136 = vlaneseq
  %v1137 = vshrl.u32 %v1136, 7
  %v1138 = vsub.s32 0, %v1137
  %v1139 = vrot.slane %v1134, %v1138
  %v1141 = vsel %vm64, %v1135, 0
  %1143 = vmatprep.subr.mxu0 0.0
  %1144 = vmatpush1.msra.mxu0 %v1130
  %1145 = vmatprep.subr.mxu0 0.0
  %1146 = vmatpush1.msra.mxu0 %v1131
  %1147 = vmatprep.subr.mxu0 0.0
  %1148 = vmatpush1.msra.mxu0 %v1132
  %1149 = vmatprep.subr.mxu0 0.0
  %1150 = vmatpush1.msra.mxu0 %v1133
  %1151 = vmatprep.subr.mxu0 0.0
  %1152 = vmatpush1.msra.mxu0 0.0
  %1153 = vmatprep.subr.mxu0 0.0
  %1154 = vmatpush1.msra.mxu0 0.0
  %1155 = vmatprep.subr.mxu0 0.0
  %1156 = vmatpush1.msra.mxu0 0.0
  %1157 = vmatprep.subr.mxu0 0.0
  %1158 = vmatpush1.msra.mxu0 0.0
  %1159 = vmatprep.subr.mxu0 0.0
  %1160 = vmatpush1.msra.mxu0 0.0
  %1161 = vmatprep.subr.mxu0 0.0
  %1162 = vmatpush1.msra.mxu0 0.0
  %1163 = vmatprep.subr.mxu0 0.0
  %1164 = vmatpush1.msra.mxu0 0.0
  %1165 = vmatprep.subr.mxu0 0.0
  %1166 = vmatpush1.msra.mxu0 0.0
  %1167 = vmatprep.subr.mxu0 0.0
  %1168 = vmatpush1.msra.mxu0 0.0
  %1169 = vmatprep.subr.mxu0 0.0
  %1170 = vmatpush1.msra.mxu0 0.0
  %1171 = vmatprep.subr.mxu0 0.0
  %1172 = vmatpush1.msra.mxu0 0.0
  %1173 = vmatprep.subr.mxu0 0.0
  %1174 = vmatpush1.msra.mxu0 0.0
  %1175 = vmatprep.subr.mxu0 0.0
  %1176 = vmatpush1.msra.mxu0 0.0
  %1177 = vmatprep.subr.mxu0 0.0
  %1178 = vmatpush1.msra.mxu0 0.0
  %1179 = vmatprep.subr.mxu0 0.0
  %1180 = vmatpush1.msra.mxu0 0.0
  %1181 = vmatprep.subr.mxu0 0.0
  %1182 = vmatpush1.msra.mxu0 0.0
  %1183 = vmatprep.subr.mxu0 0.0
  %1184 = vmatpush1.msra.mxu0 0.0
  %1185 = vmatprep.subr.mxu0 0.0
  %1186 = vmatpush1.msra.mxu0 0.0
  %1187 = vmatprep.subr.mxu0 0.0
  %1188 = vmatpush1.msra.mxu0 0.0
  %1189 = vmatprep.subr.mxu0 0.0
  %1190 = vmatpush1.msra.mxu0 0.0
  %1191 = vmatprep.subr.mxu0 0.0
  %1192 = vmatpush1.msra.mxu0 0.0
  %1193 = vmatprep.subr.mxu0 0.0
  %1194 = vmatpush1.msra.mxu0 0.0
  %1195 = vmatprep.subr.mxu0 0.0
  %1196 = vmatpush1.msra.mxu0 0.0
  %1197 = vmatprep.subr.mxu0 0.0
  %1198 = vmatpush1.msra.mxu0 0.0
  %1199 = vmatprep.subr.mxu0 0.0
  %1200 = vmatpush1.msra.mxu0 0.0
  %1201 = vmatprep.subr.mxu0 0.0
  %1202 = vmatpush1.msra.mxu0 0.0
  %1203 = vmatprep.subr.mxu0 0.0
  %1204 = vmatpush1.msra.mxu0 0.0
  %1205 = vmatprep.subr.mxu0 0.0
  %1206 = vmatpush1.msra.mxu0 0.0
  %1207 = vmatprep.mubr.f32.mxu0 0.0
  %1208 = vmatmul.mubr.f32.gmra.mrb[0].mxu0 %v1141
  %v1209 = vpop.f32.mrb[0].mxu0
  %v1210 = vadd.f32 %v1139, %v1209
  %v1211 = vpop.f32.mrb[0].mxu0
  %1212 = vdwg.mxu0
  %v1213 = vadd.f32 %v1210, %v997
  %v1214 = vld [vmem:[%s1 + $0x2f8] sm:$0xff]
  %v1215 = vld [vmem:[%s1 + $0x300] sm:$0xff]
  %v1216 = vld [vmem:[%s1 + $0x308] sm:$0xff]
  %v1217 = vld [vmem:[%s1 + $0x310] sm:$0xff]
  %v1218 = vld [vmem:[%s1 + $0x318] sm:$0xff]
  %v1219 = vld [vmem:[%s1 + $0x320] sm:$0xff]
  %v1220 = vld [vmem:[%s1 + $0x328] sm:$0xff]
  %v1221 = vld [vmem:[%s1 + $0x330] sm:$0xff]
  %v1222 = vld [vmem:[%s1 + $0x338] sm:$0xff]
  %v1223 = vld [vmem:[%s1 + $0x340] sm:$0xff]
  %v1224 = vld [vmem:[%s1 + $0x348] sm:$0xff]
  %v1225 = vld [vmem:[%s1 + $0x350] sm:$0xff]
  %v1226 = vld [vmem:[%s1 + $0x358] sm:$0x1]
  %v1227 = vmax.f32 %v1213, 0.0
  %v1229 = vrot.slane %v1227, 7
  %v1231 = vsel %vm26, 0.0, %v1229
  %v1232 = vsel %vm400, %v1231, 0.0
  %v1234 = vrot.slane %v1232, 1
  %1235 = vrot.lane.b32.xlu0 %v1234, 32
  %v1236 = vpop.permute.xlu0 %1235
  %v1238 = vrot.slane %v1232, 2
  %1239 = vrot.lane.b32.xlu0 %v1238, 64
  %v1240 = vpop.permute.xlu0 %1239
  %v1242 = vsel %vm64, %v1232, %v1236
  %v1243 = vsel %vm262, %v1242, %v1240
  %v1244 = vrot.slane %v1227, 3
  %v1246 = vsel %vm26, 0.0, %v1244
  %v1247 = vsel %vm400, %v1246, 0.0
  %v1249 = vrot.slane %v1247, 1
  %1250 = vrot.lane.b32.xlu0 %v1249, 32
  %v1251 = vpop.permute.xlu0 %1250
  %v1253 = vrot.slane %v1247, 2
  %1254 = vrot.lane.b32.xlu0 %v1253, 64
  %v1255 = vpop.permute.xlu0 %1254
  %v1257 = vsel %vm64, %v1247, %v1251
  %v1258 = vsel %vm262, %v1257, %v1255
  %v1260 = vrot.slane %v1258, 4
  %v1262 = vsel %vm924, %v1243, %v1260
  %v1263 = vlaneseq
  %v1264 = vshrl.u32 %v1263, 7
  %v1265 = vsub.s32 0, %v1264
  %v1266 = vrot.slane %v1226, %v1265
  %v1268 = vsel %vm264, %v1262, 0
  %1270 = vmatprep.subr.mxu0 0.0
  %1271 = vmatpush1.msra.mxu0 %v1214
  %1272 = vmatprep.subr.mxu0 0.0
  %1273 = vmatpush1.msra.mxu0 %v1215
  %1274 = vmatprep.subr.mxu0 0.0
  %1275 = vmatpush1.msra.mxu0 %v1216
  %1276 = vmatprep.subr.mxu0 0.0
  %1277 = vmatpush1.msra.mxu0 %v1217
  %1278 = vmatprep.subr.mxu0 0.0
  %1279 = vmatpush1.msra.mxu0 %v1218
  %1280 = vmatprep.subr.mxu0 0.0
  %1281 = vmatpush1.msra.mxu0 %v1219
  %1282 = vmatprep.subr.mxu0 0.0
  %1283 = vmatpush1.msra.mxu0 %v1220
  %1284 = vmatprep.subr.mxu0 0.0
  %1285 = vmatpush1.msra.mxu0 %v1221
  %1286 = vmatprep.subr.mxu0 0.0
  %1287 = vmatpush1.msra.mxu0 %v1222
  %1288 = vmatprep.subr.mxu0 0.0
  %1289 = vmatpush1.msra.mxu0 %v1223
  %1290 = vmatprep.subr.mxu0 0.0
  %1291 = vmatpush1.msra.mxu0 %v1224
  %1292 = vmatprep.subr.mxu0 0.0
  %1293 = vmatpush1.msra.mxu0 %v1225
  %1294 = vmatprep.subr.mxu0 0.0
  %1295 = vmatpush1.msra.mxu0 0.0
  %1296 = vmatprep.subr.mxu0 0.0
  %1297 = vmatpush1.msra.mxu0 0.0
  %1298 = vmatprep.subr.mxu0 0.0
  %1299 = vmatpush1.msra.mxu0 0.0
  %1300 = vmatprep.subr.mxu0 0.0
  %1301 = vmatpush1.msra.mxu0 0.0
  %1302 = vmatprep.subr.mxu0 0.0
  %1303 = vmatpush1.msra.mxu0 0.0
  %1304 = vmatprep.subr.mxu0 0.0
  %1305 = vmatpush1.msra.mxu0 0.0
  %1306 = vmatprep.subr.mxu0 0.0
  %1307 = vmatpush1.msra.mxu0 0.0
  %1308 = vmatprep.subr.mxu0 0.0
  %1309 = vmatpush1.msra.mxu0 0.0
  %1310 = vmatprep.subr.mxu0 0.0
  %1311 = vmatpush1.msra.mxu0 0.0
  %1312 = vmatprep.subr.mxu0 0.0
  %1313 = vmatpush1.msra.mxu0 0.0
  %1314 = vmatprep.subr.mxu0 0.0
  %1315 = vmatpush1.msra.mxu0 0.0
  %1316 = vmatprep.subr.mxu0 0.0
  %1317 = vmatpush1.msra.mxu0 0.0
  %1318 = vmatprep.subr.mxu0 0.0
  %1319 = vmatpush1.msra.mxu0 0.0
  %1320 = vmatprep.subr.mxu0 0.0
  %1321 = vmatpush1.msra.mxu0 0.0
  %1322 = vmatprep.subr.mxu0 0.0
  %1323 = vmatpush1.msra.mxu0 0.0
  %1324 = vmatprep.subr.mxu0 0.0
  %1325 = vmatpush1.msra.mxu0 0.0
  %1326 = vmatprep.subr.mxu0 0.0
  %1327 = vmatpush1.msra.mxu0 0.0
  %1328 = vmatprep.subr.mxu0 0.0
  %1329 = vmatpush1.msra.mxu0 0.0
  %1330 = vmatprep.subr.mxu0 0.0
  %1331 = vmatpush1.msra.mxu0 0.0
  %1332 = vmatprep.subr.mxu0 0.0
  %1333 = vmatpush1.msra.mxu0 0.0
  %1334 = vmatprep.mubr.f32.mxu0 0.0
  %1335 = vmatmul.mubr.f32.gmra.mrb[0].mxu0 %v1268
  %v1336 = vpop.f32.mrb[0].mxu0
  %v1337 = vadd.f32 %v1266, %v1336
  %v1338 = vpop.f32.mrb[0].mxu0
  %1339 = vdwg.mxu0
  %v1340 = vld [vmem:[%s1 + $0x360] sm:$0xff]
  %v1341 = vld [vmem:[%s1 + $0x368] sm:$0xff]
  %v1342 = vld [vmem:[%s1 + $0x370] sm:$0xff]
  %v1343 = vld [vmem:[%s1 + $0x378] sm:$0xff]
  %v1344 = vld [vmem:[%s1 + $0x380] sm:$0x1]
  %v1345 = vmax.f32 %v1337, 0.0
  %v1346 = vlaneseq
  %v1347 = vshrl.u32 %v1346, 7
  %v1348 = vsub.s32 0, %v1347
  %v1349 = vrot.slane %v1344, %v1348
  %v1351 = vsel %vm64, %v1345, 0
  %1353 = vmatprep.subr.mxu0 0.0
  %1354 = vmatpush1.msra.mxu0 %v1340
  %1355 = vmatprep.subr.mxu0 0.0
  %1356 = vmatpush1.msra.mxu0 %v1341
  %1357 = vmatprep.subr.mxu0 0.0
  %1358 = vmatpush1.msra.mxu0 %v1342
  %1359 = vmatprep.subr.mxu0 0.0
  %1360 = vmatpush1.msra.mxu0 %v1343
  %1361 = vmatprep.subr.mxu0 0.0
  %1362 = vmatpush1.msra.mxu0 0.0
  %1363 = vmatprep.subr.mxu0 0.0
  %1364 = vmatpush1.msra.mxu0 0.0
  %1365 = vmatprep.subr.mxu0 0.0
  %1366 = vmatpush1.msra.mxu0 0.0
  %1367 = vmatprep.subr.mxu0 0.0
  %1368 = vmatpush1.msra.mxu0 0.0
  %1369 = vmatprep.subr.mxu0 0.0
  %1370 = vmatpush1.msra.mxu0 0.0
  %1371 = vmatprep.subr.mxu0 0.0
  %1372 = vmatpush1.msra.mxu0 0.0
  %1373 = vmatprep.subr.mxu0 0.0
  %1374 = vmatpush1.msra.mxu0 0.0
  %1375 = vmatprep.subr.mxu0 0.0
  %1376 = vmatpush1.msra.mxu0 0.0
  %1377 = vmatprep.subr.mxu0 0.0
  %1378 = vmatpush1.msra.mxu0 0.0
  %1379 = vmatprep.subr.mxu0 0.0
  %1380 = vmatpush1.msra.mxu0 0.0
  %1381 = vmatprep.subr.mxu0 0.0
  %1382 = vmatpush1.msra.mxu0 0.0
  %1383 = vmatprep.subr.mxu0 0.0
  %1384 = vmatpush1.msra.mxu0 0.0
  %1385 = vmatprep.subr.mxu0 0.0
  %1386 = vmatpush1.msra.mxu0 0.0
  %1387 = vmatprep.subr.mxu0 0.0
  %1388 = vmatpush1.msra.mxu0 0.0
  %1389 = vmatprep.subr.mxu0 0.0
  %1390 = vmatpush1.msra.mxu0 0.0
  %1391 = vmatprep.subr.mxu0 0.0
  %1392 = vmatpush1.msra.mxu0 0.0
  %1393 = vmatprep.subr.mxu0 0.0
  %1394 = vmatpush1.msra.mxu0 0.0
  %1395 = vmatprep.subr.mxu0 0.0
  %1396 = vmatpush1.msra.mxu0 0.0
  %1397 = vmatprep.subr.mxu0 0.0
  %1398 = vmatpush1.msra.mxu0 0.0
  %1399 = vmatprep.subr.mxu0 0.0
  %1400 = vmatpush1.msra.mxu0 0.0
  %1401 = vmatprep.subr.mxu0 0.0
  %1402 = vmatpush1.msra.mxu0 0.0
  %1403 = vmatprep.subr.mxu0 0.0
  %1404 = vmatpush1.msra.mxu0 0.0
  %1405 = vmatprep.subr.mxu0 0.0
  %1406 = vmatpush1.msra.mxu0 0.0
  %1407 = vmatprep.subr.mxu0 0.0
  %1408 = vmatpush1.msra.mxu0 0.0
  %1409 = vmatprep.subr.mxu0 0.0
  %1410 = vmatpush1.msra.mxu0 0.0
  %1411 = vmatprep.subr.mxu0 0.0
  %1412 = vmatpush1.msra.mxu0 0.0
  %1413 = vmatprep.subr.mxu0 0.0
  %1414 = vmatpush1.msra.mxu0 0.0
  %1415 = vmatprep.subr.mxu0 0.0
  %1416 = vmatpush1.msra.mxu0 0.0
  %1417 = vmatprep.mubr.f32.mxu0 0.0
  %1418 = vmatmul.mubr.f32.gmra.mrb[0].mxu0 %v1351
  %v1419 = vpop.f32.mrb[0].mxu0
  %v1420 = vadd.f32 %v1349, %v1419
  %v1421 = vpop.f32.mrb[0].mxu0
  %1422 = vdwg.mxu0
  %v1423 = vadd.f32 %v1420, %v1213
  %v1424 = vld [vmem:[%s1 + $0x388] sm:$0xff]
  %v1425 = vld [vmem:[%s1 + $0x390] sm:$0xff]
  %v1426 = vld [vmem:[%s1 + $0x398] sm:$0xff]
  %v1427 = vld [vmem:[%s1 + $0x3a0] sm:$0xff]
  %v1428 = vld [vmem:[%s1 + $0x3a8] sm:$0xff]
  %v1429 = vld [vmem:[%s1 + $0x3b0] sm:$0xff]
  %v1430 = vld [vmem:[%s1 + $0x3b8] sm:$0xff]
  %v1431 = vld [vmem:[%s1 + $0x3c0] sm:$0xff]
  %v1432 = vld [vmem:[%s1 + $0x3c8] sm:$0xff]
  %v1433 = vld [vmem:[%s1 + $0x3d0] sm:$0xff]
  %v1434 = vld [vmem:[%s1 + $0x3d8] sm:$0xff]
  %v1435 = vld [vmem:[%s1 + $0x3e0] sm:$0xff]
  %v1436 = vld [vmem:[%s1 + $0x3e8] sm:$0x1]
  %v1438 = vrot.slane %v1423, 7
  %v1440 = vsel %vm26, 0.0, %v1438
  %v1441 = vsel %vm400, %v1440, 0.0
  %v1443 = vrot.slane %v1441, 1
  %1444 = vrot.lane.b32.xlu0 %v1443, 32
  %v1445 = vpop.permute.xlu0 %1444
  %v1447 = vrot.slane %v1441, 2
  %1448 = vrot.lane.b32.xlu0 %v1447, 64
  %v1449 = vpop.permute.xlu0 %1448
  %v1451 = vsel %vm64, %v1441, %v1445
  %v1452 = vsel %vm262, %v1451, %v1449
  %v1453 = vrot.slane %v1423, 3
  %v1455 = vsel %vm26, 0.0, %v1453
  %v1456 = vsel %vm400, %v1455, 0.0
  %v1458 = vrot.slane %v1456, 1
  %1459 = vrot.lane.b32.xlu0 %v1458, 32
  %v1460 = vpop.permute.xlu0 %1459
  %v1462 = vrot.slane %v1456, 2
  %1463 = vrot.lane.b32.xlu0 %v1462, 64
  %v1464 = vpop.permute.xlu0 %1463
  %v1466 = vsel %vm64, %v1456, %v1460
  %v1467 = vsel %vm262, %v1466, %v1464
  %v1469 = vrot.slane %v1467, 4
  %v1471 = vsel %vm924, %v1452, %v1469
  %v1472 = vlaneseq
  %v1473 = vshrl.u32 %v1472, 7
  %v1474 = vsub.s32 0, %v1473
  %v1475 = vrot.slane %v1436, %v1474
  %v1477 = vsel %vm264, %v1471, 0
  %1479 = vmatprep.subr.mxu0 0.0
  %1480 = vmatpush1.msra.mxu0 %v1424
  %1481 = vmatprep.subr.mxu0 0.0
  %1482 = vmatpush1.msra.mxu0 %v1425
  %1483 = vmatprep.subr.mxu0 0.0
  %1484 = vmatpush1.msra.mxu0 %v1426
  %1485 = vmatprep.subr.mxu0 0.0
  %1486 = vmatpush1.msra.mxu0 %v1427
  %1487 = vmatprep.subr.mxu0 0.0
  %1488 = vmatpush1.msra.mxu0 %v1428
  %1489 = vmatprep.subr.mxu0 0.0
  %1490 = vmatpush1.msra.mxu0 %v1429
  %1491 = vmatprep.subr.mxu0 0.0
  %1492 = vmatpush1.msra.mxu0 %v1430
  %1493 = vmatprep.subr.mxu0 0.0
  %1494 = vmatpush1.msra.mxu0 %v1431
  %1495 = vmatprep.subr.mxu0 0.0
  %1496 = vmatpush1.msra.mxu0 %v1432
  %1497 = vmatprep.subr.mxu0 0.0
  %1498 = vmatpush1.msra.mxu0 %v1433
  %1499 = vmatprep.subr.mxu0 0.0
  %1500 = vmatpush1.msra.mxu0 %v1434
  %1501 = vmatprep.subr.mxu0 0.0
  %1502 = vmatpush1.msra.mxu0 %v1435
  %1503 = vmatprep.subr.mxu0 0.0
  %1504 = vmatpush1.msra.mxu0 0.0
  %1505 = vmatprep.subr.mxu0 0.0
  %1506 = vmatpush1.msra.mxu0 0.0
  %1507 = vmatprep.subr.mxu0 0.0
  %1508 = vmatpush1.msra.mxu0 0.0
  %1509 = vmatprep.subr.mxu0 0.0
  %1510 = vmatpush1.msra.mxu0 0.0
  %1511 = vmatprep.subr.mxu0 0.0
  %1512 = vmatpush1.msra.mxu0 0.0
  %1513 = vmatprep.subr.mxu0 0.0
  %1514 = vmatpush1.msra.mxu0 0.0
  %1515 = vmatprep.subr.mxu0 0.0
  %1516 = vmatpush1.msra.mxu0 0.0
  %1517 = vmatprep.subr.mxu0 0.0
  %1518 = vmatpush1.msra.mxu0 0.0
  %1519 = vmatprep.subr.mxu0 0.0
  %1520 = vmatpush1.msra.mxu0 0.0
  %1521 = vmatprep.subr.mxu0 0.0
  %1522 = vmatpush1.msra.mxu0 0.0
  %1523 = vmatprep.subr.mxu0 0.0
  %1524 = vmatpush1.msra.mxu0 0.0
  %1525 = vmatprep.subr.mxu0 0.0
  %1526 = vmatpush1.msra.mxu0 0.0
  %1527 = vmatprep.subr.mxu0 0.0
  %1528 = vmatpush1.msra.mxu0 0.0
  %1529 = vmatprep.subr.mxu0 0.0
  %1530 = vmatpush1.msra.mxu0 0.0
  %1531 = vmatprep.subr.mxu0 0.0
  %1532 = vmatpush1.msra.mxu0 0.0
  %1533 = vmatprep.subr.mxu0 0.0
  %1534 = vmatpush1.msra.mxu0 0.0
  %1535 = vmatprep.subr.mxu0 0.0
  %1536 = vmatpush1.msra.mxu0 0.0
  %1537 = vmatprep.subr.mxu0 0.0
  %1538 = vmatpush1.msra.mxu0 0.0
  %1539 = vmatprep.subr.mxu0 0.0
  %1540 = vmatpush1.msra.mxu0 0.0
  %1541 = vmatprep.subr.mxu0 0.0
  %1542 = vmatpush1.msra.mxu0 0.0
  %1543 = vmatprep.mubr.f32.mxu0 0.0
  %1544 = vmatmul.mubr.f32.gmra.mrb[0].mxu0 %v1477
  %v1545 = vpop.f32.mrb[0].mxu0
  %v1546 = vadd.f32 %v1475, %v1545
  %v1547 = vpop.f32.mrb[0].mxu0
  %1548 = vdwg.mxu0
  %v1549 = vlaneseq
  %v1550 = vand.u32 %v1549, 127
  %v1551 = vld [vmem:[%s1 + $0x8b8] sm:$0xff]
  %v1552 = vld [vmem:[%s1 + $0x8c0] sm:$0xff]
  %v1553 = vld [vmem:[%s1 + $0x8c8] sm:$0xff]
  %v1554 = vld [vmem:[%s1 + $0x8d0] sm:$0xff]
  %v1555 = vld [vmem:[%s1 + $0x8f8] sm:$0x1]
  %v1556 = vld [vmem:[%s1 + $0x838] sm:$0xff]
  %v1557 = vld [vmem:[%s1 + $0x840] sm:$0xff]
  %v1558 = vld [vmem:[%s1 + $0x848] sm:$0xff]
  %v1559 = vld [vmem:[%s1 + $0x850] sm:$0xff]
  %v1560 = vld [vmem:[%s1 + $0x858] sm:$0xff]
  %v1561 = vld [vmem:[%s1 + $0x860] sm:$0xff]
  %v1562 = vld [vmem:[%s1 + $0x868] sm:$0xff]
  %v1563 = vld [vmem:[%s1 + $0x870] sm:$0xff]
  %v1565 = vsel %vm64, %v1546, 0
  %1567 = vmatprep.subr.mxu0 0.0
  %1568 = vmatpush1.msra.mxu0 %v1551
  %1569 = vmatprep.subr.mxu0 0.0
  %1570 = vmatpush1.msra.mxu0 %v1552
  %1571 = vmatprep.subr.mxu0 0.0
  %1572 = vmatpush1.msra.mxu0 %v1553
  %1573 = vmatprep.subr.mxu0 0.0
  %1574 = vmatpush1.msra.mxu0 %v1554
  %1575 = vmatprep.subr.mxu0 0.0
  %1576 = vmatpush1.msra.mxu0 0.0
  %1577 = vmatprep.subr.mxu0 0.0
  %1578 = vmatpush1.msra.mxu0 0.0
  %1579 = vmatprep.subr.mxu0 0.0
  %1580 = vmatpush1.msra.mxu0 0.0
  %1581 = vmatprep.subr.mxu0 0.0
  %1582 = vmatpush1.msra.mxu0 0.0
  %1583 = vmatprep.subr.mxu0 0.0
  %1584 = vmatpush1.msra.mxu0 0.0
  %1585 = vmatprep.subr.mxu0 0.0
  %1586 = vmatpush1.msra.mxu0 0.0
  %1587 = vmatprep.subr.mxu0 0.0
  %1588 = vmatpush1.msra.mxu0 0.0
  %1589 = vmatprep.subr.mxu0 0.0
  %1590 = vmatpush1.msra.mxu0 0.0
  %1591 = vmatprep.subr.mxu0 0.0
  %1592 = vmatpush1.msra.mxu0 0.0
  %1593 = vmatprep.subr.mxu0 0.0
  %1594 = vmatpush1.msra.mxu0 0.0
  %1595 = vmatprep.subr.mxu0 0.0
  %1596 = vmatpush1.msra.mxu0 0.0
  %1597 = vmatprep.subr.mxu0 0.0
  %1598 = vmatpush1.msra.mxu0 0.0
  %1599 = vmatprep.subr.mxu0 0.0
  %1600 = vmatpush1.msra.mxu0 0.0
  %1601 = vmatprep.subr.mxu0 0.0
  %1602 = vmatpush1.msra.mxu0 0.0
  %1603 = vmatprep.subr.mxu0 0.0
  %1604 = vmatpush1.msra.mxu0 0.0
  %1605 = vmatprep.subr.mxu0 0.0
  %1606 = vmatpush1.msra.mxu0 0.0
  %1607 = vmatprep.subr.mxu0 0.0
  %1608 = vmatpush1.msra.mxu0 0.0
  %1609 = vmatprep.subr.mxu0 0.0
  %1610 = vmatpush1.msra.mxu0 0.0
  %1611 = vmatprep.subr.mxu0 0.0
  %1612 = vmatpush1.msra.mxu0 0.0
  %1613 = vmatprep.subr.mxu0 0.0
  %1614 = vmatpush1.msra.mxu0 0.0
  %1615 = vmatprep.subr.mxu0 0.0
  %1616 = vmatpush1.msra.mxu0 0.0
  %1617 = vmatprep.subr.mxu0 0.0
  %1618 = vmatpush1.msra.mxu0 0.0
  %1619 = vmatprep.subr.mxu0 0.0
  %1620 = vmatpush1.msra.mxu0 0.0
  %1621 = vmatprep.subr.mxu0 0.0
  %1622 = vmatpush1.msra.mxu0 0.0
  %1623 = vmatprep.subr.mxu0 0.0
  %1624 = vmatpush1.msra.mxu0 0.0
  %1625 = vmatprep.subr.mxu0 0.0
  %1626 = vmatpush1.msra.mxu0 0.0
  %1627 = vmatprep.subr.mxu0 0.0
  %1628 = vmatpush1.msra.mxu0 0.0
  %1629 = vmatprep.subr.mxu0 0.0
  %1630 = vmatpush1.msra.mxu0 0.0
  %1631 = vmatprep.mubr.f32.mxu0 0.0
  %1632 = vmatmul.mubr.f32.gmra.mrb[0].mxu0 %v1565
  %v1633 = vpop.f32.mrb[0].mxu0
  %v1634 = vadd.f32 0.0, %v1633
  %v1635 = vpop.f32.mrb[0].mxu0
  %1636 = vdwg.mxu0
  %v1637 = vmul.f32 %v1634, 2.0
  %v1638 = vlaneseq
  %v1639 = vshrl.u32 %v1638, 7
  %v1640 = vsub.s32 0, %v1639
  %v1641 = vrot.slane %v1555, %v1640
  %v1642 = vsub.f32 %v1641, %v1637
  %v1643 = vsel %vm262, %v1642, inf
  %1644 = vmin.xlane.f32.xlu0 %v1643
  %v1645 = vpop.xlane.xlu0 %1644
  %vm1646 = vcmp.le.f32.partialorder %v1642, %v1645
  %v1647 = vsel %vm1646, %v1550, 64
  %v1648 = vsel %vm262, %v1647, 2147483647
  %v1649 = vand.u32 %v1648, 65535
  %v1650 = vshra.s32 %v1648, 16
  %v1651 = vcvt.s32.f32 %v1649
  %v1652 = vcvt.s32.f32 %v1650
  %1653 = vmin.xlane.f32.xlu0 %v1652
  %v1654 = vpop.xlane.xlu0 %1653
  %vm1655 = vcmp.eq.f32.partialorder %v1652, %v1654
  %v1656 = vsel %vm1655, %v1651, inf
  %1657 = vmin.xlane.f32.xlu0 %v1656
  %v1658 = vpop.xlane.xlu0 %1657
  %v1659 = vcvt.f32.s32 %v1658
  %v1660 = vcvt.f32.s32 %v1654
  %v1661 = vshll.u32 %v1660, 16
  %v1662 = vadd.s32 %v1661, %v1659
  %vm1663 = vcmp.eq.s32.totalorder %v1550, %v1662
  %v1664 = vsel %vm1663, 1, 0
  %v1665 = vcvt.s32.f32 %v1664
  %v1667 = vsel %vm262, %v1665, 0
  %1669 = vmatprep.subr.mxu0 0.0
  %1670 = vmatpush1.msra.mxu0 %v1556
  %1671 = vmatprep.subr.mxu0 0.0
  %1672 = vmatpush1.msra.mxu0 %v1557
  %1673 = vmatprep.subr.mxu0 0.0
  %1674 = vmatpush1.msra.mxu0 %v1558
  %1675 = vmatprep.subr.mxu0 0.0
  %1676 = vmatpush1.msra.mxu0 %v1559
  %1677 = vmatprep.subr.mxu0 0.0
  %1678 = vmatpush1.msra.mxu0 %v1560
  %1679 = vmatprep.subr.mxu0 0.0
  %1680 = vmatpush1.msra.mxu0 %v1561
  %1681 = vmatprep.subr.mxu0 0.0
  %1682 = vmatpush1.msra.mxu0 %v1562
  %1683 = vmatprep.subr.mxu0 0.0
  %1684 = vmatpush1.msra.mxu0 %v1563
  %1685 = vmatprep.subr.mxu0 0.0
  %1686 = vmatpush1.msra.mxu0 0.0
  %1687 = vmatprep.subr.mxu0 0.0
  %1688 = vmatpush1.msra.mxu0 0.0
  %1689 = vmatprep.subr.mxu0 0.0
  %1690 = vmatpush1.msra.mxu0 0.0
  %1691 = vmatprep.subr.mxu0 0.0
  %1692 = vmatpush1.msra.mxu0 0.0
  %1693 = vmatprep.subr.mxu0 0.0
  %1694 = vmatpush1.msra.mxu0 0.0
  %1695 = vmatprep.subr.mxu0 0.0
  %1696 = vmatpush1.msra.mxu0 0.0
  %1697 = vmatprep.subr.mxu0 0.0
  %1698 = vmatpush1.msra.mxu0 0.0
  %1699 = vmatprep.subr.mxu0 0.0
  %1700 = vmatpush1.msra.mxu0 0.0
  %1701 = vmatprep.subr.mxu0 0.0
  %1702 = vmatpush1.msra.mxu0 0.0
  %1703 = vmatprep.subr.mxu0 0.0
  %1704 = vmatpush1.msra.mxu0 0.0
  %1705 = vmatprep.subr.mxu0 0.0
  %1706 = vmatpush1.msra.mxu0 0.0
  %1707 = vmatprep.subr.mxu0 0.0
  %1708 = vmatpush1.msra.mxu0 0.0
  %1709 = vmatprep.subr.mxu0 0.0
  %1710 = vmatpush1.msra.mxu0 0.0
  %1711 = vmatprep.subr.mxu0 0.0
  %1712 = vmatpush1.msra.mxu0 0.0
  %1713 = vmatprep.subr.mxu0 0.0
  %1714 = vmatpush1.msra.mxu0 0.0
  %1715 = vmatprep.subr.mxu0 0.0
  %1716 = vmatpush1.msra.mxu0 0.0
  %1717 = vmatprep.subr.mxu0 0.0
  %1718 = vmatpush1.msra.mxu0 0.0
  %1719 = vmatprep.subr.mxu0 0.0
  %1720 = vmatpush1.msra.mxu0 0.0
  %1721 = vmatprep.subr.mxu0 0.0
  %1722 = vmatpush1.msra.mxu0 0.0
  %1723 = vmatprep.subr.mxu0 0.0
  %1724 = vmatpush1.msra.mxu0 0.0
  %1725 = vmatprep.subr.mxu0 0.0
  %1726 = vmatpush1.msra.mxu0 0.0
  %1727 = vmatprep.subr.mxu0 0.0
  %1728 = vmatpush1.msra.mxu0 0.0
  %1729 = vmatprep.subr.mxu0 0.0
  %1730 = vmatpush1.msra.mxu0 0.0
  %1731 = vmatprep.subr.mxu0 0.0
  %1732 = vmatpush1.msra.mxu0 0.0
  %1733 = vmatprep.mubr.f32.mxu0 0.0
  %1734 = vmatmul.mubr.f32.gmra.mrb[0].mxu0 %v1667
  %v1735 = vpop.f32.mrb[0].mxu0
  %v1736 = vadd.f32 0.0, %v1735
  %v1737 = vpop.f32.mrb[0].mxu0
  %1738 = vdwg.mxu0
  %v1739 = vsub.f32 %v1546, %v1736
  %v1740 = vmul.f32 %v1739, %v1739
  %v1741 = vsel %vm64, %v1740, 0.0
  %1742 = vadd.xlane.f32.xlu0 %v1741
  %v1743 = vpop.xlane.xlu0 %1742
  %v1744 = vrot.slane %v1743, 4
  %v1745 = vadd.f32 %v1743, %v1744
  %v1746 = vrot.slane %v1745, 2
  %v1747 = vadd.f32 %v1745, %v1746
  %v1748 = vrot.slane %v1747, 1
  %v1749 = vadd.f32 %v1747, %v1748
  %s1750 = vtos %v1749
  %v1751 = vstv %s1750
  %v1752 = vsel %vm262, %v1665, 0.0
  %v1753 = vrot.slane %v1752, 4
  %v1754 = vadd.f32 %v1752, %v1753
  %v1755 = vrot.slane %v1754, 2
  %v1756 = vadd.f32 %v1754, %v1755
  %v1757 = vrot.slane %v1756, 1
  %v1758 = vadd.f32 %v1756, %v1757
  %v1759 = vadd.f32 %v1736, 0.0
  %v1760 = vld [vmem:[%s1 + $0x8d8] sm:$0xff]
  %v1761 = vld [vmem:[%s1 + $0x8e0] sm:$0xff]
  %v1762 = vld [vmem:[%s1 + $0x8e8] sm:$0xff]
  %v1763 = vld [vmem:[%s1 + $0x8f0] sm:$0xff]
  %v1764 = vld [vmem:[%s1 + $0x8f9] sm:$0x1]
  %v1765 = vld [vmem:[%s1 + $0x878] sm:$0xff]
  %v1766 = vld [vmem:[%s1 + $0x880] sm:$0xff]
  %v1767 = vld [vmem:[%s1 + $0x888] sm:$0xff]
  %v1768 = vld [vmem:[%s1 + $0x890] sm:$0xff]
  %v1769 = vld [vmem:[%s1 + $0x898] sm:$0xff]
  %v1770 = vld [vmem:[%s1 + $0x8a0] sm:$0xff]
  %v1771 = vld [vmem:[%s1 + $0x8a8] sm:$0xff]
  %v1772 = vld [vmem:[%s1 + $0x8b0] sm:$0xff]
  %v1774 = vsel %vm64, %v1739, 0
  %1776 = vmatprep.subr.mxu0 0.0
  %1777 = vmatpush1.msra.mxu0 %v1760
  %1778 = vmatprep.subr.mxu0 0.0
  %1779 = vmatpush1.msra.mxu0 %v1761
  %1780 = vmatprep.subr.mxu0 0.0
  %1781 = vmatpush1.msra.mxu0 %v1762
  %1782 = vmatprep.subr.mxu0 0.0
  %1783 = vmatpush1.msra.mxu0 %v1763
  %1784 = vmatprep.subr.mxu0 0.0
  %1785 = vmatpush1.msra.mxu0 0.0
  %1786 = vmatprep.subr.mxu0 0.0
  %1787 = vmatpush1.msra.mxu0 0.0
  %1788 = vmatprep.subr.mxu0 0.0
  %1789 = vmatpush1.msra.mxu0 0.0
  %1790 = vmatprep.subr.mxu0 0.0
  %1791 = vmatpush1.msra.mxu0 0.0
  %1792 = vmatprep.subr.mxu0 0.0
  %1793 = vmatpush1.msra.mxu0 0.0
  %1794 = vmatprep.subr.mxu0 0.0
  %1795 = vmatpush1.msra.mxu0 0.0
  %1796 = vmatprep.subr.mxu0 0.0
  %1797 = vmatpush1.msra.mxu0 0.0
  %1798 = vmatprep.subr.mxu0 0.0
  %1799 = vmatpush1.msra.mxu0 0.0
  %1800 = vmatprep.subr.mxu0 0.0
  %1801 = vmatpush1.msra.mxu0 0.0
  %1802 = vmatprep.subr.mxu0 0.0
  %1803 = vmatpush1.msra.mxu0 0.0
  %1804 = vmatprep.subr.mxu0 0.0
  %1805 = vmatpush1.msra.mxu0 0.0
  %1806 = vmatprep.subr.mxu0 0.0
  %1807 = vmatpush1.msra.mxu0 0.0
  %1808 = vmatprep.subr.mxu0 0.0
  %1809 = vmatpush1.msra.mxu0 0.0
  %1810 = vmatprep.subr.mxu0 0.0
  %1811 = vmatpush1.msra.mxu0 0.0
  %1812 = vmatprep.subr.mxu0 0.0
  %1813 = vmatpush1.msra.mxu0 0.0
  %1814 = vmatprep.subr.mxu0 0.0
  %1815 = vmatpush1.msra.mxu0 0.0
  %1816 = vmatprep.subr.mxu0 0.0
  %1817 = vmatpush1.msra.mxu0 0.0
  %1818 = vmatprep.subr.mxu0 0.0
  %1819 = vmatpush1.msra.mxu0 0.0
  %1820 = vmatprep.subr.mxu0 0.0
  %1821 = vmatpush1.msra.mxu0 0.0
  %1822 = vmatprep.subr.mxu0 0.0
  %1823 = vmatpush1.msra.mxu0 0.0
  %1824 = vmatprep.subr.mxu0 0.0
  %1825 = vmatpush1.msra.mxu0 0.0
  %1826 = vmatprep.subr.mxu0 0.0
  %1827 = vmatpush1.msra.mxu0 0.0
  %1828 = vmatprep.subr.mxu0 0.0
  %1829 = vmatpush1.msra.mxu0 0.0
  %1830 = vmatprep.subr.mxu0 0.0
  %1831 = vmatpush1.msra.mxu0 0.0
  %1832 = vmatprep.subr.mxu0 0.0
  %1833 = vmatpush1.msra.mxu0 0.0
  %1834 = vmatprep.subr.mxu0 0.0
  %1835 = vmatpush1.msra.mxu0 0.0
  %1836 = vmatprep.subr.mxu0 0.0
  %1837 = vmatpush1.msra.mxu0 0.0
  %1838 = vmatprep.subr.mxu0 0.0
  %1839 = vmatpush1.msra.mxu0 0.0
  %1840 = vmatprep.mubr.f32.mxu0 0.0
  %1841 = vmatmul.mubr.f32.gmra.mrb[0].mxu0 %v1774
  %v1842 = vpop.f32.mrb[0].mxu0
  %v1843 = vadd.f32 0.0, %v1842
  %v1844 = vpop.f32.mrb[0].mxu0
  %1845 = vdwg.mxu0
  %v1846 = vmul.f32 %v1843, 2.0
  %v1847 = vlaneseq
  %v1848 = vshrl.u32 %v1847, 7
  %v1849 = vsub.s32 0, %v1848
  %v1850 = vrot.slane %v1764, %v1849
  %v1851 = vsub.f32 %v1850, %v1846
  %v1852 = vsel %vm262, %v1851, inf
  %1853 = vmin.xlane.f32.xlu0 %v1852
  %v1854 = vpop.xlane.xlu0 %1853
  %vm1855 = vcmp.le.f32.partialorder %v1851, %v1854
  %v1856 = vsel %vm1855, %v1550, 64
  %v1857 = vsel %vm262, %v1856, 2147483647
  %v1858 = vand.u32 %v1857, 65535
  %v1859 = vshra.s32 %v1857, 16
  %v1860 = vcvt.s32.f32 %v1858
  %v1861 = vcvt.s32.f32 %v1859
  %1862 = vmin.xlane.f32.xlu0 %v1861
  %v1863 = vpop.xlane.xlu0 %1862
  %vm1864 = vcmp.eq.f32.partialorder %v1861, %v1863
  %v1865 = vsel %vm1864, %v1860, inf
  %1866 = vmin.xlane.f32.xlu0 %v1865
  %v1867 = vpop.xlane.xlu0 %1866
  %v1868 = vcvt.f32.s32 %v1867
  %v1869 = vcvt.f32.s32 %v1863
  %v1870 = vshll.u32 %v1869, 16
  %v1871 = vadd.s32 %v1870, %v1868
  %vm1872 = vcmp.eq.s32.totalorder %v1550, %v1871
  %v1873 = vsel %vm1872, 1, 0
  %v1874 = vcvt.s32.f32 %v1873
  %v1876 = vsel %vm262, %v1874, 0
  %1878 = vmatprep.subr.mxu0 0.0
  %1879 = vmatpush1.msra.mxu0 %v1765
  %1880 = vmatprep.subr.mxu0 0.0
  %1881 = vmatpush1.msra.mxu0 %v1766
  %1882 = vmatprep.subr.mxu0 0.0
  %1883 = vmatpush1.msra.mxu0 %v1767
  %1884 = vmatprep.subr.mxu0 0.0
  %1885 = vmatpush1.msra.mxu0 %v1768
  %1886 = vmatprep.subr.mxu0 0.0
  %1887 = vmatpush1.msra.mxu0 %v1769
  %1888 = vmatprep.subr.mxu0 0.0
  %1889 = vmatpush1.msra.mxu0 %v1770
  %1890 = vmatprep.subr.mxu0 0.0
  %1891 = vmatpush1.msra.mxu0 %v1771
  %1892 = vmatprep.subr.mxu0 0.0
  %1893 = vmatpush1.msra.mxu0 %v1772
  %1894 = vmatprep.subr.mxu0 0.0
  %1895 = vmatpush1.msra.mxu0 0.0
  %1896 = vmatprep.subr.mxu0 0.0
  %1897 = vmatpush1.msra.mxu0 0.0
  %1898 = vmatprep.subr.mxu0 0.0
  %1899 = vmatpush1.msra.mxu0 0.0
  %1900 = vmatprep.subr.mxu0 0.0
  %1901 = vmatpush1.msra.mxu0 0.0
  %1902 = vmatprep.subr.mxu0 0.0
  %1903 = vmatpush1.msra.mxu0 0.0
  %1904 = vmatprep.subr.mxu0 0.0
  %1905 = vmatpush1.msra.mxu0 0.0
  %1906 = vmatprep.subr.mxu0 0.0
  %1907 = vmatpush1.msra.mxu0 0.0
  %1908 = vmatprep.subr.mxu0 0.0
  %1909 = vmatpush1.msra.mxu0 0.0
  %1910 = vmatprep.subr.mxu0 0.0
  %1911 = vmatpush1.msra.mxu0 0.0
  %1912 = vmatprep.subr.mxu0 0.0
  %1913 = vmatpush1.msra.mxu0 0.0
  %1914 = vmatprep.subr.mxu0 0.0
  %1915 = vmatpush1.msra.mxu0 0.0
  %1916 = vmatprep.subr.mxu0 0.0
  %1917 = vmatpush1.msra.mxu0 0.0
  %1918 = vmatprep.subr.mxu0 0.0
  %1919 = vmatpush1.msra.mxu0 0.0
  %1920 = vmatprep.subr.mxu0 0.0
  %1921 = vmatpush1.msra.mxu0 0.0
  %1922 = vmatprep.subr.mxu0 0.0
  %1923 = vmatpush1.msra.mxu0 0.0
  %1924 = vmatprep.subr.mxu0 0.0
  %1925 = vmatpush1.msra.mxu0 0.0
  %1926 = vmatprep.subr.mxu0 0.0
  %1927 = vmatpush1.msra.mxu0 0.0
  %1928 = vmatprep.subr.mxu0 0.0
  %1929 = vmatpush1.msra.mxu0 0.0
  %1930 = vmatprep.subr.mxu0 0.0
  %1931 = vmatpush1.msra.mxu0 0.0
  %1932 = vmatprep.subr.mxu0 0.0
  %1933 = vmatpush1.msra.mxu0 0.0
  %1934 = vmatprep.subr.mxu0 0.0
  %1935 = vmatpush1.msra.mxu0 0.0
  %1936 = vmatprep.subr.mxu0 0.0
  %1937 = vmatpush1.msra.mxu0 0.0
  %1938 = vmatprep.subr.mxu0 0.0
  %1939 = vmatpush1.msra.mxu0 0.0
  %1940 = vmatprep.subr.mxu0 0.0
  %1941 = vmatpush1.msra.mxu0 0.0
  %1942 = vmatprep.mubr.f32.mxu0 0.0
  %1943 = vmatmul.mubr.f32.gmra.mrb[0].mxu0 %v1876
  %v1944 = vpop.f32.mrb[0].mxu0
  %v1945 = vadd.f32 0.0, %v1944
  %v1946 = vpop.f32.mrb[0].mxu0
  %1947 = vdwg.mxu0
  %v1948 = vsub.f32 %v1739, %v1945
  %v1949 = vmul.f32 %v1948, %v1948
  %v1950 = vsel %vm64, %v1949, 0.0
  %1951 = vadd.xlane.f32.xlu0 %v1950
  %v1952 = vpop.xlane.xlu0 %1951
  %v1953 = vrot.slane %v1952, 4
  %v1954 = vadd.f32 %v1952, %v1953
  %v1955 = vrot.slane %v1954, 2
  %v1956 = vadd.f32 %v1954, %v1955
  %v1957 = vrot.slane %v1956, 1
  %v1958 = vadd.f32 %v1956, %v1957
  %s1959 = vtos %v1958
  %v1960 = vstv %s1959
  %v1961 = vsel %vm262, %v1874, 0.0
  %v1962 = vrot.slane %v1961, 4
  %v1963 = vadd.f32 %v1961, %v1962
  %v1964 = vrot.slane %v1963, 2
  %v1965 = vadd.f32 %v1963, %v1964
  %v1966 = vrot.slane %v1965, 1
  %v1967 = vadd.f32 %v1965, %v1966
  %v1968 = vadd.f32 %v1759, %v1945
  %v1969 = vld [vmem:[%s1 + $0x3f0] sm:$0xff]
  %v1970 = vld [vmem:[%s1 + $0x3f8] sm:$0xff]
  %v1971 = vld [vmem:[%s1 + $0x400] sm:$0xff]
  %v1972 = vld [vmem:[%s1 + $0x408] sm:$0xff]
  %v1973 = vld [vmem:[%s1 + $0x410] sm:$0xff]
  %v1974 = vld [vmem:[%s1 + $0x418] sm:$0xff]
  %v1975 = vld [vmem:[%s1 + $0x420] sm:$0xff]
  %v1976 = vld [vmem:[%s1 + $0x428] sm:$0xff]
  %v1977 = vld [vmem:[%s1 + $0x430] sm:$0xff]
  %v1978 = vld [vmem:[%s1 + $0x438] sm:$0xff]
  %v1979 = vld [vmem:[%s1 + $0x440] sm:$0xff]
  %v1980 = vld [vmem:[%s1 + $0x448] sm:$0xff]
  %v1981 = vld [vmem:[%s1 + $0x450] sm:$0x1]
  %v1983 = vrot.slane %v1968, 7
  %v1985 = vsel %vm26, 0.0, %v1983
  %v1986 = vsel %vm400, %v1985, 0.0
  %v1988 = vrot.slane %v1986, 1
  %1989 = vrot.lane.b32.xlu0 %v1988, 32
  %v1990 = vpop.permute.xlu0 %1989
  %v1992 = vrot.slane %v1986, 2
  %1993 = vrot.lane.b32.xlu0 %v1992, 64
  %v1994 = vpop.permute.xlu0 %1993
  %v1996 = vsel %vm64, %v1986, %v1990
  %v1997 = vsel %vm262, %v1996, %v1994
  %v1998 = vrot.slane %v1968, 3
  %v2000 = vsel %vm26, 0.0, %v1998
  %v2001 = vsel %vm400, %v2000, 0.0
  %v2003 = vrot.slane %v2001, 1
  %2004 = vrot.lane.b32.xlu0 %v2003, 32
  %v2005 = vpop.permute.xlu0 %2004
  %v2007 = vrot.slane %v2001, 2
  %2008 = vrot.lane.b32.xlu0 %v2007, 64
  %v2009 = vpop.permute.xlu0 %2008
  %v2011 = vsel %vm64, %v2001, %v2005
  %v2012 = vsel %vm262, %v2011, %v2009
  %v2014 = vrot.slane %v2012, 4
  %v2016 = vsel %vm924, %v1997, %v2014
  %v2017 = vlaneseq
  %v2018 = vshrl.u32 %v2017, 7
  %v2019 = vsub.s32 0, %v2018
  %v2020 = vrot.slane %v1981, %v2019
  %v2022 = vsel %vm264, %v2016, 0
  %2024 = vmatprep.subr.mxu0 0.0
  %2025 = vmatpush1.msra.mxu0 %v1969
  %2026 = vmatprep.subr.mxu0 0.0
  %2027 = vmatpush1.msra.mxu0 %v1970
  %2028 = vmatprep.subr.mxu0 0.0
  %2029 = vmatpush1.msra.mxu0 %v1971
  %2030 = vmatprep.subr.mxu0 0.0
  %2031 = vmatpush1.msra.mxu0 %v1972
  %2032 = vmatprep.subr.mxu0 0.0
  %2033 = vmatpush1.msra.mxu0 %v1973
  %2034 = vmatprep.subr.mxu0 0.0
  %2035 = vmatpush1.msra.mxu0 %v1974
  %2036 = vmatprep.subr.mxu0 0.0
  %2037 = vmatpush1.msra.mxu0 %v1975
  %2038 = vmatprep.subr.mxu0 0.0
  %2039 = vmatpush1.msra.mxu0 %v1976
  %2040 = vmatprep.subr.mxu0 0.0
  %2041 = vmatpush1.msra.mxu0 %v1977
  %2042 = vmatprep.subr.mxu0 0.0
  %2043 = vmatpush1.msra.mxu0 %v1978
  %2044 = vmatprep.subr.mxu0 0.0
  %2045 = vmatpush1.msra.mxu0 %v1979
  %2046 = vmatprep.subr.mxu0 0.0
  %2047 = vmatpush1.msra.mxu0 %v1980
  %2048 = vmatprep.subr.mxu0 0.0
  %2049 = vmatpush1.msra.mxu0 0.0
  %2050 = vmatprep.subr.mxu0 0.0
  %2051 = vmatpush1.msra.mxu0 0.0
  %2052 = vmatprep.subr.mxu0 0.0
  %2053 = vmatpush1.msra.mxu0 0.0
  %2054 = vmatprep.subr.mxu0 0.0
  %2055 = vmatpush1.msra.mxu0 0.0
  %2056 = vmatprep.subr.mxu0 0.0
  %2057 = vmatpush1.msra.mxu0 0.0
  %2058 = vmatprep.subr.mxu0 0.0
  %2059 = vmatpush1.msra.mxu0 0.0
  %2060 = vmatprep.subr.mxu0 0.0
  %2061 = vmatpush1.msra.mxu0 0.0
  %2062 = vmatprep.subr.mxu0 0.0
  %2063 = vmatpush1.msra.mxu0 0.0
  %2064 = vmatprep.subr.mxu0 0.0
  %2065 = vmatpush1.msra.mxu0 0.0
  %2066 = vmatprep.subr.mxu0 0.0
  %2067 = vmatpush1.msra.mxu0 0.0
  %2068 = vmatprep.subr.mxu0 0.0
  %2069 = vmatpush1.msra.mxu0 0.0
  %2070 = vmatprep.subr.mxu0 0.0
  %2071 = vmatpush1.msra.mxu0 0.0
  %2072 = vmatprep.subr.mxu0 0.0
  %2073 = vmatpush1.msra.mxu0 0.0
  %2074 = vmatprep.subr.mxu0 0.0
  %2075 = vmatpush1.msra.mxu0 0.0
  %2076 = vmatprep.subr.mxu0 0.0
  %2077 = vmatpush1.msra.mxu0 0.0
  %2078 = vmatprep.subr.mxu0 0.0
  %2079 = vmatpush1.msra.mxu0 0.0
  %2080 = vmatprep.subr.mxu0 0.0
  %2081 = vmatpush1.msra.mxu0 0.0
  %2082 = vmatprep.subr.mxu0 0.0
  %2083 = vmatpush1.msra.mxu0 0.0
  %2084 = vmatprep.subr.mxu0 0.0
  %2085 = vmatpush1.msra.mxu0 0.0
  %2086 = vmatprep.subr.mxu0 0.0
  %2087 = vmatpush1.msra.mxu0 0.0
  %2088 = vmatprep.mubr.f32.mxu0 0.0
  %2089 = vmatmul.mubr.f32.gmra.mrb[0].mxu0 %v2022
  %v2090 = vpop.f32.mrb[0].mxu0
  %v2091 = vadd.f32 %v2020, %v2090
  %v2092 = vpop.f32.mrb[0].mxu0
  %2093 = vdwg.mxu0
  %v2094 = vmax.f32 %v2091, 0.0
  %v2095 = vld [vmem:[%s1 + $0x458] sm:$0xff]
  %v2096 = vld [vmem:[%s1 + $0x460] sm:$0xff]
  %v2097 = vld [vmem:[%s1 + $0x468] sm:$0xff]
  %v2098 = vld [vmem:[%s1 + $0x470] sm:$0xff]
  %v2099 = vld [vmem:[%s1 + $0x478] sm:$0xff]
  %v2100 = vld [vmem:[%s1 + $0x480] sm:$0xff]
  %v2101 = vld [vmem:[%s1 + $0x488] sm:$0xff]
  %v2102 = vld [vmem:[%s1 + $0x490] sm:$0xff]
  %v2103 = vld [vmem:[%s1 + $0x498] sm:$0xff]
  %v2104 = vld [vmem:[%s1 + $0x4a0] sm:$0xff]
  %v2105 = vld [vmem:[%s1 + $0x4a8] sm:$0xff]
  %v2106 = vld [vmem:[%s1 + $0x4b0] sm:$0xff]
  %v2107 = vld [vmem:[%s1 + $0x4b8] sm:$0x1]
  %v2108 = vmax.f32 %v2094, 0.0
  %v2110 = vrot.slane %v2108, 5
  %v2112 = vsel %vm395, 0.0, %v2110
  %v2113 = vsel %vm37, %v2112, 0.0
  %v2115 = vrot.slane %v2113, 3
  %2116 = vrot.lane.b32.xlu0 %v2115, 32
  %v2117 = vpop.permute.xlu0 %2116
  %v2119 = vrot.slane %v2113, 6
  %v2120 = vsel %vm407, %v2119, %v1026
  %2121 = vrot.lane.b32.xlu0 %v2120, 64
  %v2122 = vpop.permute.xlu0 %2121
  %v2124 = vsel %vm64, %v2113, %v2117
  %v2125 = vsel %vm262, %v2124, %v2122
  %v2126 = vrot.slane %v2108, 1
  %v2128 = vsel %vm395, 0.0, %v2126
  %v2129 = vsel %vm37, %v2128, 0.0
  %v2131 = vrot.slane %v2129, 3
  %2132 = vrot.lane.b32.xlu0 %v2131, 32
  %v2133 = vpop.permute.xlu0 %2132
  %v2135 = vrot.slane %v2129, 6
  %v2136 = vsel %vm407, %v2135, %v1026
  %2137 = vrot.lane.b32.xlu0 %v2136, 64
  %v2138 = vpop.permute.xlu0 %2137
  %v2140 = vsel %vm64, %v2129, %v2133
  %v2141 = vsel %vm262, %v2140, %v2138
  %v2143 = vrot.slane %v2141, 4
  %v2145 = vsel %vm924, %v2125, %v2143
  %v2146 = vlaneseq
  %v2147 = vshrl.u32 %v2146, 7
  %v2148 = vsub.s32 0, %v2147
  %v2149 = vrot.slane %v2107, %v2148
  %v2151 = vsel %vm264, %v2145, 0
  %2153 = vmatprep.subr.mxu0 0.0
  %2154 = vmatpush1.msra.mxu0 %v2095
  %2155 = vmatprep.subr.mxu0 0.0
  %2156 = vmatpush1.msra.mxu0 %v2096
  %2157 = vmatprep.subr.mxu0 0.0
  %2158 = vmatpush1.msra.mxu0 %v2097
  %2159 = vmatprep.subr.mxu0 0.0
  %2160 = vmatpush1.msra.mxu0 %v2098
  %2161 = vmatprep.subr.mxu0 0.0
  %2162 = vmatpush1.msra.mxu0 %v2099
  %2163 = vmatprep.subr.mxu0 0.0
  %2164 = vmatpush1.msra.mxu0 %v2100
  %2165 = vmatprep.subr.mxu0 0.0
  %2166 = vmatpush1.msra.mxu0 %v2101
  %2167 = vmatprep.subr.mxu0 0.0
  %2168 = vmatpush1.msra.mxu0 %v2102
  %2169 = vmatprep.subr.mxu0 0.0
  %2170 = vmatpush1.msra.mxu0 %v2103
  %2171 = vmatprep.subr.mxu0 0.0
  %2172 = vmatpush1.msra.mxu0 %v2104
  %2173 = vmatprep.subr.mxu0 0.0
  %2174 = vmatpush1.msra.mxu0 %v2105
  %2175 = vmatprep.subr.mxu0 0.0
  %2176 = vmatpush1.msra.mxu0 %v2106
  %2177 = vmatprep.subr.mxu0 0.0
  %2178 = vmatpush1.msra.mxu0 0.0
  %2179 = vmatprep.subr.mxu0 0.0
  %2180 = vmatpush1.msra.mxu0 0.0
  %2181 = vmatprep.subr.mxu0 0.0
  %2182 = vmatpush1.msra.mxu0 0.0
  %2183 = vmatprep.subr.mxu0 0.0
  %2184 = vmatpush1.msra.mxu0 0.0
  %2185 = vmatprep.subr.mxu0 0.0
  %2186 = vmatpush1.msra.mxu0 0.0
  %2187 = vmatprep.subr.mxu0 0.0
  %2188 = vmatpush1.msra.mxu0 0.0
  %2189 = vmatprep.subr.mxu0 0.0
  %2190 = vmatpush1.msra.mxu0 0.0
  %2191 = vmatprep.subr.mxu0 0.0
  %2192 = vmatpush1.msra.mxu0 0.0
  %2193 = vmatprep.subr.mxu0 0.0
  %2194 = vmatpush1.msra.mxu0 0.0
  %2195 = vmatprep.subr.mxu0 0.0
  %2196 = vmatpush1.msra.mxu0 0.0
  %2197 = vmatprep.subr.mxu0 0.0
  %2198 = vmatpush1.msra.mxu0 0.0
  %2199 = vmatprep.subr.mxu0 0.0
  %2200 = vmatpush1.msra.mxu0 0.0
  %2201 = vmatprep.subr.mxu0 0.0
  %2202 = vmatpush1.msra.mxu0 0.0
  %2203 = vmatprep.subr.mxu0 0.0
  %2204 = vmatpush1.msra.mxu0 0.0
  %2205 = vmatprep.subr.mxu0 0.0
  %2206 = vmatpush1.msra.mxu0 0.0
  %2207 = vmatprep.subr.mxu0 0.0
  %2208 = vmatpush1.msra.mxu0 0.0
  %2209 = vmatprep.subr.mxu0 0.0
  %2210 = vmatpush1.msra.mxu0 0.0
  %2211 = vmatprep.subr.mxu0 0.0
  %2212 = vmatpush1.msra.mxu0 0.0
  %2213 = vmatprep.subr.mxu0 0.0
  %2214 = vmatpush1.msra.mxu0 0.0
  %2215 = vmatprep.subr.mxu0 0.0
  %2216 = vmatpush1.msra.mxu0 0.0
  %2217 = vmatprep.mubr.f32.mxu0 0.0
  %2218 = vmatmul.mubr.f32.gmra.mrb[0].mxu0 %v2151
  %v2219 = vpop.f32.mrb[0].mxu0
  %v2220 = vadd.f32 %v2149, %v2219
  %v2221 = vpop.f32.mrb[0].mxu0
  %2222 = vdwg.mxu0
  %v2223 = vld [vmem:[%s1 + $0x4c0] sm:$0xff]
  %v2224 = vld [vmem:[%s1 + $0x4c8] sm:$0xff]
  %v2225 = vld [vmem:[%s1 + $0x4d0] sm:$0xff]
  %v2226 = vld [vmem:[%s1 + $0x4d8] sm:$0xff]
  %v2227 = vld [vmem:[%s1 + $0x4e0] sm:$0x1]
  %v2228 = vmax.f32 %v2220, 0.0
  %v2229 = vlaneseq
  %v2230 = vshrl.u32 %v2229, 7
  %v2231 = vsub.s32 0, %v2230
  %v2232 = vrot.slane %v2227, %v2231
  %v2234 = vsel %vm64, %v2228, 0
  %2236 = vmatprep.subr.mxu0 0.0
  %2237 = vmatpush1.msra.mxu0 %v2223
  %2238 = vmatprep.subr.mxu0 0.0
  %2239 = vmatpush1.msra.mxu0 %v2224
  %2240 = vmatprep.subr.mxu0 0.0
  %2241 = vmatpush1.msra.mxu0 %v2225
  %2242 = vmatprep.subr.mxu0 0.0
  %2243 = vmatpush1.msra.mxu0 %v2226
  %2244 = vmatprep.subr.mxu0 0.0
  %2245 = vmatpush1.msra.mxu0 0.0
  %2246 = vmatprep.subr.mxu0 0.0
  %2247 = vmatpush1.msra.mxu0 0.0
  %2248 = vmatprep.subr.mxu0 0.0
  %2249 = vmatpush1.msra.mxu0 0.0
  %2250 = vmatprep.subr.mxu0 0.0
  %2251 = vmatpush1.msra.mxu0 0.0
  %2252 = vmatprep.subr.mxu0 0.0
  %2253 = vmatpush1.msra.mxu0 0.0
  %2254 = vmatprep.subr.mxu0 0.0
  %2255 = vmatpush1.msra.mxu0 0.0
  %2256 = vmatprep.subr.mxu0 0.0
  %2257 = vmatpush1.msra.mxu0 0.0
  %2258 = vmatprep.subr.mxu0 0.0
  %2259 = vmatpush1.msra.mxu0 0.0
  %2260 = vmatprep.subr.mxu0 0.0
  %2261 = vmatpush1.msra.mxu0 0.0
  %2262 = vmatprep.subr.mxu0 0.0
  %2263 = vmatpush1.msra.mxu0 0.0
  %2264 = vmatprep.subr.mxu0 0.0
  %2265 = vmatpush1.msra.mxu0 0.0
  %2266 = vmatprep.subr.mxu0 0.0
  %2267 = vmatpush1.msra.mxu0 0.0
  %2268 = vmatprep.subr.mxu0 0.0
  %2269 = vmatpush1.msra.mxu0 0.0
  %2270 = vmatprep.subr.mxu0 0.0
  %2271 = vmatpush1.msra.mxu0 0.0
  %2272 = vmatprep.subr.mxu0 0.0
  %2273 = vmatpush1.msra.mxu0 0.0
  %2274 = vmatprep.subr.mxu0 0.0
  %2275 = vmatpush1.msra.mxu0 0.0
  %2276 = vmatprep.subr.mxu0 0.0
  %2277 = vmatpush1.msra.mxu0 0.0
  %2278 = vmatprep.subr.mxu0 0.0
  %2279 = vmatpush1.msra.mxu0 0.0
  %2280 = vmatprep.subr.mxu0 0.0
  %2281 = vmatpush1.msra.mxu0 0.0
  %2282 = vmatprep.subr.mxu0 0.0
  %2283 = vmatpush1.msra.mxu0 0.0
  %2284 = vmatprep.subr.mxu0 0.0
  %2285 = vmatpush1.msra.mxu0 0.0
  %2286 = vmatprep.subr.mxu0 0.0
  %2287 = vmatpush1.msra.mxu0 0.0
  %2288 = vmatprep.subr.mxu0 0.0
  %2289 = vmatpush1.msra.mxu0 0.0
  %2290 = vmatprep.subr.mxu0 0.0
  %2291 = vmatpush1.msra.mxu0 0.0
  %2292 = vmatprep.subr.mxu0 0.0
  %2293 = vmatpush1.msra.mxu0 0.0
  %2294 = vmatprep.subr.mxu0 0.0
  %2295 = vmatpush1.msra.mxu0 0.0
  %2296 = vmatprep.subr.mxu0 0.0
  %2297 = vmatpush1.msra.mxu0 0.0
  %2298 = vmatprep.subr.mxu0 0.0
  %2299 = vmatpush1.msra.mxu0 0.0
  %2300 = vmatprep.mubr.f32.mxu0 0.0
  %2301 = vmatmul.mubr.f32.gmra.mrb[0].mxu0 %v2234
  %v2302 = vpop.f32.mrb[0].mxu0
  %v2303 = vadd.f32 %v2232, %v2302
  %v2304 = vpop.f32.mrb[0].mxu0
  %2305 = vdwg.mxu0
  %v2306 = vadd.f32 %v2303, %v2094
  %v2307 = vld [vmem:[%s1 + $0x4e8] sm:$0xff]
  %v2308 = vld [vmem:[%s1 + $0x4f0] sm:$0xff]
  %v2309 = vld [vmem:[%s1 + $0x4f8] sm:$0xff]
  %v2310 = vld [vmem:[%s1 + $0x500] sm:$0xff]
  %v2311 = vld [vmem:[%s1 + $0x508] sm:$0xff]
  %v2312 = vld [vmem:[%s1 + $0x510] sm:$0xff]
  %v2313 = vld [vmem:[%s1 + $0x518] sm:$0xff]
  %v2314 = vld [vmem:[%s1 + $0x520] sm:$0xff]
  %v2315 = vld [vmem:[%s1 + $0x528] sm:$0xff]
  %v2316 = vld [vmem:[%s1 + $0x530] sm:$0xff]
  %v2317 = vld [vmem:[%s1 + $0x538] sm:$0xff]
  %v2318 = vld [vmem:[%s1 + $0x540] sm:$0xff]
  %v2319 = vld [vmem:[%s1 + $0x548] sm:$0x1]
  %v2320 = vmax.f32 %v2306, 0.0
  %v2322 = vrot.slane %v2320, 7
  %v2324 = vsel %vm26, 0.0, %v2322
  %v2325 = vsel %vm400, %v2324, 0.0
  %v2327 = vrot.slane %v2325, 1
  %2328 = vrot.lane.b32.xlu0 %v2327, 32
  %v2329 = vpop.permute.xlu0 %2328
  %v2331 = vrot.slane %v2325, 2
  %2332 = vrot.lane.b32.xlu0 %v2331, 64
  %v2333 = vpop.permute.xlu0 %2332
  %v2335 = vsel %vm64, %v2325, %v2329
  %v2336 = vsel %vm262, %v2335, %v2333
  %v2337 = vrot.slane %v2320, 3
  %v2339 = vsel %vm26, 0.0, %v2337
  %v2340 = vsel %vm400, %v2339, 0.0
  %v2342 = vrot.slane %v2340, 1
  %2343 = vrot.lane.b32.xlu0 %v2342, 32
  %v2344 = vpop.permute.xlu0 %2343
  %v2346 = vrot.slane %v2340, 2
  %2347 = vrot.lane.b32.xlu0 %v2346, 64
  %v2348 = vpop.permute.xlu0 %2347
  %v2350 = vsel %vm64, %v2340, %v2344
  %v2351 = vsel %vm262, %v2350, %v2348
  %v2353 = vrot.slane %v2351, 4
  %v2355 = vsel %vm924, %v2336, %v2353
  %v2356 = vlaneseq
  %v2357 = vshrl.u32 %v2356, 7
  %v2358 = vsub.s32 0, %v2357
  %v2359 = vrot.slane %v2319, %v2358
  %v2361 = vsel %vm264, %v2355, 0
  %2363 = vmatprep.subr.mxu0 0.0
  %2364 = vmatpush1.msra.mxu0 %v2307
  %2365 = vmatprep.subr.mxu0 0.0
  %2366 = vmatpush1.msra.mxu0 %v2308
  %2367 = vmatprep.subr.mxu0 0.0
  %2368 = vmatpush1.msra.mxu0 %v2309
  %2369 = vmatprep.subr.mxu0 0.0
  %2370 = vmatpush1.msra.mxu0 %v2310
  %2371 = vmatprep.subr.mxu0 0.0
  %2372 = vmatpush1.msra.mxu0 %v2311
  %2373 = vmatprep.subr.mxu0 0.0
  %2374 = vmatpush1.msra.mxu0 %v2312
  %2375 = vmatprep.subr.mxu0 0.0
  %2376 = vmatpush1.msra.mxu0 %v2313
  %2377 = vmatprep.subr.mxu0 0.0
  %2378 = vmatpush1.msra.mxu0 %v2314
  %2379 = vmatprep.subr.mxu0 0.0
  %2380 = vmatpush1.msra.mxu0 %v2315
  %2381 = vmatprep.subr.mxu0 0.0
  %2382 = vmatpush1.msra.mxu0 %v2316
  %2383 = vmatprep.subr.mxu0 0.0
  %2384 = vmatpush1.msra.mxu0 %v2317
  %2385 = vmatprep.subr.mxu0 0.0
  %2386 = vmatpush1.msra.mxu0 %v2318
  %2387 = vmatprep.subr.mxu0 0.0
  %2388 = vmatpush1.msra.mxu0 0.0
  %2389 = vmatprep.subr.mxu0 0.0
  %2390 = vmatpush1.msra.mxu0 0.0
  %2391 = vmatprep.subr.mxu0 0.0
  %2392 = vmatpush1.msra.mxu0 0.0
  %2393 = vmatprep.subr.mxu0 0.0
  %2394 = vmatpush1.msra.mxu0 0.0
  %2395 = vmatprep.subr.mxu0 0.0
  %2396 = vmatpush1.msra.mxu0 0.0
  %2397 = vmatprep.subr.mxu0 0.0
  %2398 = vmatpush1.msra.mxu0 0.0
  %2399 = vmatprep.subr.mxu0 0.0
  %2400 = vmatpush1.msra.mxu0 0.0
  %2401 = vmatprep.subr.mxu0 0.0
  %2402 = vmatpush1.msra.mxu0 0.0
  %2403 = vmatprep.subr.mxu0 0.0
  %2404 = vmatpush1.msra.mxu0 0.0
  %2405 = vmatprep.subr.mxu0 0.0
  %2406 = vmatpush1.msra.mxu0 0.0
  %2407 = vmatprep.subr.mxu0 0.0
  %2408 = vmatpush1.msra.mxu0 0.0
  %2409 = vmatprep.subr.mxu0 0.0
  %2410 = vmatpush1.msra.mxu0 0.0
  %2411 = vmatprep.subr.mxu0 0.0
  %2412 = vmatpush1.msra.mxu0 0.0
  %2413 = vmatprep.subr.mxu0 0.0
  %2414 = vmatpush1.msra.mxu0 0.0
  %2415 = vmatprep.subr.mxu0 0.0
  %2416 = vmatpush1.msra.mxu0 0.0
  %2417 = vmatprep.subr.mxu0 0.0
  %2418 = vmatpush1.msra.mxu0 0.0
  %2419 = vmatprep.subr.mxu0 0.0
  %2420 = vmatpush1.msra.mxu0 0.0
  %2421 = vmatprep.subr.mxu0 0.0
  %2422 = vmatpush1.msra.mxu0 0.0
  %2423 = vmatprep.subr.mxu0 0.0
  %2424 = vmatpush1.msra.mxu0 0.0
  %2425 = vmatprep.subr.mxu0 0.0
  %2426 = vmatpush1.msra.mxu0 0.0
  %2427 = vmatprep.mubr.f32.mxu0 0.0
  %2428 = vmatmul.mubr.f32.gmra.mrb[0].mxu0 %v2361
  %v2429 = vpop.f32.mrb[0].mxu0
  %v2430 = vadd.f32 %v2359, %v2429
  %v2431 = vpop.f32.mrb[0].mxu0
  %2432 = vdwg.mxu0
  %v2433 = vld [vmem:[%s1 + $0x550] sm:$0xff]
  %v2434 = vld [vmem:[%s1 + $0x558] sm:$0xff]
  %v2435 = vld [vmem:[%s1 + $0x560] sm:$0xff]
  %v2436 = vld [vmem:[%s1 + $0x568] sm:$0xff]
  %v2437 = vld [vmem:[%s1 + $0x570] sm:$0x1]
  %v2438 = vmax.f32 %v2430, 0.0
  %v2439 = vlaneseq
  %v2440 = vshrl.u32 %v2439, 7
  %v2441 = vsub.s32 0, %v2440
  %v2442 = vrot.slane %v2437, %v2441
  %v2444 = vsel %vm64, %v2438, 0
  %2446 = vmatprep.subr.mxu0 0.0
  %2447 = vmatpush1.msra.mxu0 %v2433
  %2448 = vmatprep.subr.mxu0 0.0
  %2449 = vmatpush1.msra.mxu0 %v2434
  %2450 = vmatprep.subr.mxu0 0.0
  %2451 = vmatpush1.msra.mxu0 %v2435
  %2452 = vmatprep.subr.mxu0 0.0
  %2453 = vmatpush1.msra.mxu0 %v2436
  %2454 = vmatprep.subr.mxu0 0.0
  %2455 = vmatpush1.msra.mxu0 0.0
  %2456 = vmatprep.subr.mxu0 0.0
  %2457 = vmatpush1.msra.mxu0 0.0
  %2458 = vmatprep.subr.mxu0 0.0
  %2459 = vmatpush1.msra.mxu0 0.0
  %2460 = vmatprep.subr.mxu0 0.0
  %2461 = vmatpush1.msra.mxu0 0.0
  %2462 = vmatprep.subr.mxu0 0.0
  %2463 = vmatpush1.msra.mxu0 0.0
  %2464 = vmatprep.subr.mxu0 0.0
  %2465 = vmatpush1.msra.mxu0 0.0
  %2466 = vmatprep.subr.mxu0 0.0
  %2467 = vmatpush1.msra.mxu0 0.0
  %2468 = vmatprep.subr.mxu0 0.0
  %2469 = vmatpush1.msra.mxu0 0.0
  %2470 = vmatprep.subr.mxu0 0.0
  %2471 = vmatpush1.msra.mxu0 0.0
  %2472 = vmatprep.subr.mxu0 0.0
  %2473 = vmatpush1.msra.mxu0 0.0
  %2474 = vmatprep.subr.mxu0 0.0
  %2475 = vmatpush1.msra.mxu0 0.0
  %2476 = vmatprep.subr.mxu0 0.0
  %2477 = vmatpush1.msra.mxu0 0.0
  %2478 = vmatprep.subr.mxu0 0.0
  %2479 = vmatpush1.msra.mxu0 0.0
  %2480 = vmatprep.subr.mxu0 0.0
  %2481 = vmatpush1.msra.mxu0 0.0
  %2482 = vmatprep.subr.mxu0 0.0
  %2483 = vmatpush1.msra.mxu0 0.0
  %2484 = vmatprep.subr.mxu0 0.0
  %2485 = vmatpush1.msra.mxu0 0.0
  %2486 = vmatprep.subr.mxu0 0.0
  %2487 = vmatpush1.msra.mxu0 0.0
  %2488 = vmatprep.subr.mxu0 0.0
  %2489 = vmatpush1.msra.mxu0 0.0
  %2490 = vmatprep.subr.mxu0 0.0
  %2491 = vmatpush1.msra.mxu0 0.0
  %2492 = vmatprep.subr.mxu0 0.0
  %2493 = vmatpush1.msra.mxu0 0.0
  %2494 = vmatprep.subr.mxu0 0.0
  %2495 = vmatpush1.msra.mxu0 0.0
  %2496 = vmatprep.subr.mxu0 0.0
  %2497 = vmatpush1.msra.mxu0 0.0
  %2498 = vmatprep.subr.mxu0 0.0
  %2499 = vmatpush1.msra.mxu0 0.0
  %2500 = vmatprep.subr.mxu0 0.0
  %2501 = vmatpush1.msra.mxu0 0.0
  %2502 = vmatprep.subr.mxu0 0.0
  %2503 = vmatpush1.msra.mxu0 0.0
  %2504 = vmatprep.subr.mxu0 0.0
  %2505 = vmatpush1.msra.mxu0 0.0
  %2506 = vmatprep.subr.mxu0 0.0
  %2507 = vmatpush1.msra.mxu0 0.0
  %2508 = vmatprep.subr.mxu0 0.0
  %2509 = vmatpush1.msra.mxu0 0.0
  %2510 = vmatprep.mubr.f32.mxu0 0.0
  %2511 = vmatmul.mubr.f32.gmra.mrb[0].mxu0 %v2444
  %v2512 = vpop.f32.mrb[0].mxu0
  %v2513 = vadd.f32 %v2442, %v2512
  %v2514 = vpop.f32.mrb[0].mxu0
  %2515 = vdwg.mxu0
  %v2516 = vadd.f32 %v2513, %v2306
  %v2517 = vld [vmem:[%s1 + $0x900] sm:$0xff]
  %v2518 = vld [vmem:[%s1 + $0x908] sm:$0xff]
  %vm2519 = vcmask 64512
  %v2521 = vsel %vm2519, %v2517, 0
  %v2524 = vsel %vm2519, %v2518, 0
  %2526 = vmatprep.subr.mxu0 0.0
  %2527 = vmatpush1.msra.mxu0 %v2516
  %2528 = vmatprep.subr.mxu0 0.0
  %2529 = vmatpush1.msra.mxu0 0.0
  %2530 = vmatprep.subr.mxu0 0.0
  %2531 = vmatpush1.msra.mxu0 0.0
  %2532 = vmatprep.subr.mxu0 0.0
  %2533 = vmatpush1.msra.mxu0 0.0
  %2534 = vmatprep.subr.mxu0 0.0
  %2535 = vmatpush1.msra.mxu0 0.0
  %2536 = vmatprep.subr.mxu0 0.0
  %2537 = vmatpush1.msra.mxu0 0.0
  %2538 = vmatprep.subr.mxu0 0.0
  %2539 = vmatpush1.msra.mxu0 0.0
  %2540 = vmatprep.subr.mxu0 0.0
  %2541 = vmatpush1.msra.mxu0 0.0
  %2542 = vmatprep.subr.mxu0 0.0
  %2543 = vmatpush1.msra.mxu0 0.0
  %2544 = vmatprep.subr.mxu0 0.0
  %2545 = vmatpush1.msra.mxu0 0.0
  %2546 = vmatprep.subr.mxu0 0.0
  %2547 = vmatpush1.msra.mxu0 0.0
  %2548 = vmatprep.subr.mxu0 0.0
  %2549 = vmatpush1.msra.mxu0 0.0
  %2550 = vmatprep.subr.mxu0 0.0
  %2551 = vmatpush1.msra.mxu0 0.0
  %2552 = vmatprep.subr.mxu0 0.0
  %2553 = vmatpush1.msra.mxu0 0.0
  %2554 = vmatprep.subr.mxu0 0.0
  %2555 = vmatpush1.msra.mxu0 0.0
  %2556 = vmatprep.subr.mxu0 0.0
  %2557 = vmatpush1.msra.mxu0 0.0
  %2558 = vmatprep.subr.mxu0 0.0
  %2559 = vmatpush1.msra.mxu0 0.0
  %2560 = vmatprep.subr.mxu0 0.0
  %2561 = vmatpush1.msra.mxu0 0.0
  %2562 = vmatprep.subr.mxu0 0.0
  %2563 = vmatpush1.msra.mxu0 0.0
  %2564 = vmatprep.subr.mxu0 0.0
  %2565 = vmatpush1.msra.mxu0 0.0
  %2566 = vmatprep.subr.mxu0 0.0
  %2567 = vmatpush1.msra.mxu0 0.0
  %2568 = vmatprep.subr.mxu0 0.0
  %2569 = vmatpush1.msra.mxu0 0.0
  %2570 = vmatprep.subr.mxu0 0.0
  %2571 = vmatpush1.msra.mxu0 0.0
  %2572 = vmatprep.subr.mxu0 0.0
  %2573 = vmatpush1.msra.mxu0 0.0
  %2574 = vmatprep.subr.mxu0 0.0
  %2575 = vmatpush1.msra.mxu0 0.0
  %2576 = vmatprep.subr.mxu0 0.0
  %2577 = vmatpush1.msra.mxu0 0.0
  %2578 = vmatprep.subr.mxu0 0.0
  %2579 = vmatpush1.msra.mxu0 0.0
  %2580 = vmatprep.subr.mxu0 0.0
  %2581 = vmatpush1.msra.mxu0 0.0
  %2582 = vmatprep.subr.mxu0 0.0
  %2583 = vmatpush1.msra.mxu0 0.0
  %2584 = vmatprep.subr.mxu0 0.0
  %2585 = vmatpush1.msra.mxu0 0.0
  %2586 = vmatprep.subr.mxu0 0.0
  %2587 = vmatpush1.msra.mxu0 0.0
  %2588 = vmatprep.subr.mxu0 0.0
  %2589 = vmatpush1.msra.mxu0 0.0
  %2590 = vmatprep.mubr.f32.mxu0 0.0
  %2591 = vmatmul.mubr.f32.gmra.mrb[0].mxu0 %v2521
  %v2592 = vpop.f32.mrb[0].mxu0
  %v2593 = vadd.f32 0.0, %v2592
  %v2594 = vpop.f32.mrb[0].mxu0
  %2595 = vmatprep.mubr.f32.mxu0 0.0
  %2596 = vmatmul.mubr.f32.gmra.mrb[0].mxu0 %v2524
  %v2597 = vpop.f32.mrb[0].mxu0
  %v2598 = vadd.f32 0.0, %v2597
  %v2599 = vpop.f32.mrb[0].mxu0
  %2600 = vdwg.mxu0
  %v2601 = vld [vmem:[%s1 + $0x578] sm:$0xff]
  %v2602 = vld [vmem:[%s1 + $0x580] sm:$0xff]
  %v2603 = vld [vmem:[%s1 + $0x588] sm:$0xff]
  %v2604 = vld [vmem:[%s1 + $0x590] sm:$0xff]
  %v2605 = vld [vmem:[%s1 + $0x598] sm:$0xff]
  %v2606 = vld [vmem:[%s1 + $0x5a0] sm:$0xff]
  %v2607 = vld [vmem:[%s1 + $0x5a8] sm:$0xff]
  %v2608 = vld [vmem:[%s1 + $0x5b0] sm:$0xff]
  %v2609 = vld [vmem:[%s1 + $0x5b8] sm:$0xff]
  %v2610 = vld [vmem:[%s1 + $0x5c0] sm:$0xff]
  %v2611 = vld [vmem:[%s1 + $0x5c8] sm:$0xff]
  %v2612 = vld [vmem:[%s1 + $0x5d0] sm:$0xff]
  %v2613 = vld [vmem:[%s1 + $0x5d8] sm:$0x1]
  %v2615 = vrot.slane %v2593, 7
  %v2617 = vsel %vm26, 0.0, %v2615
  %v2618 = vsel %vm26, %v2615, 0.0
  %v2621 = vrot.slane %v2617, 1
  %v2622 = vrot.slane %v2618, 1
  %v2623 = vsel %vm37, %v2621, %v2622
  %2624 = vrot.lane.b32.xlu0 %v2623, 32
  %v2625 = vpop.permute.xlu0 %2624
  %v2627 = vrot.slane %v2617, 2
  %v2628 = vrot.slane %v2618, 2
  %v2629 = vsel %vm49, %v2627, %v2628
  %2630 = vrot.lane.b32.xlu0 %v2629, 64
  %v2631 = vpop.permute.xlu0 %2630
  %v2633 = vsel %vm64, %v2617, %v2625
  %v2634 = vsel %vm262, %v2633, %v2631
  %v2636 = vrot.slane %v2598, 7
  %v2638 = vsel %vm26, 0.0, %v2636
  %v2639 = vsel %vm26, %v2636, 0.0
  %v2642 = vrot.slane %v2638, 1
  %v2643 = vrot.slane %v2639, 1
  %v2644 = vsel %vm37, %v2642, %v2643
  %2645 = vrot.lane.b32.xlu0 %v2644, 32
  %v2646 = vpop.permute.xlu0 %2645
  %v2648 = vrot.slane %v2638, 2
  %v2649 = vrot.slane %v2639, 2
  %v2650 = vsel %vm49, %v2648, %v2649
  %2651 = vrot.lane.b32.xlu0 %v2650, 64
  %v2652 = vpop.permute.xlu0 %2651
  %v2654 = vsel %vm64, %v2638, %v2646
  %v2655 = vsel %vm262, %v2654, %v2652
  %v2656 = vlaneseq
  %v2657 = vshrl.u32 %v2656, 7
  %v2658 = vsub.s32 0, %v2657
  %v2659 = vrot.slane %v2613, %v2658
  %v2661 = vsel %vm264, %v2634, 0
  %v2664 = vsel %vm264, %v2655, 0
  %2666 = vmatprep.subr.mxu0 0.0
  %2667 = vmatpush1.msra.mxu0 %v2601
  %2668 = vmatprep.subr.mxu0 0.0
  %2669 = vmatpush1.msra.mxu0 %v2602
  %2670 = vmatprep.subr.mxu0 0.0
  %2671 = vmatpush1.msra.mxu0 %v2603
  %2672 = vmatprep.subr.mxu0 0.0
  %2673 = vmatpush1.msra.mxu0 %v2604
  %2674 = vmatprep.subr.mxu0 0.0
  %2675 = vmatpush1.msra.mxu0 %v2605
  %2676 = vmatprep.subr.mxu0 0.0
  %2677 = vmatpush1.msra.mxu0 %v2606
  %2678 = vmatprep.subr.mxu0 0.0
  %2679 = vmatpush1.msra.mxu0 %v2607
  %2680 = vmatprep.subr.mxu0 0.0
  %2681 = vmatpush1.msra.mxu0 %v2608
  %2682 = vmatprep.subr.mxu0 0.0
  %2683 = vmatpush1.msra.mxu0 %v2609
  %2684 = vmatprep.subr.mxu0 0.0
  %2685 = vmatpush1.msra.mxu0 %v2610
  %2686 = vmatprep.subr.mxu0 0.0
  %2687 = vmatpush1.msra.mxu0 %v2611
  %2688 = vmatprep.subr.mxu0 0.0
  %2689 = vmatpush1.msra.mxu0 %v2612
  %2690 = vmatprep.subr.mxu0 0.0
  %2691 = vmatpush1.msra.mxu0 0.0
  %2692 = vmatprep.subr.mxu0 0.0
  %2693 = vmatpush1.msra.mxu0 0.0
  %2694 = vmatprep.subr.mxu0 0.0
  %2695 = vmatpush1.msra.mxu0 0.0
  %2696 = vmatprep.subr.mxu0 0.0
  %2697 = vmatpush1.msra.mxu0 0.0
  %2698 = vmatprep.subr.mxu0 0.0
  %2699 = vmatpush1.msra.mxu0 0.0
  %2700 = vmatprep.subr.mxu0 0.0
  %2701 = vmatpush1.msra.mxu0 0.0
  %2702 = vmatprep.subr.mxu0 0.0
  %2703 = vmatpush1.msra.mxu0 0.0
  %2704 = vmatprep.subr.mxu0 0.0
  %2705 = vmatpush1.msra.mxu0 0.0
  %2706 = vmatprep.subr.mxu0 0.0
  %2707 = vmatpush1.msra.mxu0 0.0
  %2708 = vmatprep.subr.mxu0 0.0
  %2709 = vmatpush1.msra.mxu0 0.0
  %2710 = vmatprep.subr.mxu0 0.0
  %2711 = vmatpush1.msra.mxu0 0.0
  %2712 = vmatprep.subr.mxu0 0.0
  %2713 = vmatpush1.msra.mxu0 0.0
  %2714 = vmatprep.subr.mxu0 0.0
  %2715 = vmatpush1.msra.mxu0 0.0
  %2716 = vmatprep.subr.mxu0 0.0
  %2717 = vmatpush1.msra.mxu0 0.0
  %2718 = vmatprep.subr.mxu0 0.0
  %2719 = vmatpush1.msra.mxu0 0.0
  %2720 = vmatprep.subr.mxu0 0.0
  %2721 = vmatpush1.msra.mxu0 0.0
  %2722 = vmatprep.subr.mxu0 0.0
  %2723 = vmatpush1.msra.mxu0 0.0
  %2724 = vmatprep.subr.mxu0 0.0
  %2725 = vmatpush1.msra.mxu0 0.0
  %2726 = vmatprep.subr.mxu0 0.0
  %2727 = vmatpush1.msra.mxu0 0.0
  %2728 = vmatprep.subr.mxu0 0.0
  %2729 = vmatpush1.msra.mxu0 0.0
  %2730 = vmatprep.mubr.f32.mxu0 0.0
  %2731 = vmatmul.mubr.f32.gmra.mrb[0].mxu0 %v2661
  %v2732 = vpop.f32.mrb[0].mxu0
  %v2733 = vadd.f32 %v2659, %v2732
  %v2734 = vpop.f32.mrb[0].mxu0
  %2735 = vmatprep.mubr.f32.mxu0 0.0
  %2736 = vmatmul.mubr.f32.gmra.mrb[0].mxu0 %v2664
  %v2737 = vpop.f32.mrb[0].mxu0
  %v2738 = vadd.f32 %v2659, %v2737
  %v2739 = vpop.f32.mrb[0].mxu0
  %2740 = vdwg.mxu0
  %v2741 = vld [vmem:[%s1 + $0x5e0] sm:$0xff]
  %v2742 = vld [vmem:[%s1 + $0x5e8] sm:$0xff]
  %v2743 = vld [vmem:[%s1 + $0x5f0] sm:$0xff]
  %v2744 = vld [vmem:[%s1 + $0x5f8] sm:$0xff]
  %v2745 = vld [vmem:[%s1 + $0x600] sm:$0xff]
  %v2746 = vld [vmem:[%s1 + $0x608] sm:$0xff]
  %v2747 = vld [vmem:[%s1 + $0x610] sm:$0xff]
  %v2748 = vld [vmem:[%s1 + $0x618] sm:$0xff]
  %v2749 = vld [vmem:[%s1 + $0x620] sm:$0xff]
  %v2750 = vld [vmem:[%s1 + $0x628] sm:$0xff]
  %v2751 = vld [vmem:[%s1 + $0x630] sm:$0xff]
  %v2752 = vld [vmem:[%s1 + $0x638] sm:$0xff]
  %v2753 = vld [vmem:[%s1 + $0x640] sm:$0x1]
  %v2754 = vmax.f32 %v2733, 0.0
  %v2755 = vmax.f32 %v2738, 0.0
  %v2757 = vrot.slane %v2754, 5
  %v2759 = vsel %vm395, 0.0, %v2757
  %v2760 = vsel %vm395, %v2757, 0.0
  %v2763 = vrot.slane %v2759, 3
  %v2764 = vrot.slane %v2760, 3
  %v2765 = vsel %vm400, %v2763, %v2764
  %2766 = vrot.lane.b32.xlu0 %v2765, 32
  %v2767 = vpop.permute.xlu0 %2766
  %v2769 = vrot.slane %v2759, 6
  %v2770 = vrot.slane %v2760, 6
  %v2771 = vsel %vm407, %v2769, %v2770
  %2772 = vrot.lane.b32.xlu0 %v2771, 64
  %v2773 = vpop.permute.xlu0 %2772
  %v2775 = vsel %vm64, %v2759, %v2767
  %v2776 = vsel %vm262, %v2775, %v2773
  %v2778 = vrot.slane %v2755, 5
  %v2780 = vsel %vm395, 0.0, %v2778
  %v2781 = vsel %vm395, %v2778, 0.0
  %v2784 = vrot.slane %v2780, 3
  %v2785 = vrot.slane %v2781, 3
  %v2786 = vsel %vm400, %v2784, %v2785
  %2787 = vrot.lane.b32.xlu0 %v2786, 32
  %v2788 = vpop.permute.xlu0 %2787
  %v2790 = vrot.slane %v2780, 6
  %v2791 = vrot.slane %v2781, 6
  %v2792 = vsel %vm407, %v2790, %v2791
  %2793 = vrot.lane.b32.xlu0 %v2792, 64
  %v2794 = vpop.permute.xlu0 %2793
  %v2796 = vsel %vm64, %v2780, %v2788
  %v2797 = vsel %vm262, %v2796, %v2794
  %v2798 = vlaneseq
  %v2799 = vshrl.u32 %v2798, 7
  %v2800 = vsub.s32 0, %v2799
  %v2801 = vrot.slane %v2753, %v2800
  %v2803 = vsel %vm264, %v2776, 0
  %v2806 = vsel %vm264, %v2797, 0
  %2808 = vmatprep.subr.mxu0 0.0
  %2809 = vmatpush1.msra.mxu0 %v2741
  %2810 = vmatprep.subr.mxu0 0.0
  %2811 = vmatpush1.msra.mxu0 %v2742
  %2812 = vmatprep.subr.mxu0 0.0
  %2813 = vmatpush1.msra.mxu0 %v2743
  %2814 = vmatprep.subr.mxu0 0.0
  %2815 = vmatpush1.msra.mxu0 %v2744
  %2816 = vmatprep.subr.mxu0 0.0
  %2817 = vmatpush1.msra.mxu0 %v2745
  %2818 = vmatprep.subr.mxu0 0.0
  %2819 = vmatpush1.msra.mxu0 %v2746
  %2820 = vmatprep.subr.mxu0 0.0
  %2821 = vmatpush1.msra.mxu0 %v2747
  %2822 = vmatprep.subr.mxu0 0.0
  %2823 = vmatpush1.msra.mxu0 %v2748
  %2824 = vmatprep.subr.mxu0 0.0
  %2825 = vmatpush1.msra.mxu0 %v2749
  %2826 = vmatprep.subr.mxu0 0.0
  %2827 = vmatpush1.msra.mxu0 %v2750
  %2828 = vmatprep.subr.mxu0 0.0
  %2829 = vmatpush1.msra.mxu0 %v2751
  %2830 = vmatprep.subr.mxu0 0.0
  %2831 = vmatpush1.msra.mxu0 %v2752
  %2832 = vmatprep.subr.mxu0 0.0
  %2833 = vmatpush1.msra.mxu0 0.0
  %2834 = vmatprep.subr.mxu0 0.0
  %2835 = vmatpush1.msra.mxu0 0.0
  %2836 = vmatprep.subr.mxu0 0.0
  %2837 = vmatpush1.msra.mxu0 0.0
  %2838 = vmatprep.subr.mxu0 0.0
  %2839 = vmatpush1.msra.mxu0 0.0
  %2840 = vmatprep.subr.mxu0 0.0
  %2841 = vmatpush1.msra.mxu0 0.0
  %2842 = vmatprep.subr.mxu0 0.0
  %2843 = vmatpush1.msra.mxu0 0.0
  %2844 = vmatprep.subr.mxu0 0.0
  %2845 = vmatpush1.msra.mxu0 0.0
  %2846 = vmatprep.subr.mxu0 0.0
  %2847 = vmatpush1.msra.mxu0 0.0
  %2848 = vmatprep.subr.mxu0 0.0
  %2849 = vmatpush1.msra.mxu0 0.0
  %2850 = vmatprep.subr.mxu0 0.0
  %2851 = vmatpush1.msra.mxu0 0.0
  %2852 = vmatprep.subr.mxu0 0.0
  %2853 = vmatpush1.msra.mxu0 0.0
  %2854 = vmatprep.subr.mxu0 0.0
  %2855 = vmatpush1.msra.mxu0 0.0
  %2856 = vmatprep.subr.mxu0 0.0
  %2857 = vmatpush1.msra.mxu0 0.0
  %2858 = vmatprep.subr.mxu0 0.0
  %2859 = vmatpush1.msra.mxu0 0.0
  %2860 = vmatprep.subr.mxu0 0.0
  %2861 = vmatpush1.msra.mxu0 0.0
  %2862 = vmatprep.subr.mxu0 0.0
  %2863 = vmatpush1.msra.mxu0 0.0
  %2864 = vmatprep.subr.mxu0 0.0
  %2865 = vmatpush1.msra.mxu0 0.0
  %2866 = vmatprep.subr.mxu0 0.0
  %2867 = vmatpush1.msra.mxu0 0.0
  %2868 = vmatprep.subr.mxu0 0.0
  %2869 = vmatpush1.msra.mxu0 0.0
  %2870 = vmatprep.subr.mxu0 0.0
  %2871 = vmatpush1.msra.mxu0 0.0
  %2872 = vmatprep.mubr.f32.mxu0 0.0
  %2873 = vmatmul.mubr.f32.gmra.mrb[0].mxu0 %v2803
  %v2874 = vpop.f32.mrb[0].mxu0
  %v2875 = vadd.f32 %v2801, %v2874
  %v2876 = vpop.f32.mrb[0].mxu0
  %2877 = vmatprep.mubr.f32.mxu0 0.0
  %2878 = vmatmul.mubr.f32.gmra.mrb[0].mxu0 %v2806
  %v2879 = vpop.f32.mrb[0].mxu0
  %v2880 = vadd.f32 %v2801, %v2879
  %v2881 = vpop.f32.mrb[0].mxu0
  %2882 = vdwg.mxu0
  %v2883 = vld [vmem:[%s1 + $0x648] sm:$0xff]
  %v2884 = vld [vmem:[%s1 + $0x650] sm:$0xff]
  %v2885 = vld [vmem:[%s1 + $0x658] sm:$0xff]
  %v2886 = vld [vmem:[%s1 + $0x660] sm:$0xff]
  %v2887 = vld [vmem:[%s1 + $0x668] sm:$0x1]
  %v2888 = vmax.f32 %v2875, 0.0
  %v2889 = vmax.f32 %v2880, 0.0
  %v2890 = vlaneseq
  %v2891 = vshrl.u32 %v2890, 7
  %v2892 = vsub.s32 0, %v2891
  %v2893 = vrot.slane %v2887, %v2892
  %v2895 = vsel %vm64, %v2888, 0
  %v2898 = vsel %vm64, %v2889, 0
  %2900 = vmatprep.subr.mxu0 0.0
  %2901 = vmatpush1.msra.mxu0 %v2883
  %2902 = vmatprep.subr.mxu0 0.0
  %2903 = vmatpush1.msra.mxu0 %v2884
  %2904 = vmatprep.subr.mxu0 0.0
  %2905 = vmatpush1.msra.mxu0 %v2885
  %2906 = vmatprep.subr.mxu0 0.0
  %2907 = vmatpush1.msra.mxu0 %v2886
  %2908 = vmatprep.subr.mxu0 0.0
  %2909 = vmatpush1.msra.mxu0 0.0
  %2910 = vmatprep.subr.mxu0 0.0
  %2911 = vmatpush1.msra.mxu0 0.0
  %2912 = vmatprep.subr.mxu0 0.0
  %2913 = vmatpush1.msra.mxu0 0.0
  %2914 = vmatprep.subr.mxu0 0.0
  %2915 = vmatpush1.msra.mxu0 0.0
  %2916 = vmatprep.subr.mxu0 0.0
  %2917 = vmatpush1.msra.mxu0 0.0
  %2918 = vmatprep.subr.mxu0 0.0
  %2919 = vmatpush1.msra.mxu0 0.0
  %2920 = vmatprep.subr.mxu0 0.0
  %2921 = vmatpush1.msra.mxu0 0.0
  %2922 = vmatprep.subr.mxu0 0.0
  %2923 = vmatpush1.msra.mxu0 0.0
  %2924 = vmatprep.subr.mxu0 0.0
  %2925 = vmatpush1.msra.mxu0 0.0
  %2926 = vmatprep.subr.mxu0 0.0
  %2927 = vmatpush1.msra.mxu0 0.0
  %2928 = vmatprep.subr.mxu0 0.0
  %2929 = vmatpush1.msra.mxu0 0.0
  %2930 = vmatprep.subr.mxu0 0.0
  %2931 = vmatpush1.msra.mxu0 0.0
  %2932 = vmatprep.subr.mxu0 0.0
  %2933 = vmatpush1.msra.mxu0 0.0
  %2934 = vmatprep.subr.mxu0 0.0
  %2935 = vmatpush1.msra.mxu0 0.0
  %2936 = vmatprep.subr.mxu0 0.0
  %2937 = vmatpush1.msra.mxu0 0.0
  %2938 = vmatprep.subr.mxu0 0.0
  %2939 = vmatpush1.msra.mxu0 0.0
  %2940 = vmatprep.subr.mxu0 0.0
  %2941 = vmatpush1.msra.mxu0 0.0
  %2942 = vmatprep.subr.mxu0 0.0
  %2943 = vmatpush1.msra.mxu0 0.0
  %2944 = vmatprep.subr.mxu0 0.0
  %2945 = vmatpush1.msra.mxu0 0.0
  %2946 = vmatprep.subr.mxu0 0.0
  %2947 = vmatpush1.msra.mxu0 0.0
  %2948 = vmatprep.subr.mxu0 0.0
  %2949 = vmatpush1.msra.mxu0 0.0
  %2950 = vmatprep.subr.mxu0 0.0
  %2951 = vmatpush1.msra.mxu0 0.0
  %2952 = vmatprep.subr.mxu0 0.0
  %2953 = vmatpush1.msra.mxu0 0.0
  %2954 = vmatprep.subr.mxu0 0.0
  %2955 = vmatpush1.msra.mxu0 0.0
  %2956 = vmatprep.subr.mxu0 0.0
  %2957 = vmatpush1.msra.mxu0 0.0
  %2958 = vmatprep.subr.mxu0 0.0
  %2959 = vmatpush1.msra.mxu0 0.0
  %2960 = vmatprep.subr.mxu0 0.0
  %2961 = vmatpush1.msra.mxu0 0.0
  %2962 = vmatprep.subr.mxu0 0.0
  %2963 = vmatpush1.msra.mxu0 0.0
  %2964 = vmatprep.mubr.f32.mxu0 0.0
  %2965 = vmatmul.mubr.f32.gmra.mrb[0].mxu0 %v2895
  %v2966 = vpop.f32.mrb[0].mxu0
  %v2967 = vadd.f32 %v2893, %v2966
  %v2968 = vpop.f32.mrb[0].mxu0
  %2969 = vmatprep.mubr.f32.mxu0 0.0
  %2970 = vmatmul.mubr.f32.gmra.mrb[0].mxu0 %v2898
  %v2971 = vpop.f32.mrb[0].mxu0
  %v2972 = vadd.f32 %v2893, %v2971
  %v2973 = vpop.f32.mrb[0].mxu0
  %2974 = vdwg.mxu0
  %v2975 = vadd.f32 %v2967, %v2733
  %v2976 = vadd.f32 %v2972, %v2738
  %v2977 = vld [vmem:[%s1 + $0x670] sm:$0xff]
  %v2978 = vld [vmem:[%s1 + $0x678] sm:$0xff]
  %v2979 = vld [vmem:[%s1 + $0x680] sm:$0xff]
  %v2980 = vld [vmem:[%s1 + $0x688] sm:$0xff]
  %v2981 = vld [vmem:[%s1 + $0x690] sm:$0xff]
  %v2982 = vld [vmem:[%s1 + $0x698] sm:$0xff]
  %v2983 = vld [vmem:[%s1 + $0x6a0] sm:$0xff]
  %v2984 = vld [vmem:[%s1 + $0x6a8] sm:$0xff]
  %v2985 = vld [vmem:[%s1 + $0x6b0] sm:$0xff]
  %v2986 = vld [vmem:[%s1 + $0x6b8] sm:$0xff]
  %v2987 = vld [vmem:[%s1 + $0x6c0] sm:$0xff]
  %v2988 = vld [vmem:[%s1 + $0x6c8] sm:$0xff]
  %v2989 = vld [vmem:[%s1 + $0x6d0] sm:$0x1]
  %v2990 = vmax.f32 %v2975, 0.0
  %v2991 = vmax.f32 %v2976, 0.0
  %v2993 = vrot.slane %v2990, 7
  %v2995 = vsel %vm26, 0.0, %v2993
  %v2996 = vsel %vm26, %v2993, 0.0
  %v2999 = vrot.slane %v2995, 1
  %v3000 = vrot.slane %v2996, 1
  %v3001 = vsel %vm37, %v2999, %v3000
  %3002 = vrot.lane.b32.xlu0 %v3001, 32
  %v3003 = vpop.permute.xlu0 %3002
  %v3005 = vrot.slane %v2995, 2
  %v3006 = vrot.slane %v2996, 2
  %v3007 = vsel %vm49, %v3005, %v3006
  %3008 = vrot.lane.b32.xlu0 %v3007, 64
  %v3009 = vpop.permute.xlu0 %3008
  %v3011 = vsel %vm64, %v2995, %v3003
  %v3012 = vsel %vm262, %v3011, %v3009
  %v3014 = vrot.slane %v2991, 7
  %v3016 = vsel %vm26, 0.0, %v3014
  %v3017 = vsel %vm26, %v3014, 0.0
  %v3020 = vrot.slane %v3016, 1
  %v3021 = vrot.slane %v3017, 1
  %v3022 = vsel %vm37, %v3020, %v3021
  %3023 = vrot.lane.b32.xlu0 %v3022, 32
  %v3024 = vpop.permute.xlu0 %3023
  %v3026 = vrot.slane %v3016, 2
  %v3027 = vrot.slane %v3017, 2
  %v3028 = vsel %vm49, %v3026, %v3027
  %3029 = vrot.lane.b32.xlu0 %v3028, 64
  %v3030 = vpop.permute.xlu0 %3029
  %v3032 = vsel %vm64, %v3016, %v3024
  %v3033 = vsel %vm262, %v3032, %v3030
  %v3034 = vlaneseq
  %v3035 = vshrl.u32 %v3034, 7
  %v3036 = vsub.s32 0, %v3035
  %v3037 = vrot.slane %v2989, %v3036
  %v3039 = vsel %vm264, %v3012, 0
  %v3042 = vsel %vm264, %v3033, 0
  %3044 = vmatprep.subr.mxu0 0.0
  %3045 = vmatpush1.msra.mxu0 %v2977
  %3046 = vmatprep.subr.mxu0 0.0
  %3047 = vmatpush1.msra.mxu0 %v2978
  %3048 = vmatprep.subr.mxu0 0.0
  %3049 = vmatpush1.msra.mxu0 %v2979
  %3050 = vmatprep.subr.mxu0 0.0
  %3051 = vmatpush1.msra.mxu0 %v2980
  %3052 = vmatprep.subr.mxu0 0.0
  %3053 = vmatpush1.msra.mxu0 %v2981
  %3054 = vmatprep.subr.mxu0 0.0
  %3055 = vmatpush1.msra.mxu0 %v2982
  %3056 = vmatprep.subr.mxu0 0.0
  %3057 = vmatpush1.msra.mxu0 %v2983
  %3058 = vmatprep.subr.mxu0 0.0
  %3059 = vmatpush1.msra.mxu0 %v2984
  %3060 = vmatprep.subr.mxu0 0.0
  %3061 = vmatpush1.msra.mxu0 %v2985
  %3062 = vmatprep.subr.mxu0 0.0
  %3063 = vmatpush1.msra.mxu0 %v2986
  %3064 = vmatprep.subr.mxu0 0.0
  %3065 = vmatpush1.msra.mxu0 %v2987
  %3066 = vmatprep.subr.mxu0 0.0
  %3067 = vmatpush1.msra.mxu0 %v2988
  %3068 = vmatprep.subr.mxu0 0.0
  %3069 = vmatpush1.msra.mxu0 0.0
  %3070 = vmatprep.subr.mxu0 0.0
  %3071 = vmatpush1.msra.mxu0 0.0
  %3072 = vmatprep.subr.mxu0 0.0
  %3073 = vmatpush1.msra.mxu0 0.0
  %3074 = vmatprep.subr.mxu0 0.0
  %3075 = vmatpush1.msra.mxu0 0.0
  %3076 = vmatprep.subr.mxu0 0.0
  %3077 = vmatpush1.msra.mxu0 0.0
  %3078 = vmatprep.subr.mxu0 0.0
  %3079 = vmatpush1.msra.mxu0 0.0
  %3080 = vmatprep.subr.mxu0 0.0
  %3081 = vmatpush1.msra.mxu0 0.0
  %3082 = vmatprep.subr.mxu0 0.0
  %3083 = vmatpush1.msra.mxu0 0.0
  %3084 = vmatprep.subr.mxu0 0.0
  %3085 = vmatpush1.msra.mxu0 0.0
  %3086 = vmatprep.subr.mxu0 0.0
  %3087 = vmatpush1.msra.mxu0 0.0
  %3088 = vmatprep.subr.mxu0 0.0
  %3089 = vmatpush1.msra.mxu0 0.0
  %3090 = vmatprep.subr.mxu0 0.0
  %3091 = vmatpush1.msra.mxu0 0.0
  %3092 = vmatprep.subr.mxu0 0.0
  %3093 = vmatpush1.msra.mxu0 0.0
  %3094 = vmatprep.subr.mxu0 0.0
  %3095 = vmatpush1.msra.mxu0 0.0
  %3096 = vmatprep.subr.mxu0 0.0
  %3097 = vmatpush1.msra.mxu0 0.0
  %3098 = vmatprep.subr.mxu0 0.0
  %3099 = vmatpush1.msra.mxu0 0.0
  %3100 = vmatprep.subr.mxu0 0.0
  %3101 = vmatpush1.msra.mxu0 0.0
  %3102 = vmatprep.subr.mxu0 0.0
  %3103 = vmatpush1.msra.mxu0 0.0
  %3104 = vmatprep.subr.mxu0 0.0
  %3105 = vmatpush1.msra.mxu0 0.0
  %3106 = vmatprep.subr.mxu0 0.0
  %3107 = vmatpush1.msra.mxu0 0.0
  %3108 = vmatprep.mubr.f32.mxu0 0.0
  %3109 = vmatmul.mubr.f32.gmra.mrb[0].mxu0 %v3039
  %v3110 = vpop.f32.mrb[0].mxu0
  %v3111 = vadd.f32 %v3037, %v3110
  %v3112 = vpop.f32.mrb[0].mxu0
  %3113 = vmatprep.mubr.f32.mxu0 0.0
  %3114 = vmatmul.mubr.f32.gmra.mrb[0].mxu0 %v3042
  %v3115 = vpop.f32.mrb[0].mxu0
  %v3116 = vadd.f32 %v3037, %v3115
  %v3117 = vpop.f32.mrb[0].mxu0
  %3118 = vdwg.mxu0
  %v3119 = vld [vmem:[%s1 + $0x6d8] sm:$0xff]
  %v3120 = vld [vmem:[%s1 + $0x6e0] sm:$0xff]
  %v3121 = vld [vmem:[%s1 + $0x6e8] sm:$0xff]
  %v3122 = vld [vmem:[%s1 + $0x6f0] sm:$0xff]
  %v3123 = vld [vmem:[%s1 + $0x6f8] sm:$0x1]
  %v3124 = vmax.f32 %v3111, 0.0
  %v3125 = vmax.f32 %v3116, 0.0
  %v3126 = vlaneseq
  %v3127 = vshrl.u32 %v3126, 7
  %v3128 = vsub.s32 0, %v3127
  %v3129 = vrot.slane %v3123, %v3128
  %v3131 = vsel %vm64, %v3124, 0
  %v3134 = vsel %vm64, %v3125, 0
  %3136 = vmatprep.subr.mxu0 0.0
  %3137 = vmatpush1.msra.mxu0 %v3119
  %3138 = vmatprep.subr.mxu0 0.0
  %3139 = vmatpush1.msra.mxu0 %v3120
  %3140 = vmatprep.subr.mxu0 0.0
  %3141 = vmatpush1.msra.mxu0 %v3121
  %3142 = vmatprep.subr.mxu0 0.0
  %3143 = vmatpush1.msra.mxu0 %v3122
  %3144 = vmatprep.subr.mxu0 0.0
  %3145 = vmatpush1.msra.mxu0 0.0
  %3146 = vmatprep.subr.mxu0 0.0
  %3147 = vmatpush1.msra.mxu0 0.0
  %3148 = vmatprep.subr.mxu0 0.0
  %3149 = vmatpush1.msra.mxu0 0.0
  %3150 = vmatprep.subr.mxu0 0.0
  %3151 = vmatpush1.msra.mxu0 0.0
  %3152 = vmatprep.subr.mxu0 0.0
  %3153 = vmatpush1.msra.mxu0 0.0
  %3154 = vmatprep.subr.mxu0 0.0
  %3155 = vmatpush1.msra.mxu0 0.0
  %3156 = vmatprep.subr.mxu0 0.0
  %3157 = vmatpush1.msra.mxu0 0.0
  %3158 = vmatprep.subr.mxu0 0.0
  %3159 = vmatpush1.msra.mxu0 0.0
  %3160 = vmatprep.subr.mxu0 0.0
  %3161 = vmatpush1.msra.mxu0 0.0
  %3162 = vmatprep.subr.mxu0 0.0
  %3163 = vmatpush1.msra.mxu0 0.0
  %3164 = vmatprep.subr.mxu0 0.0
  %3165 = vmatpush1.msra.mxu0 0.0
  %3166 = vmatprep.subr.mxu0 0.0
  %3167 = vmatpush1.msra.mxu0 0.0
  %3168 = vmatprep.subr.mxu0 0.0
  %3169 = vmatpush1.msra.mxu0 0.0
  %3170 = vmatprep.subr.mxu0 0.0
  %3171 = vmatpush1.msra.mxu0 0.0
  %3172 = vmatprep.subr.mxu0 0.0
  %3173 = vmatpush1.msra.mxu0 0.0
  %3174 = vmatprep.subr.mxu0 0.0
  %3175 = vmatpush1.msra.mxu0 0.0
  %3176 = vmatprep.subr.mxu0 0.0
  %3177 = vmatpush1.msra.mxu0 0.0
  %3178 = vmatprep.subr.mxu0 0.0
  %3179 = vmatpush1.msra.mxu0 0.0
  %3180 = vmatprep.subr.mxu0 0.0
  %3181 = vmatpush1.msra.mxu0 0.0
  %3182 = vmatprep.subr.mxu0 0.0
  %3183 = vmatpush1.msra.mxu0 0.0
  %3184 = vmatprep.subr.mxu0 0.0
  %3185 = vmatpush1.msra.mxu0 0.0
  %3186 = vmatprep.subr.mxu0 0.0
  %3187 = vmatpush1.msra.mxu0 0.0
  %3188 = vmatprep.subr.mxu0 0.0
  %3189 = vmatpush1.msra.mxu0 0.0
  %3190 = vmatprep.subr.mxu0 0.0
  %3191 = vmatpush1.msra.mxu0 0.0
  %3192 = vmatprep.subr.mxu0 0.0
  %3193 = vmatpush1.msra.mxu0 0.0
  %3194 = vmatprep.subr.mxu0 0.0
  %3195 = vmatpush1.msra.mxu0 0.0
  %3196 = vmatprep.subr.mxu0 0.0
  %3197 = vmatpush1.msra.mxu0 0.0
  %3198 = vmatprep.subr.mxu0 0.0
  %3199 = vmatpush1.msra.mxu0 0.0
  %3200 = vmatprep.mubr.f32.mxu0 0.0
  %3201 = vmatmul.mubr.f32.gmra.mrb[0].mxu0 %v3131
  %v3202 = vpop.f32.mrb[0].mxu0
  %v3203 = vadd.f32 %v3129, %v3202
  %v3204 = vpop.f32.mrb[0].mxu0
  %3205 = vmatprep.mubr.f32.mxu0 0.0
  %3206 = vmatmul.mubr.f32.gmra.mrb[0].mxu0 %v3134
  %v3207 = vpop.f32.mrb[0].mxu0
  %v3208 = vadd.f32 %v3129, %v3207
  %v3209 = vpop.f32.mrb[0].mxu0
  %3210 = vdwg.mxu0
  %v3211 = vadd.f32 %v3203, %v2975
  %v3212 = vadd.f32 %v3208, %v2976
  %v3213 = vld [vmem:[%s1 + $0x910] sm:$0xff]
  %v3214 = vld [vmem:[%s1 + $0x918] sm:$0xff]
  %v3215 = vld [vmem:[%s1 + $0x920] sm:$0xff]
  %v3216 = vld [vmem:[%s1 + $0x928] sm:$0xff]
  %v3218 = vsel %vm61, %v3213, 0
  %v3221 = vsel %vm61, %v3214, 0
  %v3224 = vsel %vm61, %v3215, 0
  %v3227 = vsel %vm61, %v3216, 0
  %3229 = vmatprep.subr.mxu0 0.0
  %3230 = vmatpush1.msra.mxu0 %v3211
  %3231 = vmatprep.subr.mxu0 0.0
  %3232 = vmatpush1.msra.mxu0 %v3212
  %3233 = vmatprep.subr.mxu0 0.0
  %3234 = vmatpush1.msra.mxu0 0.0
  %3235 = vmatprep.subr.mxu0 0.0
  %3236 = vmatpush1.msra.mxu0 0.0
  %3237 = vmatprep.subr.mxu0 0.0
  %3238 = vmatpush1.msra.mxu0 0.0
  %3239 = vmatprep.subr.mxu0 0.0
  %3240 = vmatpush1.msra.mxu0 0.0
  %3241 = vmatprep.subr.mxu0 0.0
  %3242 = vmatpush1.msra.mxu0 0.0
  %3243 = vmatprep.subr.mxu0 0.0
  %3244 = vmatpush1.msra.mxu0 0.0
  %3245 = vmatprep.subr.mxu0 0.0
  %3246 = vmatpush1.msra.mxu0 0.0
  %3247 = vmatprep.subr.mxu0 0.0
  %3248 = vmatpush1.msra.mxu0 0.0
  %3249 = vmatprep.subr.mxu0 0.0
  %3250 = vmatpush1.msra.mxu0 0.0
  %3251 = vmatprep.subr.mxu0 0.0
  %3252 = vmatpush1.msra.mxu0 0.0
  %3253 = vmatprep.subr.mxu0 0.0
  %3254 = vmatpush1.msra.mxu0 0.0
  %3255 = vmatprep.subr.mxu0 0.0
  %3256 = vmatpush1.msra.mxu0 0.0
  %3257 = vmatprep.subr.mxu0 0.0
  %3258 = vmatpush1.msra.mxu0 0.0
  %3259 = vmatprep.subr.mxu0 0.0
  %3260 = vmatpush1.msra.mxu0 0.0
  %3261 = vmatprep.subr.mxu0 0.0
  %3262 = vmatpush1.msra.mxu0 0.0
  %3263 = vmatprep.subr.mxu0 0.0
  %3264 = vmatpush1.msra.mxu0 0.0
  %3265 = vmatprep.subr.mxu0 0.0
  %3266 = vmatpush1.msra.mxu0 0.0
  %3267 = vmatprep.subr.mxu0 0.0
  %3268 = vmatpush1.msra.mxu0 0.0
  %3269 = vmatprep.subr.mxu0 0.0
  %3270 = vmatpush1.msra.mxu0 0.0
  %3271 = vmatprep.subr.mxu0 0.0
  %3272 = vmatpush1.msra.mxu0 0.0
  %3273 = vmatprep.subr.mxu0 0.0
  %3274 = vmatpush1.msra.mxu0 0.0
  %3275 = vmatprep.subr.mxu0 0.0
  %3276 = vmatpush1.msra.mxu0 0.0
  %3277 = vmatprep.subr.mxu0 0.0
  %3278 = vmatpush1.msra.mxu0 0.0
  %3279 = vmatprep.subr.mxu0 0.0
  %3280 = vmatpush1.msra.mxu0 0.0
  %3281 = vmatprep.subr.mxu0 0.0
  %3282 = vmatpush1.msra.mxu0 0.0
  %3283 = vmatprep.subr.mxu0 0.0
  %3284 = vmatpush1.msra.mxu0 0.0
  %3285 = vmatprep.subr.mxu0 0.0
  %3286 = vmatpush1.msra.mxu0 0.0
  %3287 = vmatprep.subr.mxu0 0.0
  %3288 = vmatpush1.msra.mxu0 0.0
  %3289 = vmatprep.subr.mxu0 0.0
  %3290 = vmatpush1.msra.mxu0 0.0
  %3291 = vmatprep.subr.mxu0 0.0
  %3292 = vmatpush1.msra.mxu0 0.0
  %3293 = vmatprep.mubr.f32.mxu0 0.0
  %3294 = vmatmul.mubr.f32.gmra.mrb[0].mxu0 %v3218
  %v3295 = vpop.f32.mrb[0].mxu0
  %v3296 = vadd.f32 0.0, %v3295
  %v3297 = vpop.f32.mrb[0].mxu0
  %3298 = vmatprep.mubr.f32.mxu0 0.0
  %3299 = vmatmul.mubr.f32.gmra.mrb[0].mxu0 %v3221
  %v3300 = vpop.f32.mrb[0].mxu0
  %v3301 = vadd.f32 0.0, %v3300
  %v3302 = vpop.f32.mrb[0].mxu0
  %3303 = vmatprep.mubr.f32.mxu0 0.0
  %3304 = vmatmul.mubr.f32.gmra.mrb[0].mxu0 %v3224
  %v3305 = vpop.f32.mrb[0].mxu0
  %v3306 = vadd.f32 0.0, %v3305
  %v3307 = vpop.f32.mrb[0].mxu0
  %3308 = vmatprep.mubr.f32.mxu0 0.0
  %3309 = vmatmul.mubr.f32.gmra.mrb[0].mxu0 %v3227
  %v3310 = vpop.f32.mrb[0].mxu0
  %v3311 = vadd.f32 0.0, %v3310
  %v3312 = vpop.f32.mrb[0].mxu0
  %3313 = vdwg.mxu0
  %v3314 = vld [vmem:[%s1 + $0x700] sm:$0xff]
  %v3315 = vld [vmem:[%s1 + $0x708] sm:$0xff]
  %v3316 = vld [vmem:[%s1 + $0x710] sm:$0xff]
  %v3317 = vld [vmem:[%s1 + $0x718] sm:$0xff]
  %v3318 = vld [vmem:[%s1 + $0x720] sm:$0xff]
  %v3319 = vld [vmem:[%s1 + $0x728] sm:$0xff]
  %v3320 = vld [vmem:[%s1 + $0x730] sm:$0xff]
  %v3321 = vld [vmem:[%s1 + $0x738] sm:$0xff]
  %v3322 = vld [vmem:[%s1 + $0x740] sm:$0xff]
  %v3323 = vld [vmem:[%s1 + $0x748] sm:$0xff]
  %v3324 = vld [vmem:[%s1 + $0x750] sm:$0xff]
  %v3325 = vld [vmem:[%s1 + $0x758] sm:$0xff]
  %v3326 = vld [vmem:[%s1 + $0x760] sm:$0x1]
  %v3329 = vrot.slane %v3296, 7
  %v3330 = vrot.slane %v3301, 7
  %v3331 = vsel %vm26, %v3329, %v3330
  %v3335 = vsel %vm26, 0.0, %v3329
  %v3336 = vsel %vm26, %v3330, 0.0
  %v3339 = vrot.slane %v3335, 1
  %v3340 = vrot.slane %v3331, 1
  %v3341 = vsel %vm37, %v3339, %v3340
  %v3342 = vrot.slane %v3336, 1
  %v3343 = vsel %vm37, %v3340, %v3342
  %3344 = vrot.lane.b32.xlu0 %v3341, 32
  %v3345 = vpop.permute.xlu0 %3344
  %3346 = vrot.lane.b32.xlu0 %v3343, 32
  %v3347 = vpop.permute.xlu0 %3346
  %v3350 = vrot.slane %v3335, 2
  %v3351 = vrot.slane %v3331, 2
  %v3352 = vsel %vm49, %v3350, %v3351
  %v3353 = vrot.slane %v3336, 2
  %v3354 = vsel %vm49, %v3351, %v3353
  %3355 = vrot.lane.b32.xlu0 %v3352, 64
  %v3356 = vpop.permute.xlu0 %3355
  %3357 = vrot.lane.b32.xlu0 %v3354, 64
  %v3358 = vpop.permute.xlu0 %3357
  %v3361 = vsel %vm64, %v3335, %v3345
  %v3362 = vsel %vm64, %v3331, %v3347
  %v3363 = vsel %vm262, %v3361, %v3356
  %v3364 = vsel %vm262, %v3362, %v3358
  %v3367 = vrot.slane %v3306, 7
  %v3368 = vrot.slane %v3311, 7
  %v3369 = vsel %vm26, %v3367, %v3368
  %v3373 = vsel %vm26, 0.0, %v3367
  %v3374 = vsel %vm26, %v3368, 0.0
  %v3377 = vrot.slane %v3373, 1
  %v3378 = vrot.slane %v3369, 1
  %v3379 = vsel %vm37, %v3377, %v3378
  %v3380 = vrot.slane %v3374, 1
  %v3381 = vsel %vm37, %v3378, %v3380
  %3382 = vrot.lane.b32.xlu0 %v3379, 32
  %v3383 = vpop.permute.xlu0 %3382
  %3384 = vrot.lane.b32.xlu0 %v3381, 32
  %v3385 = vpop.permute.xlu0 %3384
  %v3388 = vrot.slane %v3373, 2
  %v3389 = vrot.slane %v3369, 2
  %v3390 = vsel %vm49, %v3388, %v3389
  %v3391 = vrot.slane %v3374, 2
  %v3392 = vsel %vm49, %v3389, %v3391
  %3393 = vrot.lane.b32.xlu0 %v3390, 64
  %v3394 = vpop.permute.xlu0 %3393
  %3395 = vrot.lane.b32.xlu0 %v3392, 64
  %v3396 = vpop.permute.xlu0 %3395
  %v3399 = vsel %vm64, %v3373, %v3383
  %v3400 = vsel %vm64, %v3369, %v3385
  %v3401 = vsel %vm262, %v3399, %v3394
  %v3402 = vsel %vm262, %v3400, %v3396
  %v3403 = vlaneseq
  %v3404 = vshrl.u32 %v3403, 7
  %v3405 = vsub.s32 0, %v3404
  %v3406 = vrot.slane %v3326, %v3405
  %v3408 = vsel %vm264, %v3363, 0
  %v3411 = vsel %vm264, %v3364, 0
  %v3414 = vsel %vm264, %v3401, 0
  %v3417 = vsel %vm264, %v3402, 0
  %3419 = vmatprep.subr.mxu0 0.0
  %3420 = vmatpush1.msra.mxu0 %v3314
  %3421 = vmatprep.subr.mxu0 0.0
  %3422 = vmatpush1.msra.mxu0 %v3315
  %3423 = vmatprep.subr.mxu0 0.0
  %3424 = vmatpush1.msra.mxu0 %v3316
  %3425 = vmatprep.subr.mxu0 0.0
  %3426 = vmatpush1.msra.mxu0 %v3317
  %3427 = vmatprep.subr.mxu0 0.0
  %3428 = vmatpush1.msra.mxu0 %v3318
  %3429 = vmatprep.subr.mxu0 0.0
  %3430 = vmatpush1.msra.mxu0 %v3319
  %3431 = vmatprep.subr.mxu0 0.0
  %3432 = vmatpush1.msra.mxu0 %v3320
  %3433 = vmatprep.subr.mxu0 0.0
  %3434 = vmatpush1.msra.mxu0 %v3321
  %3435 = vmatprep.subr.mxu0 0.0
  %3436 = vmatpush1.msra.mxu0 %v3322
  %3437 = vmatprep.subr.mxu0 0.0
  %3438 = vmatpush1.msra.mxu0 %v3323
  %3439 = vmatprep.subr.mxu0 0.0
  %3440 = vmatpush1.msra.mxu0 %v3324
  %3441 = vmatprep.subr.mxu0 0.0
  %3442 = vmatpush1.msra.mxu0 %v3325
  %3443 = vmatprep.subr.mxu0 0.0
  %3444 = vmatpush1.msra.mxu0 0.0
  %3445 = vmatprep.subr.mxu0 0.0
  %3446 = vmatpush1.msra.mxu0 0.0
  %3447 = vmatprep.subr.mxu0 0.0
  %3448 = vmatpush1.msra.mxu0 0.0
  %3449 = vmatprep.subr.mxu0 0.0
  %3450 = vmatpush1.msra.mxu0 0.0
  %3451 = vmatprep.subr.mxu0 0.0
  %3452 = vmatpush1.msra.mxu0 0.0
  %3453 = vmatprep.subr.mxu0 0.0
  %3454 = vmatpush1.msra.mxu0 0.0
  %3455 = vmatprep.subr.mxu0 0.0
  %3456 = vmatpush1.msra.mxu0 0.0
  %3457 = vmatprep.subr.mxu0 0.0
  %3458 = vmatpush1.msra.mxu0 0.0
  %3459 = vmatprep.subr.mxu0 0.0
  %3460 = vmatpush1.msra.mxu0 0.0
  %3461 = vmatprep.subr.mxu0 0.0
  %3462 = vmatpush1.msra.mxu0 0.0
  %3463 = vmatprep.subr.mxu0 0.0
  %3464 = vmatpush1.msra.mxu0 0.0
  %3465 = vmatprep.subr.mxu0 0.0
  %3466 = vmatpush1.msra.mxu0 0.0
  %3467 = vmatprep.subr.mxu0 0.0
  %3468 = vmatpush1.msra.mxu0 0.0
  %3469 = vmatprep.subr.mxu0 0.0
  %3470 = vmatpush1.msra.mxu0 0.0
  %3471 = vmatprep.subr.mxu0 0.0
  %3472 = vmatpush1.msra.mxu0 0.0
  %3473 = vmatprep.subr.mxu0 0.0
  %3474 = vmatpush1.msra.mxu0 0.0
  %3475 = vmatprep.subr.mxu0 0.0
  %3476 = vmatpush1.msra.mxu0 0.0
  %3477 = vmatprep.subr.mxu0 0.0
  %3478 = vmatpush1.msra.mxu0 0.0
  %3479 = vmatprep.subr.mxu0 0.0
  %3480 = vmatpush1.msra.mxu0 0.0
  %3481 = vmatprep.subr.mxu0 0.0
  %3482 = vmatpush1.msra.mxu0 0.0
  %3483 = vmatprep.mubr.f32.mxu0 0.0
  %3484 = vmatmul.mubr.f32.gmra.mrb[0].mxu0 %v3408
  %v3485 = vpop.f32.mrb[0].mxu0
  %v3486 = vadd.f32 %v3406, %v3485
  %v3487 = vpop.f32.mrb[0].mxu0
  %3488 = vmatprep.mubr.f32.mxu0 0.0
  %3489 = vmatmul.mubr.f32.gmra.mrb[0].mxu0 %v3411
  %v3490 = vpop.f32.mrb[0].mxu0
  %v3491 = vadd.f32 %v3406, %v3490
  %v3492 = vpop.f32.mrb[0].mxu0
  %3493 = vmatprep.mubr.f32.mxu0 0.0
  %3494 = vmatmul.mubr.f32.gmra.mrb[0].mxu0 %v3414
  %v3495 = vpop.f32.mrb[0].mxu0
  %v3496 = vadd.f32 %v3406, %v3495
  %v3497 = vpop.f32.mrb[0].mxu0
  %3498 = vmatprep.mubr.f32.mxu0 0.0
  %3499 = vmatmul.mubr.f32.gmra.mrb[0].mxu0 %v3417
  %v3500 = vpop.f32.mrb[0].mxu0
  %v3501 = vadd.f32 %v3406, %v3500
  %v3502 = vpop.f32.mrb[0].mxu0
  %3503 = vdwg.mxu0
  %v3504 = vld [vmem:[%s1 + $0x768] sm:$0xff]
  %v3505 = vld [vmem:[%s1 + $0x770] sm:$0xff]
  %v3506 = vld [vmem:[%s1 + $0x778] sm:$0xff]
  %v3507 = vld [vmem:[%s1 + $0x780] sm:$0xff]
  %v3508 = vld [vmem:[%s1 + $0x788] sm:$0xff]
  %v3509 = vld [vmem:[%s1 + $0x790] sm:$0xff]
  %v3510 = vld [vmem:[%s1 + $0x798] sm:$0xff]
  %v3511 = vld [vmem:[%s1 + $0x7a0] sm:$0xff]
  %v3512 = vld [vmem:[%s1 + $0x7a8] sm:$0xff]
  %v3513 = vld [vmem:[%s1 + $0x7b0] sm:$0xff]
  %v3514 = vld [vmem:[%s1 + $0x7b8] sm:$0xff]
  %v3515 = vld [vmem:[%s1 + $0x7c0] sm:$0xff]
  %v3516 = vld [vmem:[%s1 + $0x7c8] sm:$0x1]
  %v3519 = vrot.slane %v3486, 7
  %v3520 = vrot.slane %v3491, 7
  %v3521 = vsel %vm26, %v3519, %v3520
  %v3525 = vsel %vm26, 0.0, %v3519
  %v3526 = vsel %vm26, %v3520, 0.0
  %v3529 = vrot.slane %v3525, 1
  %v3530 = vrot.slane %v3521, 1
  %v3531 = vsel %vm37, %v3529, %v3530
  %v3532 = vrot.slane %v3526, 1
  %v3533 = vsel %vm37, %v3530, %v3532
  %3534 = vrot.lane.b32.xlu0 %v3531, 32
  %v3535 = vpop.permute.xlu0 %3534
  %3536 = vrot.lane.b32.xlu0 %v3533, 32
  %v3537 = vpop.permute.xlu0 %3536
  %v3540 = vrot.slane %v3525, 2
  %v3541 = vrot.slane %v3521, 2
  %v3542 = vsel %vm49, %v3540, %v3541
  %v3543 = vrot.slane %v3526, 2
  %v3544 = vsel %vm49, %v3541, %v3543
  %3545 = vrot.lane.b32.xlu0 %v3542, 64
  %v3546 = vpop.permute.xlu0 %3545
  %3547 = vrot.lane.b32.xlu0 %v3544, 64
  %v3548 = vpop.permute.xlu0 %3547
  %v3551 = vsel %vm64, %v3525, %v3535
  %v3552 = vsel %vm64, %v3521, %v3537
  %v3553 = vsel %vm262, %v3551, %v3546
  %v3554 = vsel %vm262, %v3552, %v3548
  %v3557 = vrot.slane %v3496, 7
  %v3558 = vrot.slane %v3501, 7
  %v3559 = vsel %vm26, %v3557, %v3558
  %v3563 = vsel %vm26, 0.0, %v3557
  %v3564 = vsel %vm26, %v3558, 0.0
  %v3567 = vrot.slane %v3563, 1
  %v3568 = vrot.slane %v3559, 1
  %v3569 = vsel %vm37, %v3567, %v3568
  %v3570 = vrot.slane %v3564, 1
  %v3571 = vsel %vm37, %v3568, %v3570
  %3572 = vrot.lane.b32.xlu0 %v3569, 32
  %v3573 = vpop.permute.xlu0 %3572
  %3574 = vrot.lane.b32.xlu0 %v3571, 32
  %v3575 = vpop.permute.xlu0 %3574
  %v3578 = vrot.slane %v3563, 2
  %v3579 = vrot.slane %v3559, 2
  %v3580 = vsel %vm49, %v3578, %v3579
  %v3581 = vrot.slane %v3564, 2
  %v3582 = vsel %vm49, %v3579, %v3581
  %3583 = vrot.lane.b32.xlu0 %v3580, 64
  %v3584 = vpop.permute.xlu0 %3583
  %3585 = vrot.lane.b32.xlu0 %v3582, 64
  %v3586 = vpop.permute.xlu0 %3585
  %v3589 = vsel %vm64, %v3563, %v3573
  %v3590 = vsel %vm64, %v3559, %v3575
  %v3591 = vsel %vm262, %v3589, %v3584
  %v3592 = vsel %vm262, %v3590, %v3586
  %v3593 = vlaneseq
  %v3594 = vshrl.u32 %v3593, 7
  %v3595 = vsub.s32 0, %v3594
  %v3596 = vrot.slane %v3516, %v3595
  %v3598 = vsel %vm264, %v3553, 0
  %v3601 = vsel %vm264, %v3554, 0
  %v3604 = vsel %vm264, %v3591, 0
  %v3607 = vsel %vm264, %v3592, 0
  %3609 = vmatprep.subr.mxu0 0.0
  %3610 = vmatpush1.msra.mxu0 %v3504
  %3611 = vmatprep.subr.mxu0 0.0
  %3612 = vmatpush1.msra.mxu0 %v3505
  %3613 = vmatprep.subr.mxu0 0.0
  %3614 = vmatpush1.msra.mxu0 %v3506
  %3615 = vmatprep.subr.mxu0 0.0
  %3616 = vmatpush1.msra.mxu0 %v3507
  %3617 = vmatprep.subr.mxu0 0.0
  %3618 = vmatpush1.msra.mxu0 %v3508
  %3619 = vmatprep.subr.mxu0 0.0
  %3620 = vmatpush1.msra.mxu0 %v3509
  %3621 = vmatprep.subr.mxu0 0.0
  %3622 = vmatpush1.msra.mxu0 %v3510
  %3623 = vmatprep.subr.mxu0 0.0
  %3624 = vmatpush1.msra.mxu0 %v3511
  %3625 = vmatprep.subr.mxu0 0.0
  %3626 = vmatpush1.msra.mxu0 %v3512
  %3627 = vmatprep.subr.mxu0 0.0
  %3628 = vmatpush1.msra.mxu0 %v3513
  %3629 = vmatprep.subr.mxu0 0.0
  %3630 = vmatpush1.msra.mxu0 %v3514
  %3631 = vmatprep.subr.mxu0 0.0
  %3632 = vmatpush1.msra.mxu0 %v3515
  %3633 = vmatprep.subr.mxu0 0.0
  %3634 = vmatpush1.msra.mxu0 0.0
  %3635 = vmatprep.subr.mxu0 0.0
  %3636 = vmatpush1.msra.mxu0 0.0
  %3637 = vmatprep.subr.mxu0 0.0
  %3638 = vmatpush1.msra.mxu0 0.0
  %3639 = vmatprep.subr.mxu0 0.0
  %3640 = vmatpush1.msra.mxu0 0.0
  %3641 = vmatprep.subr.mxu0 0.0
  %3642 = vmatpush1.msra.mxu0 0.0
  %3643 = vmatprep.subr.mxu0 0.0
  %3644 = vmatpush1.msra.mxu0 0.0
  %3645 = vmatprep.subr.mxu0 0.0
  %3646 = vmatpush1.msra.mxu0 0.0
  %3647 = vmatprep.subr.mxu0 0.0
  %3648 = vmatpush1.msra.mxu0 0.0
  %3649 = vmatprep.subr.mxu0 0.0
  %3650 = vmatpush1.msra.mxu0 0.0
  %3651 = vmatprep.subr.mxu0 0.0
  %3652 = vmatpush1.msra.mxu0 0.0
  %3653 = vmatprep.subr.mxu0 0.0
  %3654 = vmatpush1.msra.mxu0 0.0
  %3655 = vmatprep.subr.mxu0 0.0
  %3656 = vmatpush1.msra.mxu0 0.0
  %3657 = vmatprep.subr.mxu0 0.0
  %3658 = vmatpush1.msra.mxu0 0.0
  %3659 = vmatprep.subr.mxu0 0.0
  %3660 = vmatpush1.msra.mxu0 0.0
  %3661 = vmatprep.subr.mxu0 0.0
  %3662 = vmatpush1.msra.mxu0 0.0
  %3663 = vmatprep.subr.mxu0 0.0
  %3664 = vmatpush1.msra.mxu0 0.0
  %3665 = vmatprep.subr.mxu0 0.0
  %3666 = vmatpush1.msra.mxu0 0.0
  %3667 = vmatprep.subr.mxu0 0.0
  %3668 = vmatpush1.msra.mxu0 0.0
  %3669 = vmatprep.subr.mxu0 0.0
  %3670 = vmatpush1.msra.mxu0 0.0
  %3671 = vmatprep.subr.mxu0 0.0
  %3672 = vmatpush1.msra.mxu0 0.0
  %3673 = vmatprep.mubr.f32.mxu0 0.0
  %3674 = vmatmul.mubr.f32.gmra.mrb[0].mxu0 %v3598
  %v3675 = vpop.f32.mrb[0].mxu0
  %v3676 = vadd.f32 %v3596, %v3675
  %v3677 = vpop.f32.mrb[0].mxu0
  %3678 = vmatprep.mubr.f32.mxu0 0.0
  %3679 = vmatmul.mubr.f32.gmra.mrb[0].mxu0 %v3601
  %v3680 = vpop.f32.mrb[0].mxu0
  %v3681 = vadd.f32 %v3596, %v3680
  %v3682 = vpop.f32.mrb[0].mxu0
  %3683 = vmatprep.mubr.f32.mxu0 0.0
  %3684 = vmatmul.mubr.f32.gmra.mrb[0].mxu0 %v3604
  %v3685 = vpop.f32.mrb[0].mxu0
  %v3686 = vadd.f32 %v3596, %v3685
  %v3687 = vpop.f32.mrb[0].mxu0
  %3688 = vmatprep.mubr.f32.mxu0 0.0
  %3689 = vmatmul.mubr.f32.gmra.mrb[0].mxu0 %v3607
  %v3690 = vpop.f32.mrb[0].mxu0
  %v3691 = vadd.f32 %v3596, %v3690
  %v3692 = vpop.f32.mrb[0].mxu0
  %3693 = vdwg.mxu0
  %v3694 = vmax.f32 %v3676, 0.0
  %v3695 = vmax.f32 %v3681, 0.0
  %v3696 = vmax.f32 %v3686, 0.0
  %v3697 = vmax.f32 %v3691, 0.0
  %v3698 = vld [vmem:[%s1 + $0x7d0] sm:$0xff]
  %v3699 = vld [vmem:[%s1 + $0x7d8] sm:$0xff]
  %v3700 = vld [vmem:[%s1 + $0x7e0] sm:$0xff]
  %v3701 = vld [vmem:[%s1 + $0x7e8] sm:$0xff]
  %v3702 = vld [vmem:[%s1 + $0x7f0] sm:$0xff]
  %v3703 = vld [vmem:[%s1 + $0x7f8] sm:$0xff]
  %v3704 = vld [vmem:[%s1 + $0x800] sm:$0xff]
  %v3705 = vld [vmem:[%s1 + $0x808] sm:$0xff]
  %v3706 = vld [vmem:[%s1 + $0x810] sm:$0xff]
  %v3707 = vld [vmem:[%s1 + $0x818] sm:$0xff]
  %v3708 = vld [vmem:[%s1 + $0x820] sm:$0xff]
  %v3709 = vld [vmem:[%s1 + $0x828] sm:$0xff]
  %v3710 = vld [vmem:[%s1 + $0x830] sm:$0x1]
  %v3713 = vrot.slane %v3694, 7
  %v3714 = vrot.slane %v3695, 7
  %v3715 = vsel %vm26, %v3713, %v3714
  %v3719 = vsel %vm26, 0.0, %v3713
  %v3720 = vsel %vm26, %v3714, 0.0
  %v3723 = vrot.slane %v3719, 1
  %v3724 = vrot.slane %v3715, 1
  %v3725 = vsel %vm37, %v3723, %v3724
  %v3726 = vrot.slane %v3720, 1
  %v3727 = vsel %vm37, %v3724, %v3726
  %3728 = vrot.lane.b32.xlu0 %v3725, 32
  %v3729 = vpop.permute.xlu0 %3728
  %3730 = vrot.lane.b32.xlu0 %v3727, 32
  %v3731 = vpop.permute.xlu0 %3730
  %v3734 = vrot.slane %v3719, 2
  %v3735 = vrot.slane %v3715, 2
  %v3736 = vsel %vm49, %v3734, %v3735
  %v3737 = vrot.slane %v3720, 2
  %v3738 = vsel %vm49, %v3735, %v3737
  %3739 = vrot.lane.b32.xlu0 %v3736, 64
  %v3740 = vpop.permute.xlu0 %3739
  %3741 = vrot.lane.b32.xlu0 %v3738, 64
  %v3742 = vpop.permute.xlu0 %3741
  %v3745 = vsel %vm64, %v3719, %v3729
  %v3746 = vsel %vm64, %v3715, %v3731
  %v3747 = vsel %vm262, %v3745, %v3740
  %v3748 = vsel %vm262, %v3746, %v3742
  %v3751 = vrot.slane %v3696, 7
  %v3752 = vrot.slane %v3697, 7
  %v3753 = vsel %vm26, %v3751, %v3752
  %v3757 = vsel %vm26, 0.0, %v3751
  %v3758 = vsel %vm26, %v3752, 0.0
  %v3761 = vrot.slane %v3757, 1
  %v3762 = vrot.slane %v3753, 1
  %v3763 = vsel %vm37, %v3761, %v3762
  %v3764 = vrot.slane %v3758, 1
  %v3765 = vsel %vm37, %v3762, %v3764
  %3766 = vrot.lane.b32.xlu0 %v3763, 32
  %v3767 = vpop.permute.xlu0 %3766
  %3768 = vrot.lane.b32.xlu0 %v3765, 32
  %v3769 = vpop.permute.xlu0 %3768
  %v3772 = vrot.slane %v3757, 2
  %v3773 = vrot.slane %v3753, 2
  %v3774 = vsel %vm49, %v3772, %v3773
  %v3775 = vrot.slane %v3758, 2
  %v3776 = vsel %vm49, %v3773, %v3775
  %3777 = vrot.lane.b32.xlu0 %v3774, 64
  %v3778 = vpop.permute.xlu0 %3777
  %3779 = vrot.lane.b32.xlu0 %v3776, 64
  %v3780 = vpop.permute.xlu0 %3779
  %v3783 = vsel %vm64, %v3757, %v3767
  %v3784 = vsel %vm64, %v3753, %v3769
  %v3785 = vsel %vm262, %v3783, %v3778
  %v3786 = vsel %vm262, %v3784, %v3780
  %v3787 = vlaneseq
  %v3788 = vshrl.u32 %v3787, 7
  %v3789 = vsub.s32 0, %v3788
  %v3790 = vrot.slane %v3710, %v3789
  %v3792 = vsel %vm264, %v3747, 0
  %v3795 = vsel %vm264, %v3748, 0
  %v3798 = vsel %vm264, %v3785, 0
  %v3801 = vsel %vm264, %v3786, 0
  %3803 = vmatprep.subr.mxu0 0.0
  %3804 = vmatpush1.msra.mxu0 %v3698
  %3805 = vmatprep.subr.mxu0 0.0
  %3806 = vmatpush1.msra.mxu0 %v3699
  %3807 = vmatprep.subr.mxu0 0.0
  %3808 = vmatpush1.msra.mxu0 %v3700
  %3809 = vmatprep.subr.mxu0 0.0
  %3810 = vmatpush1.msra.mxu0 %v3701
  %3811 = vmatprep.subr.mxu0 0.0
  %3812 = vmatpush1.msra.mxu0 %v3702
  %3813 = vmatprep.subr.mxu0 0.0
  %3814 = vmatpush1.msra.mxu0 %v3703
  %3815 = vmatprep.subr.mxu0 0.0
  %3816 = vmatpush1.msra.mxu0 %v3704
  %3817 = vmatprep.subr.mxu0 0.0
  %3818 = vmatpush1.msra.mxu0 %v3705
  %3819 = vmatprep.subr.mxu0 0.0
  %3820 = vmatpush1.msra.mxu0 %v3706
  %3821 = vmatprep.subr.mxu0 0.0
  %3822 = vmatpush1.msra.mxu0 %v3707
  %3823 = vmatprep.subr.mxu0 0.0
  %3824 = vmatpush1.msra.mxu0 %v3708
  %3825 = vmatprep.subr.mxu0 0.0
  %3826 = vmatpush1.msra.mxu0 %v3709
  %3827 = vmatprep.subr.mxu0 0.0
  %3828 = vmatpush1.msra.mxu0 0.0
  %3829 = vmatprep.subr.mxu0 0.0
  %3830 = vmatpush1.msra.mxu0 0.0
  %3831 = vmatprep.subr.mxu0 0.0
  %3832 = vmatpush1.msra.mxu0 0.0
  %3833 = vmatprep.subr.mxu0 0.0
  %3834 = vmatpush1.msra.mxu0 0.0
  %3835 = vmatprep.subr.mxu0 0.0
  %3836 = vmatpush1.msra.mxu0 0.0
  %3837 = vmatprep.subr.mxu0 0.0
  %3838 = vmatpush1.msra.mxu0 0.0
  %3839 = vmatprep.subr.mxu0 0.0
  %3840 = vmatpush1.msra.mxu0 0.0
  %3841 = vmatprep.subr.mxu0 0.0
  %3842 = vmatpush1.msra.mxu0 0.0
  %3843 = vmatprep.subr.mxu0 0.0
  %3844 = vmatpush1.msra.mxu0 0.0
  %3845 = vmatprep.subr.mxu0 0.0
  %3846 = vmatpush1.msra.mxu0 0.0
  %3847 = vmatprep.subr.mxu0 0.0
  %3848 = vmatpush1.msra.mxu0 0.0
  %3849 = vmatprep.subr.mxu0 0.0
  %3850 = vmatpush1.msra.mxu0 0.0
  %3851 = vmatprep.subr.mxu0 0.0
  %3852 = vmatpush1.msra.mxu0 0.0
  %3853 = vmatprep.subr.mxu0 0.0
  %3854 = vmatpush1.msra.mxu0 0.0
  %3855 = vmatprep.subr.mxu0 0.0
  %3856 = vmatpush1.msra.mxu0 0.0
  %3857 = vmatprep.subr.mxu0 0.0
  %3858 = vmatpush1.msra.mxu0 0.0
  %3859 = vmatprep.subr.mxu0 0.0
  %3860 = vmatpush1.msra.mxu0 0.0
  %3861 = vmatprep.subr.mxu0 0.0
  %3862 = vmatpush1.msra.mxu0 0.0
  %3863 = vmatprep.subr.mxu0 0.0
  %3864 = vmatpush1.msra.mxu0 0.0
  %3865 = vmatprep.subr.mxu0 0.0
  %3866 = vmatpush1.msra.mxu0 0.0
  %3867 = vmatprep.mubr.f32.mxu0 0.0
  %3868 = vmatmul.mubr.f32.gmra.mrb[0].mxu0 %v3792
  %v3869 = vpop.f32.mrb[0].mxu0
  %v3870 = vadd.f32 %v3790, %v3869
  %v3871 = vpop.f32.mrb[0].mxu0
  %3872 = vmatprep.mubr.f32.mxu0 0.0
  %3873 = vmatmul.mubr.f32.gmra.mrb[0].mxu0 %v3795
  %v3874 = vpop.f32.mrb[0].mxu0
  %v3875 = vadd.f32 %v3790, %v3874
  %v3876 = vpop.f32.mrb[0].mxu0
  %3877 = vmatprep.mubr.f32.mxu0 0.0
  %3878 = vmatmul.mubr.f32.gmra.mrb[0].mxu0 %v3798
  %v3879 = vpop.f32.mrb[0].mxu0
  %v3880 = vadd.f32 %v3790, %v3879
  %v3881 = vpop.f32.mrb[0].mxu0
  %3882 = vmatprep.mubr.f32.mxu0 0.0
  %3883 = vmatmul.mubr.f32.gmra.mrb[0].mxu0 %v3801
  %v3884 = vpop.f32.mrb[0].mxu0
  %v3885 = vadd.f32 %v3790, %v3884
  %v3886 = vpop.f32.mrb[0].mxu0
  %3887 = vdwg.mxu0
  %vm3888 = vcmask 97280
  %3889 = vst.msk [vmem:[%s2] sm:$0xff] %vm3888, %v3870
  %3890 = vst.msk [vmem:[%s2 + $0x8] sm:$0xff] %vm3888, %v3875
  %3891 = vst.msk [vmem:[%s2 + $0x10] sm:$0xff] %vm3888, %v3880
  %3892 = vst.msk [vmem:[%s2 + $0x18] sm:$0xff] %vm3888, %v3885
  %3894 = vrot.lane.b32.xlu0 %v1967, 64
  %v3895 = vpop.permute.xlu0 %3894
  %v3897 = vsel %vm262, %v1758, %v3895
  %vm3898 = vcmask 7168
  %v3899 = vsel %vm3898, %v1751, %v1960
  %vm3900 = vcmask 15360
  %v3901 = vsel %vm3900, %v3899, 0.0
  %v3902 = vsel %vm3898, %v1662, %v1871
  %v3903 = vcvt.s32.f32 %v3902
  %v3904 = vsel %vm3900, %v3903, 0.0
  %v3906 = vrot.slane %v3901, 7
  %v3909 = vrot.slane %v3904, 6
  %v3911 = vsel %vm26, %v3897, %v3906
  %v3912 = vsel %vm407, %v3911, %v3909
  %v3913 = vsel %vm407, %v3909, 0.0
  %3914 = vst [vmem:[%s3] sm:$0xff] %v3912
  %3915 = vst [vmem:[%s3 + $0x8] sm:$0xff] %v3913
  // Predicated region
  $region10: #{human_rvqvae_forward.1} parent=0 // pred_check
    _
  $region11: #{human_rvqvae_forward.1} parent=0 // pred_check_branch
    %3917 = sbr.rel (0) target = $region13
  $region12: #{human_rvqvae_forward.1} parent=0 // pred_region
    _
  $region13: #{human_rvqvae_forward.1} parent=0 // pred_fallthru
    _
  // Predicated region
  $region14: #{human_rvqvae_forward.1} parent=0 // pred_check
    _
  $region15: #{human_rvqvae_forward.1} parent=0 // pred_check_branch
    %3919 = sbr.rel (0) target = $region17
  $region16: #{human_rvqvae_forward.1} parent=0 // pred_region
    _
  $region17: #{human_rvqvae_forward.1} parent=0 // pred_fallthru
    _
  // Predicated region
  $region18: #{human_rvqvae_forward.1} parent=0 // pred_check
    _
  $region19: #{human_rvqvae_forward.1} parent=0 // pred_check_branch
    %3921 = sbr.rel (0) target = $region21
  $region20: #{human_rvqvae_forward.1} parent=0 // pred_region
    _
  $region21: #{human_rvqvae_forward.1} parent=0 // pred_fallthru
    _
  // Predicated region
  $region22: #{human_rvqvae_forward.1} parent=0 // pred_check
    _
  $region23: #{human_rvqvae_forward.1} parent=0 // pred_check_branch
    %3923 = sbr.rel (0) target = $region25
  $region24: #{human_rvqvae_forward.1} parent=0 // pred_region
    _
  $region25: #{human_rvqvae_forward.1} parent=0 // pred_fallthru
    _

</llo_original>
